<compile_context>
chip_gen: v5e
topology: v5e:2x2
jax: 0.10.0
libtpu: 0.0.40
codegen_flags: <defaults>
</compile_context>

<pallas_src>
import functools

import jax
import jax.numpy as jnp
from jax import lax
from jax.experimental import pallas as pl
from jax.experimental.pallas import tpu as pltpu


def _round_up(v, m):
    return (v + m - 1) // m * m


def _deconv_relu_kernel(x_ref, sel_ref, w_ref, b_ref, o_ref, canvas_ref, *,
                        KH, KW, sh, pad_h, Hp, Wrow, Ho, Wo):
    """One batch image.

    x_ref:      [1, Cin, H, W]        original (undilated, unpadded) input
    sel_ref:    [W, Wrow]             W-axis zero-insertion + edge-pad selection
    w_ref:      [KH*KW, Cout, Cin]    flipped ConvTranspose taps
    b_ref:      [Cout, 1]
    o_ref:      [1, Cout, Ho, Wo]
    canvas_ref: [Cin, Crows*Wrow]     flat dilated+padded canvas (lane-aligned rows)
    """
    _, Cin, H, W = x_ref.shape
    Crows = canvas_ref.shape[1] // Wrow
    L = Ho * Wrow

    # --- W axis: zero-insertion (stride sw) + edge pad via ONE selection matmul.
    x2 = x_ref[0].astype(jnp.float32).reshape(Cin * H, W)
    xw = jnp.dot(x2, sel_ref[...], preferred_element_type=jnp.float32)   # [Cin*H, Wrow]
    xw = xw.reshape(Cin, H, Wrow)

    # --- H axis: place (possibly strided) rows into the flat canvas.  Row
    #     stride Wrow is a multiple of 128, so every store start is lane
    #     aligned.  Rows produced by the selection matmul are fully defined
    #     (their zero gaps included), so only never-written rows need explicit
    #     zeroing; this runs every grid step so it stays correct when the
    #     batch axis is split across TensorCores ("parallel" semantics).
    written = set()
    for ih in range(H):                                    # static unrolled loop
        a = pad_h + ih * sh
        if 0 <= a < Hp:                                    # (skips cropped rows)
            canvas_ref[:, a * Wrow:(a + 1) * Wrow] = xw[:, ih, :]
            written.add(a)
    for a in range(Crows):
        if a not in written:
            canvas_ref[:, a * Wrow:(a + 1) * Wrow] = jnp.zeros((Cin, Wrow),
                                                               jnp.float32)

    # --- KH*KW lane-shifted windows of the canvas, one MXU dot each, f32 acc.
    #     (No im2col patch matrix is materialized; no concatenates.)
    acc = None
    for kh in range(KH):
        for kw in range(KW):
            off = kh * Wrow + kw
            win = canvas_ref[:, off:off + L]               # [Cin, L]
            c = jnp.dot(w_ref[kh * KW + kw], win,
                        preferred_element_type=jnp.float32)
            acc = c if acc is None else acc + c            # [Cout, L]

    y = jnp.maximum(acc + b_ref[...], 0.0).astype(o_ref.dtype)  # bias + ReLU

    # --- Crop the valid [Ho, Wo] window row by row.  Source starts oh*Wrow are
    #     multiples of 128 (no lane rotation); stores become fully unmasked
    #     once Wo is a multiple of 128 (true for production SqueezeSeg widths).
    for oh in range(Ho):                                   # static unrolled loop
        o_ref[0, :, oh, :] = y[:, oh * Wrow:oh * Wrow + Wo]


@functools.partial(jax.jit, static_argnames=("stride", "padding"))
def deconv_relu(x, w, b, *, stride, padding):
    """ConvTranspose2d(x; w, b) followed by ReLU.

    x: [N, Cin, H, W]           (NCHW, like PyTorch)
    w: [Cin, Cout, KH, KW]      (PyTorch ConvTranspose2d weight layout)
    b: [Cout]
    returns: [N, Cout, H_out, W_out]   (NCHW)
    """
    N, Cin, H, W = x.shape
    _, Cout, KH, KW = w.shape
    sh, sw = stride
    ph, pw = padding

    Ho = (H - 1) * sh - 2 * ph + KH
    Wo = (W - 1) * sw - 2 * pw + KW
    pad_h = KH - 1 - ph                       # may be negative (crop) - handled
    pad_w = KW - 1 - pw
    Hp = Ho + KH - 1                          # dilated + padded height
    Wp = Wo + KW - 1                          # dilated + padded width
    Wrow = _round_up(Wp, 128)                 # lane-aligned canvas row stride
    Crows = Hp + (1 if KW > 1 else 0)         # +1 zero row so tap windows fit

    # W-axis dilation/pad selection: sel[iw, b] = 1 iff b == iw*sw + pad_w.
    iw = lax.broadcasted_iota(jnp.int32, (W, Wrow), 0)
    bb = lax.broadcasted_iota(jnp.int32, (W, Wrow), 1)
    sel = (bb == iw * sw + pad_w).astype(jnp.float32)

    # ConvTranspose weight -> flipped conv taps, [KH*KW, Cout, Cin].
    wf = jnp.flip(w, axis=(2, 3))                                  # [Cin,Cout,KH,KW]
    w_taps = jnp.transpose(wf, (2, 3, 1, 0)).reshape(KH * KW, Cout, Cin)
    w_taps = w_taps.astype(jnp.float32)
    b2 = b.reshape(Cout, 1).astype(jnp.float32)
    # TODO(synk): if upstream activations already arrive as bf16, feed x / w_taps
    # as bf16 (f32 accumulation is kept via preferred_element_type); a standalone
    # f32->bf16 cast here would itself add an HBM pass, so it is not done.

    kernel = functools.partial(
        _deconv_relu_kernel, KH=KH, KW=KW, sh=sh, pad_h=pad_h,
        Hp=Hp, Wrow=Wrow, Ho=Ho, Wo=Wo)

    out = pl.pallas_call(
        kernel,
        out_shape=jax.ShapeDtypeStruct((N, Cout, Ho, Wo), x.dtype),
        grid_spec=pltpu.PrefetchScalarGridSpec(
            num_scalar_prefetch=0,
            grid=(N,),
            in_specs=[
                pl.BlockSpec((1, Cin, H, W), lambda n: (n, 0, 0, 0)),
                pl.BlockSpec((W, Wrow), lambda n: (0, 0)),
                pl.BlockSpec((KH * KW, Cout, Cin), lambda n: (0, 0, 0)),
                pl.BlockSpec((Cout, 1), lambda n: (0, 0)),
            ],
            out_specs=pl.BlockSpec((1, Cout, Ho, Wo), lambda n: (n, 0, 0, 0)),
            scratch_shapes=[pltpu.VMEM((Cin, Crows * Wrow), jnp.float32)],
        ),
        compiler_params=pltpu.CompilerParams(
            dimension_semantics=("parallel",)),
    )(x, sel, w_taps, b2)
    # TODO(synk): for production SqueezeSeg sizes (Cin=Cout=64, W=512), tile Ho
    # (with a KH-1 halo) inside the grid and set vmem_limit_bytes so the canvas
    # and accumulator fit v7x's 64 MiB VMEM.
    return out


def _reference(x, w, b, *, stride, padding):
    """Pure-JAX reference (lax.conv_general_dilated) for verification."""
    Cin, Cout, KH, KW = w.shape
    sh, sw = stride
    ph, pw = padding
    w_conv = jnp.transpose(jnp.flip(w, axis=(2, 3)), (1, 0, 2, 3))  # [Cout,Cin,KH,KW]
    y = lax.conv_general_dilated(
        x, w_conv,
        window_strides=(1, 1),
        padding=[(KH - 1 - ph, KH - 1 - ph), (KW - 1 - pw, KW - 1 - pw)],
        lhs_dilation=(sh, sw),
        dimension_numbers=("NCHW", "OIHW", "NCHW"))
    y = y + b[None, :, None, None]
    return jnp.maximum(y, 0.0)


if __name__ == "__main__":
    # SqueezeSeg-style deconv: upsample width by 2.
    N, Cin, H, W = 2, 4, 16, 16
    Cout = 8
    kernel_size = (1, 4)
    stride = (1, 2)
    padding = (0, 1)

    key = jax.random.PRNGKey(0)
    kx, kw, kb = jax.random.split(key, 3)
    x = jax.random.normal(kx, (N, Cin, H, W), jnp.float32)
    w = 0.1 * jax.random.normal(kw, (Cin, Cout) + kernel_size, jnp.float32)
    b = 0.1 * jax.random.normal(kb, (Cout,), jnp.float32)

    out = deconv_relu(x, w, b, stride=stride, padding=padding)
    out = jax.block_until_ready(out)

    ref = _reference(x, w, b, stride=stride, padding=padding)
    assert out.shape == ref.shape == (N, Cout, H, 2 * W), out.shape
    assert jnp.allclose(out, ref, atol=1e-5, rtol=1e-5), "mismatch vs reference"

    print("KERNEL_OK")
</pallas_src>

<mosaic_0001>
module attributes {stable_mosaic.version = 11 : i64} {
  func.func @_deconv_relu_kernel(%arg0: i32, %arg1: memref<1x4x16x16xf32, #tpu.memory_space<vmem>>, %arg2: memref<16x128xf32, #tpu.memory_space<vmem>>, %arg3: memref<4x8x4xf32, #tpu.memory_space<vmem>>, %arg4: memref<8x1xf32, #tpu.memory_space<vmem>>, %arg5: memref<1x8x16x32xf32, #tpu.memory_space<vmem>>, %arg6: memref<4x2176xf32, #tpu.memory_space<vmem>>) attributes {dimension_semantics = [#tpu.dimension_semantics<parallel>], iteration_bounds = array<i64: 2>, scalar_prefetch = 0 : i64, scratch_operands = 1 : i64, tpu.core_type = #tpu.core_type<tc>, window_params = [{transform_indices = @transform_0, window_bounds = array<i64: 1, 4, 16, 16>}, {pipeline_mode = #tpu.pipeline_mode<synchronous>, transform_indices = @transform_1, window_bounds = array<i64: 16, 128>}, {pipeline_mode = #tpu.pipeline_mode<synchronous>, transform_indices = @transform_2, window_bounds = array<i64: 4, 8, 4>}, {pipeline_mode = #tpu.pipeline_mode<synchronous>, transform_indices = @transform_3, window_bounds = array<i64: 8, 1>}, {transform_indices = @transform_4, window_bounds = array<i64: 1, 8, 16, 32>}]} {
    %c0 = arith.constant 0 : index
    %c0_0 = arith.constant 0 : index
    %c0_1 = arith.constant 0 : index
    %c0_2 = arith.constant 0 : index
    %0 = vector.load %arg1[%c0, %c0_0, %c0_1, %c0_2] : memref<1x4x16x16xf32, #tpu.memory_space<vmem>>, vector<1x4x16x16xf32>
    %1 = vector.shape_cast %0 : vector<1x4x16x16xf32> to vector<4x16x16xf32>
    %2 = vector.shape_cast %1 : vector<4x16x16xf32> to vector<64x16xf32>
    %c0_3 = arith.constant 0 : index
    %c0_4 = arith.constant 0 : index
    %3 = vector.load %arg2[%c0_3, %c0_4] : memref<16x128xf32, #tpu.memory_space<vmem>>, vector<16x128xf32>
    %cst = arith.constant dense<0.000000e+00> : vector<64x128xf32>
    %4 = tpu.matmul %2, %3, %cst {dimension_numbers = #tpu.dot_dimension_numbers<[1], [0], [0], [1], [0, 0, 1, 1], [], []>} : vector<64x16xf32>, vector<16x128xf32>, vector<64x128xf32> -> vector<64x128xf32>
    %5 = vector.shape_cast %4 : vector<64x128xf32> to vector<4x16x128xf32>
    %6 = vector.extract_strided_slice %5 {offsets = [0, 0, 0], sizes = [4, 1, 128], strides = [1, 1, 1]} : vector<4x16x128xf32> to vector<4x1x128xf32>
    %7 = vector.shape_cast %6 : vector<4x1x128xf32> to vector<4x128xf32>
    %c0_5 = arith.constant 0 : index
    %c0_6 = arith.constant 0 : index
    %8 = vector.load %arg6[%c0_5, %c0_6] : memref<4x2176xf32, #tpu.memory_space<vmem>>, vector<4x128xf32>
    tpu.vector_store %arg6[%c0_5, %c0_6], %7 {strides = array<i32>} : memref<4x2176xf32, #tpu.memory_space<vmem>>, vector<4x128xf32>,
    %9 = vector.extract_strided_slice %5 {offsets = [0, 1, 0], sizes = [4, 1, 128], strides = [1, 1, 1]} : vector<4x16x128xf32> to vector<4x1x128xf32>
    %10 = vector.shape_cast %9 : vector<4x1x128xf32> to vector<4x128xf32>
    %c0_7 = arith.constant 0 : index
    %c128 = arith.constant 128 : index
    %11 = vector.load %arg6[%c0_7, %c128] : memref<4x2176xf32, #tpu.memory_space<vmem>>, vector<4x128xf32>
    tpu.vector_store %arg6[%c0_7, %c128], %10 {strides = array<i32>} : memref<4x2176xf32, #tpu.memory_space<vmem>>, vector<4x128xf32>,
    %12 = vector.extract_strided_slice %5 {offsets = [0, 2, 0], sizes = [4, 1, 128], strides = [1, 1, 1]} : vector<4x16x128xf32> to vector<4x1x128xf32>
    %13 = vector.shape_cast %12 : vector<4x1x128xf32> to vector<4x128xf32>
    %c0_8 = arith.constant 0 : index
    %c256 = arith.constant 256 : index
    %14 = vector.load %arg6[%c0_8, %c256] : memref<4x2176xf32, #tpu.memory_space<vmem>>, vector<4x128xf32>
    tpu.vector_store %arg6[%c0_8, %c256], %13 {strides = array<i32>} : memref<4x2176xf32, #tpu.memory_space<vmem>>, vector<4x128xf32>,
    %15 = vector.extract_strided_slice %5 {offsets = [0, 3, 0], sizes = [4, 1, 128], strides = [1, 1, 1]} : vector<4x16x128xf32> to vector<4x1x128xf32>
    %16 = vector.shape_cast %15 : vector<4x1x128xf32> to vector<4x128xf32>
    %c0_9 = arith.constant 0 : index
    %c384 = arith.constant 384 : index
    %17 = vector.load %arg6[%c0_9, %c384] : memref<4x2176xf32, #tpu.memory_space<vmem>>, vector<4x128xf32>
    tpu.vector_store %arg6[%c0_9, %c384], %16 {strides = array<i32>} : memref<4x2176xf32, #tpu.memory_space<vmem>>, vector<4x128xf32>,
    %18 = vector.extract_strided_slice %5 {offsets = [0, 4, 0], sizes = [4, 1, 128], strides = [1, 1, 1]} : vector<4x16x128xf32> to vector<4x1x128xf32>
    %19 = vector.shape_cast %18 : vector<4x1x128xf32> to vector<4x128xf32>
    %c0_10 = arith.constant 0 : index
    %c512 = arith.constant 512 : index
    %20 = vector.load %arg6[%c0_10, %c512] : memref<4x2176xf32, #tpu.memory_space<vmem>>, vector<4x128xf32>
    tpu.vector_store %arg6[%c0_10, %c512], %19 {strides = array<i32>} : memref<4x2176xf32, #tpu.memory_space<vmem>>, vector<4x128xf32>,
    %21 = vector.extract_strided_slice %5 {offsets = [0, 5, 0], sizes = [4, 1, 128], strides = [1, 1, 1]} : vector<4x16x128xf32> to vector<4x1x128xf32>
    %22 = vector.shape_cast %21 : vector<4x1x128xf32> to vector<4x128xf32>
    %c0_11 = arith.constant 0 : index
    %c640 = arith.constant 640 : index
    %23 = vector.load %arg6[%c0_11, %c640] : memref<4x2176xf32, #tpu.memory_space<vmem>>, vector<4x128xf32>
    tpu.vector_store %arg6[%c0_11, %c640], %22 {strides = array<i32>} : memref<4x2176xf32, #tpu.memory_space<vmem>>, vector<4x128xf32>,
    %24 = vector.extract_strided_slice %5 {offsets = [0, 6, 0], sizes = [4, 1, 128], strides = [1, 1, 1]} : vector<4x16x128xf32> to vector<4x1x128xf32>
    %25 = vector.shape_cast %24 : vector<4x1x128xf32> to vector<4x128xf32>
    %c0_12 = arith.constant 0 : index
    %c768 = arith.constant 768 : index
    %26 = vector.load %arg6[%c0_12, %c768] : memref<4x2176xf32, #tpu.memory_space<vmem>>, vector<4x128xf32>
    tpu.vector_store %arg6[%c0_12, %c768], %25 {strides = array<i32>} : memref<4x2176xf32, #tpu.memory_space<vmem>>, vector<4x128xf32>,
    %27 = vector.extract_strided_slice %5 {offsets = [0, 7, 0], sizes = [4, 1, 128], strides = [1, 1, 1]} : vector<4x16x128xf32> to vector<4x1x128xf32>
    %28 = vector.shape_cast %27 : vector<4x1x128xf32> to vector<4x128xf32>
    %c0_13 = arith.constant 0 : index
    %c896 = arith.constant 896 : index
    %29 = vector.load %arg6[%c0_13, %c896] : memref<4x2176xf32, #tpu.memory_space<vmem>>, vector<4x128xf32>
    tpu.vector_store %arg6[%c0_13, %c896], %28 {strides = array<i32>} : memref<4x2176xf32, #tpu.memory_space<vmem>>, vector<4x128xf32>,
    %30 = vector.extract_strided_slice %5 {offsets = [0, 8, 0], sizes = [4, 1, 128], strides = [1, 1, 1]} : vector<4x16x128xf32> to vector<4x1x128xf32>
    %31 = vector.shape_cast %30 : vector<4x1x128xf32> to vector<4x128xf32>
    %c0_14 = arith.constant 0 : index
    %c1024 = arith.constant 1024 : index
    %32 = vector.load %arg6[%c0_14, %c1024] : memref<4x2176xf32, #tpu.memory_space<vmem>>, vector<4x128xf32>
    tpu.vector_store %arg6[%c0_14, %c1024], %31 {strides = array<i32>} : memref<4x2176xf32, #tpu.memory_space<vmem>>, vector<4x128xf32>,
    %33 = vector.extract_strided_slice %5 {offsets = [0, 9, 0], sizes = [4, 1, 128], strides = [1, 1, 1]} : vector<4x16x128xf32> to vector<4x1x128xf32>
    %34 = vector.shape_cast %33 : vector<4x1x128xf32> to vector<4x128xf32>
    %c0_15 = arith.constant 0 : index
    %c1152 = arith.constant 1152 : index
    %35 = vector.load %arg6[%c0_15, %c1152] : memref<4x2176xf32, #tpu.memory_space<vmem>>, vector<4x128xf32>
    tpu.vector_store %arg6[%c0_15, %c1152], %34 {strides = array<i32>} : memref<4x2176xf32, #tpu.memory_space<vmem>>, vector<4x128xf32>,
    %36 = vector.extract_strided_slice %5 {offsets = [0, 10, 0], sizes = [4, 1, 128], strides = [1, 1, 1]} : vector<4x16x128xf32> to vector<4x1x128xf32>
    %37 = vector.shape_cast %36 : vector<4x1x128xf32> to vector<4x128xf32>
    %c0_16 = arith.constant 0 : index
    %c1280 = arith.constant 1280 : index
    %38 = vector.load %arg6[%c0_16, %c1280] : memref<4x2176xf32, #tpu.memory_space<vmem>>, vector<4x128xf32>
    tpu.vector_store %arg6[%c0_16, %c1280], %37 {strides = array<i32>} : memref<4x2176xf32, #tpu.memory_space<vmem>>, vector<4x128xf32>,
    %39 = vector.extract_strided_slice %5 {offsets = [0, 11, 0], sizes = [4, 1, 128], strides = [1, 1, 1]} : vector<4x16x128xf32> to vector<4x1x128xf32>
    %40 = vector.shape_cast %39 : vector<4x1x128xf32> to vector<4x128xf32>
    %c0_17 = arith.constant 0 : index
    %c1408 = arith.constant 1408 : index
    %41 = vector.load %arg6[%c0_17, %c1408] : memref<4x2176xf32, #tpu.memory_space<vmem>>, vector<4x128xf32>
    tpu.vector_store %arg6[%c0_17, %c1408], %40 {strides = array<i32>} : memref<4x2176xf32, #tpu.memory_space<vmem>>, vector<4x128xf32>,
    %42 = vector.extract_strided_slice %5 {offsets = [0, 12, 0], sizes = [4, 1, 128], strides = [1, 1, 1]} : vector<4x16x128xf32> to vector<4x1x128xf32>
    %43 = vector.shape_cast %42 : vector<4x1x128xf32> to vector<4x128xf32>
    %c0_18 = arith.constant 0 : index
    %c1536 = arith.constant 1536 : index
    %44 = vector.load %arg6[%c0_18, %c1536] : memref<4x2176xf32, #tpu.memory_space<vmem>>, vector<4x128xf32>
    tpu.vector_store %arg6[%c0_18, %c1536], %43 {strides = array<i32>} : memref<4x2176xf32, #tpu.memory_space<vmem>>, vector<4x128xf32>,
    %45 = vector.extract_strided_slice %5 {offsets = [0, 13, 0], sizes = [4, 1, 128], strides = [1, 1, 1]} : vector<4x16x128xf32> to vector<4x1x128xf32>
    %46 = vector.shape_cast %45 : vector<4x1x128xf32> to vector<4x128xf32>
    %c0_19 = arith.constant 0 : index
    %c1664 = arith.constant 1664 : index
    %47 = vector.load %arg6[%c0_19, %c1664] : memref<4x2176xf32, #tpu.memory_space<vmem>>, vector<4x128xf32>
    tpu.vector_store %arg6[%c0_19, %c1664], %46 {strides = array<i32>} : memref<4x2176xf32, #tpu.memory_space<vmem>>, vector<4x128xf32>,
    %48 = vector.extract_strided_slice %5 {offsets = [0, 14, 0], sizes = [4, 1, 128], strides = [1, 1, 1]} : vector<4x16x128xf32> to vector<4x1x128xf32>
    %49 = vector.shape_cast %48 : vector<4x1x128xf32> to vector<4x128xf32>
    %c0_20 = arith.constant 0 : index
    %c1792 = arith.constant 1792 : index
    %50 = vector.load %arg6[%c0_20, %c1792] : memref<4x2176xf32, #tpu.memory_space<vmem>>, vector<4x128xf32>
    tpu.vector_store %arg6[%c0_20, %c1792], %49 {strides = array<i32>} : memref<4x2176xf32, #tpu.memory_space<vmem>>, vector<4x128xf32>,
    %51 = vector.extract_strided_slice %5 {offsets = [0, 15, 0], sizes = [4, 1, 128], strides = [1, 1, 1]} : vector<4x16x128xf32> to vector<4x1x128xf32>
    %52 = vector.shape_cast %51 : vector<4x1x128xf32> to vector<4x128xf32>
    %c0_21 = arith.constant 0 : index
    %c1920 = arith.constant 1920 : index
    %53 = vector.load %arg6[%c0_21, %c1920] : memref<4x2176xf32, #tpu.memory_space<vmem>>, vector<4x128xf32>
    tpu.vector_store %arg6[%c0_21, %c1920], %52 {strides = array<i32>} : memref<4x2176xf32, #tpu.memory_space<vmem>>, vector<4x128xf32>,
    %cst_22 = arith.constant 0.000000e+00 : f32
    %54 = vector.broadcast %cst_22 : f32 to vector<4x128xf32>
    %c0_23 = arith.constant 0 : index
    %c2048 = arith.constant 2048 : index
    %55 = vector.load %arg6[%c0_23, %c2048] : memref<4x2176xf32, #tpu.memory_space<vmem>>, vector<4x128xf32>
    tpu.vector_store %arg6[%c0_23, %c2048], %54 {strides = array<i32>} : memref<4x2176xf32, #tpu.memory_space<vmem>>, vector<4x128xf32>,
    %c0_24 = arith.constant 0 : index
    %c0_25 = arith.constant 0 : index
    %56 = vector.load %arg6[%c0_24, %c0_25] : memref<4x2176xf32, #tpu.memory_space<vmem>>, vector<4x2048xf32>
    %c0_26 = arith.constant 0 : index
    %c0_27 = arith.constant 0 : index
    %c0_28 = arith.constant 0 : index
    %57 = vector.load %arg3[%c0_26, %c0_27, %c0_28] : memref<4x8x4xf32, #tpu.memory_space<vmem>>, vector<1x8x4xf32>
    %58 = vector.shape_cast %57 : vector<1x8x4xf32> to vector<8x4xf32>
    %cst_29 = arith.constant dense<0.000000e+00> : vector<8x2048xf32>
    %59 = tpu.matmul %58, %56, %cst_29 {dimension_numbers = #tpu.dot_dimension_numbers<[1], [0], [0], [1], [0, 0, 1, 1], [], []>} : vector<8x4xf32>, vector<4x2048xf32>, vector<8x2048xf32> -> vector<8x2048xf32>
    %c0_30 = arith.constant 0 : index
    %c1 = arith.constant 1 : index
    %60 = vector.load %arg6[%c0_30, %c1] : memref<4x2176xf32, #tpu.memory_space<vmem>>, vector<4x2048xf32>
    %c1_31 = arith.constant 1 : index
    %c0_32 = arith.constant 0 : index
    %c0_33 = arith.constant 0 : index
    %61 = vector.load %arg3[%c1_31, %c0_32, %c0_33] : memref<4x8x4xf32, #tpu.memory_space<vmem>>, vector<1x8x4xf32>
    %62 = vector.shape_cast %61 : vector<1x8x4xf32> to vector<8x4xf32>
    %cst_34 = arith.constant dense<0.000000e+00> : vector<8x2048xf32>
    %63 = tpu.matmul %62, %60, %cst_34 {dimension_numbers = #tpu.dot_dimension_numbers<[1], [0], [0], [1], [0, 0, 1, 1], [], []>} : vector<8x4xf32>, vector<4x2048xf32>, vector<8x2048xf32> -> vector<8x2048xf32>
    %64 = arith.addf %59, %63 : vector<8x2048xf32>
    %c0_35 = arith.constant 0 : index
    %c2 = arith.constant 2 : index
    %65 = vector.load %arg6[%c0_35, %c2] : memref<4x2176xf32, #tpu.memory_space<vmem>>, vector<4x2048xf32>
    %c2_36 = arith.constant 2 : index
    %c0_37 = arith.constant 0 : index
    %c0_38 = arith.constant 0 : index
    %66 = vector.load %arg3[%c2_36, %c0_37, %c0_38] : memref<4x8x4xf32, #tpu.memory_space<vmem>>, vector<1x8x4xf32>
    %67 = vector.shape_cast %66 : vector<1x8x4xf32> to vector<8x4xf32>
    %cst_39 = arith.constant dense<0.000000e+00> : vector<8x2048xf32>
    %68 = tpu.matmul %67, %65, %cst_39 {dimension_numbers = #tpu.dot_dimension_numbers<[1], [0], [0], [1], [0, 0, 1, 1], [], []>} : vector<8x4xf32>, vector<4x2048xf32>, vector<8x2048xf32> -> vector<8x2048xf32>
    %69 = arith.addf %64, %68 : vector<8x2048xf32>
    %c0_40 = arith.constant 0 : index
    %c3 = arith.constant 3 : index
    %70 = vector.load %arg6[%c0_40, %c3] : memref<4x2176xf32, #tpu.memory_space<vmem>>, vector<4x2048xf32>
    %c3_41 = arith.constant 3 : index
    %c0_42 = arith.constant 0 : index
    %c0_43 = arith.constant 0 : index
    %71 = vector.load %arg3[%c3_41, %c0_42, %c0_43] : memref<4x8x4xf32, #tpu.memory_space<vmem>>, vector<1x8x4xf32>
    %72 = vector.shape_cast %71 : vector<1x8x4xf32> to vector<8x4xf32>
    %cst_44 = arith.constant dense<0.000000e+00> : vector<8x2048xf32>
    %73 = tpu.matmul %72, %70, %cst_44 {dimension_numbers = #tpu.dot_dimension_numbers<[1], [0], [0], [1], [0, 0, 1, 1], [], []>} : vector<8x4xf32>, vector<4x2048xf32>, vector<8x2048xf32> -> vector<8x2048xf32>
    %74 = arith.addf %69, %73 : vector<8x2048xf32>
    %c0_45 = arith.constant 0 : index
    %c0_46 = arith.constant 0 : index
    %75 = vector.load %arg4[%c0_45, %c0_46] : memref<8x1xf32, #tpu.memory_space<vmem>>, vector<8x1xf32>
    %76 = vector.broadcast %75 : vector<8x1xf32> to vector<8x2048xf32>
    %77 = arith.addf %74, %76 : vector<8x2048xf32>
    %cst_47 = arith.constant 0.000000e+00 : f32
    %78 = vector.broadcast %cst_47 : f32 to vector<8x2048xf32>
    %79 = arith.maximumf %77, %78 : vector<8x2048xf32>
    %80 = vector.extract_strided_slice %79 {offsets = [0, 0], sizes = [8, 32], strides = [1, 1]} : vector<8x2048xf32> to vector<8x32xf32>
    %c0_48 = arith.constant 0 : index
    %c0_49 = arith.constant 0 : index
    %c0_50 = arith.constant 0 : index
    %c0_51 = arith.constant 0 : index
    %81 = vector.load %arg5[%c0_48, %c0_49, %c0_50, %c0_51] : memref<1x8x16x32xf32, #tpu.memory_space<vmem>>, vector<1x8x1x32xf32>
    %82 = vector.shape_cast %81 : vector<1x8x1x32xf32> to vector<8x32xf32>
    %83 = vector.shape_cast %80 : vector<8x32xf32> to vector<1x8x1x32xf32>
    tpu.vector_store %arg5[%c0_48, %c0_49, %c0_50, %c0_51], %83 {strides = array<i32>} : memref<1x8x16x32xf32, #tpu.memory_space<vmem>>, vector<1x8x1x32xf32>,
    %84 = vector.extract_strided_slice %79 {offsets = [0, 128], sizes = [8, 32], strides = [1, 1]} : vector<8x2048xf32> to vector<8x32xf32>
    %c0_52 = arith.constant 0 : index
    %c0_53 = arith.constant 0 : index
    %c1_54 = arith.constant 1 : index
    %c0_55 = arith.constant 0 : index
    %85 = vector.load %arg5[%c0_52, %c0_53, %c1_54, %c0_55] : memref<1x8x16x32xf32, #tpu.memory_space<vmem>>, vector<1x8x1x32xf32>
    %86 = vector.shape_cast %85 : vector<1x8x1x32xf32> to vector<8x32xf32>
    %87 = vector.shape_cast %84 : vector<8x32xf32> to vector<1x8x1x32xf32>
    tpu.vector_store %arg5[%c0_52, %c0_53, %c1_54, %c0_55], %87 {strides = array<i32>} : memref<1x8x16x32xf32, #tpu.memory_space<vmem>>, vector<1x8x1x32xf32>,
    %88 = vector.extract_strided_slice %79 {offsets = [0, 256], sizes = [8, 32], strides = [1, 1]} : vector<8x2048xf32> to vector<8x32xf32>
    %c0_56 = arith.constant 0 : index
    %c0_57 = arith.constant 0 : index
    %c2_58 = arith.constant 2 : index
    %c0_59 = arith.constant 0 : index
    %89 = vector.load %arg5[%c0_56, %c0_57, %c2_58, %c0_59] : memref<1x8x16x32xf32, #tpu.memory_space<vmem>>, vector<1x8x1x32xf32>
    %90 = vector.shape_cast %89 : vector<1x8x1x32xf32> to vector<8x32xf32>
    %91 = vector.shape_cast %88 : vector<8x32xf32> to vector<1x8x1x32xf32>
    tpu.vector_store %arg5[%c0_56, %c0_57, %c2_58, %c0_59], %91 {strides = array<i32>} : memref<1x8x16x32xf32, #tpu.memory_space<vmem>>, vector<1x8x1x32xf32>,
    %92 = vector.extract_strided_slice %79 {offsets = [0, 384], sizes = [8, 32], strides = [1, 1]} : vector<8x2048xf32> to vector<8x32xf32>
    %c0_60 = arith.constant 0 : index
    %c0_61 = arith.constant 0 : index
    %c3_62 = arith.constant 3 : index
    %c0_63 = arith.constant 0 : index
    %93 = vector.load %arg5[%c0_60, %c0_61, %c3_62, %c0_63] : memref<1x8x16x32xf32, #tpu.memory_space<vmem>>, vector<1x8x1x32xf32>
    %94 = vector.shape_cast %93 : vector<1x8x1x32xf32> to vector<8x32xf32>
    %95 = vector.shape_cast %92 : vector<8x32xf32> to vector<1x8x1x32xf32>
    tpu.vector_store %arg5[%c0_60, %c0_61, %c3_62, %c0_63], %95 {strides = array<i32>} : memref<1x8x16x32xf32, #tpu.memory_space<vmem>>, vector<1x8x1x32xf32>,
    %96 = vector.extract_strided_slice %79 {offsets = [0, 512], sizes = [8, 32], strides = [1, 1]} : vector<8x2048xf32> to vector<8x32xf32>
    %c0_64 = arith.constant 0 : index
    %c0_65 = arith.constant 0 : index
    %c4 = arith.constant 4 : index
    %c0_66 = arith.constant 0 : index
    %97 = vector.load %arg5[%c0_64, %c0_65, %c4, %c0_66] : memref<1x8x16x32xf32, #tpu.memory_space<vmem>>, vector<1x8x1x32xf32>
    %98 = vector.shape_cast %97 : vector<1x8x1x32xf32> to vector<8x32xf32>
    %99 = vector.shape_cast %96 : vector<8x32xf32> to vector<1x8x1x32xf32>
    tpu.vector_store %arg5[%c0_64, %c0_65, %c4, %c0_66], %99 {strides = array<i32>} : memref<1x8x16x32xf32, #tpu.memory_space<vmem>>, vector<1x8x1x32xf32>,
    %100 = vector.extract_strided_slice %79 {offsets = [0, 640], sizes = [8, 32], strides = [1, 1]} : vector<8x2048xf32> to vector<8x32xf32>
    %c0_67 = arith.constant 0 : index
    %c0_68 = arith.constant 0 : index
    %c5 = arith.constant 5 : index
    %c0_69 = arith.constant 0 : index
    %101 = vector.load %arg5[%c0_67, %c0_68, %c5, %c0_69] : memref<1x8x16x32xf32, #tpu.memory_space<vmem>>, vector<1x8x1x32xf32>
    %102 = vector.shape_cast %101 : vector<1x8x1x32xf32> to vector<8x32xf32>
    %103 = vector.shape_cast %100 : vector<8x32xf32> to vector<1x8x1x32xf32>
    tpu.vector_store %arg5[%c0_67, %c0_68, %c5, %c0_69], %103 {strides = array<i32>} : memref<1x8x16x32xf32, #tpu.memory_space<vmem>>, vector<1x8x1x32xf32>,
    %104 = vector.extract_strided_slice %79 {offsets = [0, 768], sizes = [8, 32], strides = [1, 1]} : vector<8x2048xf32> to vector<8x32xf32>
    %c0_70 = arith.constant 0 : index
    %c0_71 = arith.constant 0 : index
    %c6 = arith.constant 6 : index
    %c0_72 = arith.constant 0 : index
    %105 = vector.load %arg5[%c0_70, %c0_71, %c6, %c0_72] : memref<1x8x16x32xf32, #tpu.memory_space<vmem>>, vector<1x8x1x32xf32>
    %106 = vector.shape_cast %105 : vector<1x8x1x32xf32> to vector<8x32xf32>
    %107 = vector.shape_cast %104 : vector<8x32xf32> to vector<1x8x1x32xf32>
    tpu.vector_store %arg5[%c0_70, %c0_71, %c6, %c0_72], %107 {strides = array<i32>} : memref<1x8x16x32xf32, #tpu.memory_space<vmem>>, vector<1x8x1x32xf32>,
    %108 = vector.extract_strided_slice %79 {offsets = [0, 896], sizes = [8, 32], strides = [1, 1]} : vector<8x2048xf32> to vector<8x32xf32>
    %c0_73 = arith.constant 0 : index
    %c0_74 = arith.constant 0 : index
    %c7 = arith.constant 7 : index
    %c0_75 = arith.constant 0 : index
    %109 = vector.load %arg5[%c0_73, %c0_74, %c7, %c0_75] : memref<1x8x16x32xf32, #tpu.memory_space<vmem>>, vector<1x8x1x32xf32>
    %110 = vector.shape_cast %109 : vector<1x8x1x32xf32> to vector<8x32xf32>
    %111 = vector.shape_cast %108 : vector<8x32xf32> to vector<1x8x1x32xf32>
    tpu.vector_store %arg5[%c0_73, %c0_74, %c7, %c0_75], %111 {strides = array<i32>} : memref<1x8x16x32xf32, #tpu.memory_space<vmem>>, vector<1x8x1x32xf32>,
    %112 = vector.extract_strided_slice %79 {offsets = [0, 1024], sizes = [8, 32], strides = [1, 1]} : vector<8x2048xf32> to vector<8x32xf32>
    %c0_76 = arith.constant 0 : index
    %c0_77 = arith.constant 0 : index
    %c8 = arith.constant 8 : index
    %c0_78 = arith.constant 0 : index
    %113 = vector.load %arg5[%c0_76, %c0_77, %c8, %c0_78] : memref<1x8x16x32xf32, #tpu.memory_space<vmem>>, vector<1x8x1x32xf32>
    %114 = vector.shape_cast %113 : vector<1x8x1x32xf32> to vector<8x32xf32>
    %115 = vector.shape_cast %112 : vector<8x32xf32> to vector<1x8x1x32xf32>
    tpu.vector_store %arg5[%c0_76, %c0_77, %c8, %c0_78], %115 {strides = array<i32>} : memref<1x8x16x32xf32, #tpu.memory_space<vmem>>, vector<1x8x1x32xf32>,
    %116 = vector.extract_strided_slice %79 {offsets = [0, 1152], sizes = [8, 32], strides = [1, 1]} : vector<8x2048xf32> to vector<8x32xf32>
    %c0_79 = arith.constant 0 : index
    %c0_80 = arith.constant 0 : index
    %c9 = arith.constant 9 : index
    %c0_81 = arith.constant 0 : index
    %117 = vector.load %arg5[%c0_79, %c0_80, %c9, %c0_81] : memref<1x8x16x32xf32, #tpu.memory_space<vmem>>, vector<1x8x1x32xf32>
    %118 = vector.shape_cast %117 : vector<1x8x1x32xf32> to vector<8x32xf32>
    %119 = vector.shape_cast %116 : vector<8x32xf32> to vector<1x8x1x32xf32>
    tpu.vector_store %arg5[%c0_79, %c0_80, %c9, %c0_81], %119 {strides = array<i32>} : memref<1x8x16x32xf32, #tpu.memory_space<vmem>>, vector<1x8x1x32xf32>,
    %120 = vector.extract_strided_slice %79 {offsets = [0, 1280], sizes = [8, 32], strides = [1, 1]} : vector<8x2048xf32> to vector<8x32xf32>
    %c0_82 = arith.constant 0 : index
    %c0_83 = arith.constant 0 : index
    %c10 = arith.constant 10 : index
    %c0_84 = arith.constant 0 : index
    %121 = vector.load %arg5[%c0_82, %c0_83, %c10, %c0_84] : memref<1x8x16x32xf32, #tpu.memory_space<vmem>>, vector<1x8x1x32xf32>
    %122 = vector.shape_cast %121 : vector<1x8x1x32xf32> to vector<8x32xf32>
    %123 = vector.shape_cast %120 : vector<8x32xf32> to vector<1x8x1x32xf32>
    tpu.vector_store %arg5[%c0_82, %c0_83, %c10, %c0_84], %123 {strides = array<i32>} : memref<1x8x16x32xf32, #tpu.memory_space<vmem>>, vector<1x8x1x32xf32>,
    %124 = vector.extract_strided_slice %79 {offsets = [0, 1408], sizes = [8, 32], strides = [1, 1]} : vector<8x2048xf32> to vector<8x32xf32>
    %c0_85 = arith.constant 0 : index
    %c0_86 = arith.constant 0 : index
    %c11 = arith.constant 11 : index
    %c0_87 = arith.constant 0 : index
    %125 = vector.load %arg5[%c0_85, %c0_86, %c11, %c0_87] : memref<1x8x16x32xf32, #tpu.memory_space<vmem>>, vector<1x8x1x32xf32>
    %126 = vector.shape_cast %125 : vector<1x8x1x32xf32> to vector<8x32xf32>
    %127 = vector.shape_cast %124 : vector<8x32xf32> to vector<1x8x1x32xf32>
    tpu.vector_store %arg5[%c0_85, %c0_86, %c11, %c0_87], %127 {strides = array<i32>} : memref<1x8x16x32xf32, #tpu.memory_space<vmem>>, vector<1x8x1x32xf32>,
    %128 = vector.extract_strided_slice %79 {offsets = [0, 1536], sizes = [8, 32], strides = [1, 1]} : vector<8x2048xf32> to vector<8x32xf32>
    %c0_88 = arith.constant 0 : index
    %c0_89 = arith.constant 0 : index
    %c12 = arith.constant 12 : index
    %c0_90 = arith.constant 0 : index
    %129 = vector.load %arg5[%c0_88, %c0_89, %c12, %c0_90] : memref<1x8x16x32xf32, #tpu.memory_space<vmem>>, vector<1x8x1x32xf32>
    %130 = vector.shape_cast %129 : vector<1x8x1x32xf32> to vector<8x32xf32>
    %131 = vector.shape_cast %128 : vector<8x32xf32> to vector<1x8x1x32xf32>
    tpu.vector_store %arg5[%c0_88, %c0_89, %c12, %c0_90], %131 {strides = array<i32>} : memref<1x8x16x32xf32, #tpu.memory_space<vmem>>, vector<1x8x1x32xf32>,
    %132 = vector.extract_strided_slice %79 {offsets = [0, 1664], sizes = [8, 32], strides = [1, 1]} : vector<8x2048xf32> to vector<8x32xf32>
    %c0_91 = arith.constant 0 : index
    %c0_92 = arith.constant 0 : index
    %c13 = arith.constant 13 : index
    %c0_93 = arith.constant 0 : index
    %133 = vector.load %arg5[%c0_91, %c0_92, %c13, %c0_93] : memref<1x8x16x32xf32, #tpu.memory_space<vmem>>, vector<1x8x1x32xf32>
    %134 = vector.shape_cast %133 : vector<1x8x1x32xf32> to vector<8x32xf32>
    %135 = vector.shape_cast %132 : vector<8x32xf32> to vector<1x8x1x32xf32>
    tpu.vector_store %arg5[%c0_91, %c0_92, %c13, %c0_93], %135 {strides = array<i32>} : memref<1x8x16x32xf32, #tpu.memory_space<vmem>>, vector<1x8x1x32xf32>,
    %136 = vector.extract_strided_slice %79 {offsets = [0, 1792], sizes = [8, 32], strides = [1, 1]} : vector<8x2048xf32> to vector<8x32xf32>
    %c0_94 = arith.constant 0 : index
    %c0_95 = arith.constant 0 : index
    %c14 = arith.constant 14 : index
    %c0_96 = arith.constant 0 : index
    %137 = vector.load %arg5[%c0_94, %c0_95, %c14, %c0_96] : memref<1x8x16x32xf32, #tpu.memory_space<vmem>>, vector<1x8x1x32xf32>
    %138 = vector.shape_cast %137 : vector<1x8x1x32xf32> to vector<8x32xf32>
    %139 = vector.shape_cast %136 : vector<8x32xf32> to vector<1x8x1x32xf32>
    tpu.vector_store %arg5[%c0_94, %c0_95, %c14, %c0_96], %139 {strides = array<i32>} : memref<1x8x16x32xf32, #tpu.memory_space<vmem>>, vector<1x8x1x32xf32>,
    %140 = vector.extract_strided_slice %79 {offsets = [0, 1920], sizes = [8, 32], strides = [1, 1]} : vector<8x2048xf32> to vector<8x32xf32>
    %c0_97 = arith.constant 0 : index
    %c0_98 = arith.constant 0 : index
    %c15 = arith.constant 15 : index
    %c0_99 = arith.constant 0 : index
    %141 = vector.load %arg5[%c0_97, %c0_98, %c15, %c0_99] : memref<1x8x16x32xf32, #tpu.memory_space<vmem>>, vector<1x8x1x32xf32>
    %142 = vector.shape_cast %141 : vector<1x8x1x32xf32> to vector<8x32xf32>
    %143 = vector.shape_cast %140 : vector<8x32xf32> to vector<1x8x1x32xf32>
    tpu.vector_store %arg5[%c0_97, %c0_98, %c15, %c0_99], %143 {strides = array<i32>} : memref<1x8x16x32xf32, #tpu.memory_space<vmem>>, vector<1x8x1x32xf32>,
    return
  }
  func.func @transform_0(%arg0: i32) -> (i32, i32, i32, i32) {
    %c0_i32 = arith.constant 0 : i32
    %c0_i32_0 = arith.constant 0 : i32
    %c0_i32_1 = arith.constant 0 : i32
    %c0_i32_2 = arith.constant 0 : i32
    return %arg0, %c0_i32, %c0_i32_0, %c0_i32_1 : i32, i32, i32, i32
  }
  func.func @transform_1(%arg0: i32) -> (i32, i32) {
    %c0_i32 = arith.constant 0 : i32
    %c0_i32_0 = arith.constant 0 : i32
    %c0_i32_1 = arith.constant 0 : i32
    return %c0_i32, %c0_i32_0 : i32, i32
  }
  func.func @transform_2(%arg0: i32) -> (i32, i32, i32) {
    %c0_i32 = arith.constant 0 : i32
    %c0_i32_0 = arith.constant 0 : i32
    %c0_i32_1 = arith.constant 0 : i32
    %c0_i32_2 = arith.constant 0 : i32
    return %c0_i32, %c0_i32_0, %c0_i32_1 : i32, i32, i32
  }
  func.func @transform_3(%arg0: i32) -> (i32, i32) {
    %c0_i32 = arith.constant 0 : i32
    %c0_i32_0 = arith.constant 0 : i32
    %c0_i32_1 = arith.constant 0 : i32
    return %c0_i32, %c0_i32_0 : i32, i32
  }
  func.func @transform_4(%arg0: i32) -> (i32, i32, i32, i32) {
    %c0_i32 = arith.constant 0 : i32
    %c0_i32_0 = arith.constant 0 : i32
    %c0_i32_1 = arith.constant 0 : i32
    %c0_i32_2 = arith.constant 0 : i32
    return %arg0, %c0_i32, %c0_i32_0, %c0_i32_1 : i32, i32, i32, i32
  }
}

</mosaic_0001>

<llo_original>
// kernel: deconv_relu.1
$region0: #{deconv_relu.1}
  #allocation0 [shape = 'u32[]', space=smem, size = 0x4, offset = 0x4, fixed_abs, tag = 'smem constant byte address 0x4 - core index']
  #allocation1 [shape = 'u32[72,128]{1,0:T(1,128)}', space=vmem, size = 0x9000, scoped, tag = 'internal scratch']
  #allocation2 [shape = 'f32[4,2176]{1,0:T(4,128)}', space=vmem, size = 0x8800, scoped, tag = 'scratch operand']
  %s0 = inlined_call_operand.hbm [shape: f32[2,4,16,16], index: 0, kind: input, shape index: {}]
  %s1 = inlined_call_operand.vmem [shape: f32[16,128], index: 1, kind: input, shape index: {}]
  %s2 = inlined_call_operand.vmem [shape: f32[4,8,4], index: 2, kind: input, shape index: {}]
  %s3 = inlined_call_operand.vmem [shape: f32[8,1], index: 3, kind: input, shape index: {}]
  %s4 = inlined_call_operand.hbm [shape: f32[2,8,16,32], index: 4, kind: output, shape index: {}]
  %s5 = sld [smem:[#allocation0]]
  $region53: #{deconv_relu.1} parent=0
    _
  %s7 = ssub.s32 1, %s5
  %s8 = scalar_select 0, %s7, %s5
  $region1: #{deconv_relu.1} parent=0
    #allocation3 [shape = 'u8[65536]{0}', space=vmem, size = 0x10000, scoped, tag = 'input window, operand 0']
    #allocation4 [shape = 's32[2]{0}', space=sflag, size = 0x8, scoped, tag = 'scoped memory for deconv_relu.1']
    #allocation5 [shape = 's32[2]{0}', space=sflag, size = 0x8, scoped, tag = 'scoped memory for deconv_relu.1']
    #allocation6 [shape = 'u8[131072]{0}', space=vmem, size = 0x20000, scoped, tag = 'output window, operand 0']
    %9 = vsyncpa [#allocation4], 0
    %s10 = scalar_lea.sflag [#allocation4], 1
    %11 = vsyncpa %s10, 0
    %12 = vsyncpa [#allocation5], 0
    %s13 = scalar_lea.sflag [#allocation5], 1
    %14 = vsyncpa %s13, 0
    loop: start=0, step=1, limit=4
    $region2: #{deconv_relu.1} parent=1 // loop_pre_header
      _
    $region3: #{deconv_relu.1} parent=1 // loop_header
      %s16 = sphi 0, %s20
      %p17 = scmp.ge.s32.totalorder %s16, 4
      %s26 = sphi 0, %s28
      %s29 = sphi 0, %s26
      %s30 = sphi 0, %s29
      %s46 = sphi 0, %s30
      %s50 = sphi 0, %s50
      %s52 = sphi 0, %s50
      %s53 = sphi 0, %s52
      %s67 = sphi 0, %s53
      %s71 = sphi 0, %s71
      %s73 = sphi 0, %s71
      %s74 = sphi 0, %s73
      %s88 = sphi 0, %s74
      %s92 = sphi 0, %s92
      %s94 = sphi 0, %s92
      %s95 = sphi 0, %s94
      %s109 = sphi 0, %s95
      %s115 = sphi 0, %s117
      %s118 = sphi 0, %s115
      %s119 = sphi 0, %s118
      %s135 = sphi 0, %s119
    $region4: #{deconv_relu.1} parent=1 // loop_header_branch
      %19 = sbr.rel (%p17) target = $region8
    $region5: #{deconv_relu.1} parent=1 // loop_body
      %s21 = ssub.s32 %s16, 1
      %s22 = ssub.s32 %s16, 2
      %s23 = sadd.s32 %s16, 1
      %s24 = ssub.s32 %s16, %s23
      %p25 = scmp.eq.s32.totalorder %s24, 0
      %s27 = sadd.s32 %s26, 1
      %s28 = scalar_select %p25, %s26, %s27
      %p31 = pneg %p25
      %p32 = scmp.eq.s32.totalorder %s16, 1
      %p33 = por %p31, %p32
      %p34 = scmp.ne.s32.totalorder %s26, %s29
      %p35 = scmp.eq.s32.totalorder %s16, 0
      %p36 = por %p34, %p35
      %p37 = scmp.ne.s32.totalorder %s26, %s29
      %p38 = scmp.eq.s32.totalorder %s21, 1
      %p39 = por %p37, %p38
      %p40 = scmp.ne.s32.totalorder %s29, %s30
      %p41 = scmp.eq.s32.totalorder %s21, 0
      %p42 = por %p40, %p41
      %p43 = scmp.ne.s32.totalorder %s29, %s30
      %p44 = scmp.eq.s32.totalorder %s22, 1
      %p45 = por %p43, %p44
      %p47 = scmp.ne.s32.totalorder %s30, %s46
      %p48 = scmp.eq.s32.totalorder %s22, 0
      %p49 = por %p47, %p48
      %s51 = sadd.s32 %s50, 1
      %p54 = scmp.eq.s32.totalorder %s16, 1
      %p55 = scmp.ne.s32.totalorder %s50, %s52
      %p56 = scmp.eq.s32.totalorder %s16, 0
      %p57 = por %p55, %p56
      %p58 = scmp.ne.s32.totalorder %s50, %s52
      %p59 = scmp.eq.s32.totalorder %s21, 1
      %p60 = por %p58, %p59
      %p61 = scmp.ne.s32.totalorder %s52, %s53
      %p62 = scmp.eq.s32.totalorder %s21, 0
      %p63 = por %p61, %p62
      %p64 = scmp.ne.s32.totalorder %s52, %s53
      %p65 = scmp.eq.s32.totalorder %s22, 1
      %p66 = por %p64, %p65
      %p68 = scmp.ne.s32.totalorder %s53, %s67
      %p69 = scmp.eq.s32.totalorder %s22, 0
      %p70 = por %p68, %p69
      %s72 = sadd.s32 %s71, 1
      %p75 = scmp.eq.s32.totalorder %s16, 1
      %p76 = scmp.ne.s32.totalorder %s71, %s73
      %p77 = scmp.eq.s32.totalorder %s16, 0
      %p78 = por %p76, %p77
      %p79 = scmp.ne.s32.totalorder %s71, %s73
      %p80 = scmp.eq.s32.totalorder %s21, 1
      %p81 = por %p79, %p80
      %p82 = scmp.ne.s32.totalorder %s73, %s74
      %p83 = scmp.eq.s32.totalorder %s21, 0
      %p84 = por %p82, %p83
      %p85 = scmp.ne.s32.totalorder %s73, %s74
      %p86 = scmp.eq.s32.totalorder %s22, 1
      %p87 = por %p85, %p86
      %p89 = scmp.ne.s32.totalorder %s74, %s88
      %p90 = scmp.eq.s32.totalorder %s22, 0
      %p91 = por %p89, %p90
      %s93 = sadd.s32 %s92, 1
      %p96 = scmp.eq.s32.totalorder %s16, 1
      %p97 = scmp.ne.s32.totalorder %s92, %s94
      %p98 = scmp.eq.s32.totalorder %s16, 0
      %p99 = por %p97, %p98
      %p100 = scmp.ne.s32.totalorder %s92, %s94
      %p101 = scmp.eq.s32.totalorder %s21, 1
      %p102 = por %p100, %p101
      %p103 = scmp.ne.s32.totalorder %s94, %s95
      %p104 = scmp.eq.s32.totalorder %s21, 0
      %p105 = por %p103, %p104
      %p106 = scmp.ne.s32.totalorder %s94, %s95
      %p107 = scmp.eq.s32.totalorder %s22, 1
      %p108 = por %p106, %p107
      %p110 = scmp.ne.s32.totalorder %s95, %s109
      %p111 = scmp.eq.s32.totalorder %s22, 0
      %p112 = por %p110, %p111
      %s113 = ssub.s32 %s16, %s23
      %p114 = scmp.eq.s32.totalorder %s113, 0
      %s116 = sadd.s32 %s115, 1
      %s117 = scalar_select %p114, %s115, %s116
      %p120 = pneg %p114
      %p121 = scmp.eq.s32.totalorder %s16, 1
      %p122 = por %p120, %p121
      %p123 = scmp.ne.s32.totalorder %s115, %s118
      %p124 = scmp.eq.s32.totalorder %s16, 0
      %p125 = por %p123, %p124
      %p126 = scmp.ne.s32.totalorder %s115, %s118
      %p127 = scmp.eq.s32.totalorder %s21, 1
      %p128 = por %p126, %p127
      %p129 = scmp.ne.s32.totalorder %s118, %s119
      %p130 = scmp.eq.s32.totalorder %s21, 0
      %p131 = por %p129, %p130
      %p132 = scmp.ne.s32.totalorder %s118, %s119
      %p133 = scmp.eq.s32.totalorder %s22, 1
      %p134 = por %p132, %p133
      %p136 = scmp.ne.s32.totalorder %s119, %s135
      %p137 = scmp.eq.s32.totalorder %s22, 0
      %p138 = por %p136, %p137
      %p139 = scmp.le.s32.totalorder 1, %s16
      %p140 = scmp.lt.s32.totalorder %s16, 3
      %p141 = pnand %p139, %p140
      %p142 = pneg %p141
      // Predicated region
      $region9: #{deconv_relu.1} parent=5 // pred_check
        _
      $region10: #{deconv_relu.1} parent=5 // pred_check_branch
        %144 = sbr.rel (%p141) target = $region12
      $region11: #{deconv_relu.1} parent=5 // pred_region
        %s145 = ssub.s32 %s16, 1
        // Predicated region
        $region13: #{deconv_relu.1} parent=11 // pred_check
          %p146 = pneg %p63
        $region14: #{deconv_relu.1} parent=11 // pred_check_branch
          %148 = sbr.rel (%p146) target = $region16
        $region15: #{deconv_relu.1} parent=11 // pred_region
          _
        $region16: #{deconv_relu.1} parent=11 // pred_fallthru
          _
        // Predicated region
        $region17: #{deconv_relu.1} parent=11 // pred_check
          %p149 = pneg %p84
        $region18: #{deconv_relu.1} parent=11 // pred_check_branch
          %151 = sbr.rel (%p149) target = $region20
        $region19: #{deconv_relu.1} parent=11 // pred_region
          _
        $region20: #{deconv_relu.1} parent=11 // pred_fallthru
          _
        // Predicated region
        $region21: #{deconv_relu.1} parent=11 // pred_check
          %p152 = pneg %p105
        $region22: #{deconv_relu.1} parent=11 // pred_check_branch
          %154 = sbr.rel (%p152) target = $region24
        $region23: #{deconv_relu.1} parent=11 // pred_region
          _
        $region24: #{deconv_relu.1} parent=11 // pred_fallthru
          _
      $region12: #{deconv_relu.1} parent=5 // pred_fallthru
        _
      %p155 = scmp.lt.s32.totalorder %s16, 2
      // Predicated region
      $region25: #{deconv_relu.1} parent=5 // pred_check
        %p156 = pneg %p155
      $region26: #{deconv_relu.1} parent=5 // pred_check_branch
        %158 = sbr.rel (%p156) target = $region28
      $region27: #{deconv_relu.1} parent=5 // pred_region
        // Predicated region
        $region29: #{deconv_relu.1} parent=27 // pred_check
          %p159 = pneg %p36
        $region30: #{deconv_relu.1} parent=27 // pred_check_branch
          %161 = sbr.rel (%p159) target = $region32
        $region31: #{deconv_relu.1} parent=27 // pred_region
          %s162 = sand.u32 %s26, 1
          %s163 = scalar_lea.sflag [#allocation4], %s162
          %s164 = sand.u32 %s26, 1
          %s165 = smul.addr %s164, 64
          %s166 = scalar_lea.vmem [#allocation3], %s165
          %168 = vsyncadd %s163, 0
          %s169 = smul.addr %s16, 8
          %s170 = smul.addr %s169, 8
          %s171 = scalar_lea.hbm %s0, %s170
          %s172 = sshll.u32 %s171, 4
          %s173 = int_to_ptr.hbm [resolvable:$true] %s172
          %s174 = sshll.u32 %s166, 4
          %s175 = int_to_ptr.vmem [resolvable:$true] %s174
          %180 = dma.hbm_to_vmem [thread:$0]  %s173, 1024, %s175, %s163, 128, 128, 8
        $region32: #{deconv_relu.1} parent=27 // pred_fallthru
          _
      $region28: #{deconv_relu.1} parent=5 // pred_fallthru
        _
      %p181 = scmp.le.s32.totalorder 1, %s16
      %p182 = scmp.lt.s32.totalorder %s16, 3
      %p183 = pnand %p181, %p182
      %p184 = pneg %p183
      // Predicated region
      $region33: #{deconv_relu.1} parent=5 // pred_check
        _
      $region34: #{deconv_relu.1} parent=5 // pred_check_branch
        %186 = sbr.rel (%p183) target = $region36
      $region35: #{deconv_relu.1} parent=5 // pred_region
        %s187 = ssub.s32 %s16, 1
        %s188 = sand.u32 %s29, 1
        %s189 = scalar_lea.sflag [#allocation4], %s188
        %s190 = sand.u32 %s29, 1
        %s191 = smul.addr %s190, 64
        %s192 = scalar_lea.vmem [#allocation3], %s191
        // Predicated region
        $region37: #{deconv_relu.1} parent=35 // pred_check
          %p193 = pneg %p42
        $region38: #{deconv_relu.1} parent=35 // pred_check_branch
          %195 = sbr.rel (%p193) target = $region40
        $region39: #{deconv_relu.1} parent=35 // pred_region
          %197 = dma.done %s189, 1024
        $region40: #{deconv_relu.1} parent=35 // pred_fallthru
          _
        %s198 = sand.u32 %s29, 1
        %s199 = scalar_lea.sflag [#allocation4], %s198
        %s200 = sand.u32 %s29, 1
        %s201 = smul.addr %s200, 64
        %s202 = scalar_lea.vmem [#allocation3], %s201
        %p203 = pneg %p42
        %p204 = pneg %p39
        %p205 = pneg %p63
        %p206 = pneg %p60
        %p207 = pneg %p84
        %p208 = pneg %p81
        %p209 = pneg %p105
        %p210 = pneg %p102
        %p211 = pneg %p131
        %p212 = pneg %p128
        %s213 = sand.u32 %s118, 1
        %s214 = scalar_lea.sflag [#allocation5], %s213
        %s215 = sand.u32 %s118, 1
        %s216 = smul.addr %s215, 128
        %s217 = scalar_lea.vmem [#allocation6], %s216
        %v218 = vld [vmem:[%s192] sm:$0xff]
        %v219 = vld [vmem:[%s192 + $0x8] sm:$0xff]
        %v220 = vld [vmem:[%s192 + $0x10] sm:$0xff]
        %v221 = vld [vmem:[%s192 + $0x18] sm:$0xff]
        %v222 = vld [vmem:[%s192 + $0x20] sm:$0xff]
        %v223 = vld [vmem:[%s192 + $0x28] sm:$0xff]
        %v224 = vld [vmem:[%s192 + $0x30] sm:$0xff]
        %v225 = vld [vmem:[%s192 + $0x38] sm:$0xff]
        %v226 = vld [vmem:[%s1] sm:$0xff]
        %v227 = vld [vmem:[%s1 + $0x8] sm:$0xff]
        %vm228 = vcmask 130048
        %v230 = vsel %vm228, %v218, 0
        %v233 = vsel %vm228, %v219, 0
        %v236 = vsel %vm228, %v220, 0
        %v239 = vsel %vm228, %v221, 0
        %v242 = vsel %vm228, %v222, 0
        %v245 = vsel %vm228, %v223, 0
        %v248 = vsel %vm228, %v224, 0
        %v251 = vsel %vm228, %v225, 0
        %253 = vmatpush.msra.mxu0 0.0
        %254 = vmatpush.msra.mxu0 0.0
        %255 = vmatpush.msra.mxu0 0.0
        %256 = vmatpush.msra.mxu0 0.0
        %257 = vmatpush.msra.mxu0 0.0
        %258 = vmatpush.msra.mxu0 0.0
        %259 = vmatpush.msra.mxu0 0.0
        %260 = vmatpush.msra.mxu0 0.0
        %261 = vmatpush.msra.mxu0 0.0
        %262 = vmatpush.msra.mxu0 0.0
        %263 = vmatpush.msra.mxu0 0.0
        %264 = vmatpush.msra.mxu0 0.0
        %265 = vmatpush.msra.mxu0 0.0
        %266 = vmatpush.msra.mxu0 0.0
        %267 = vmatpush.msra.mxu0 %v227
        %268 = vmatpush.msra.mxu0 %v226
        %269 = vmatmul.f32.gmra.mxu0 %v230
        %v270 = vpop.f32.mrf.mxu0
        %v271 = vadd.f32 0.0, %v270
        %272 = vmatmul.f32.gmra.mxu0 %v233
        %v273 = vpop.f32.mrf.mxu0
        %v274 = vadd.f32 0.0, %v273
        %275 = vmatmul.f32.gmra.mxu0 %v236
        %v276 = vpop.f32.mrf.mxu0
        %v277 = vadd.f32 0.0, %v276
        %278 = vmatmul.f32.gmra.mxu0 %v239
        %v279 = vpop.f32.mrf.mxu0
        %v280 = vadd.f32 0.0, %v279
        %281 = vmatmul.f32.gmra.mxu0 %v242
        %v282 = vpop.f32.mrf.mxu0
        %v283 = vadd.f32 0.0, %v282
        %284 = vmatmul.f32.gmra.mxu0 %v245
        %v285 = vpop.f32.mrf.mxu0
        %v286 = vadd.f32 0.0, %v285
        %287 = vmatmul.f32.gmra.mxu0 %v248
        %v288 = vpop.f32.mrf.mxu0
        %v289 = vadd.f32 0.0, %v288
        %290 = vmatmul.f32.gmra.mxu0 %v251
        %v291 = vpop.f32.mrf.mxu0
        %v292 = vadd.f32 0.0, %v291
        %293 = vdwg.mxu0
        %v298 = vrot.slane %v277, 7
        %vm299 = vcmask 1041409
        %v300 = vsel %vm299, %v298, %v271
        %vm301 = vcmask 1045509
        %v302 = vsel %vm301, %v298, %v300
        %v303 = vrot.slane %v283, 6
        %vm304 = vcmask 1042434
        %v305 = vsel %vm304, %v303, %v302
        %vm306 = vcmask 1046534
        %v307 = vsel %vm306, %v303, %v305
        %v308 = vrot.slane %v289, 5
        %vm309 = vcmask 1043459
        %v310 = vsel %vm309, %v308, %v307
        %vm311 = vcmask 1047559
        %v312 = vsel %vm311, %v308, %v310
        %314 = vst [vmem:[#allocation2] sm:$0xf] %v312
        %v315 = vrot.slane %v271, 1
        %v316 = vsel %vm299, %v277, %v315
        %v317 = vsel %vm301, %v277, %v316
        %v318 = vrot.slane %v283, 7
        %v319 = vsel %vm304, %v318, %v317
        %v320 = vsel %vm306, %v318, %v319
        %v321 = vrot.slane %v289, 6
        %v322 = vsel %vm309, %v321, %v320
        %v323 = vsel %vm311, %v321, %v322
        %325 = vst [vmem:[#allocation2 + $0x4] sm:$0xf] %v323
        %v326 = vrot.slane %v271, 2
        %v327 = vrot.slane %v277, 1
        %v328 = vsel %vm299, %v327, %v326
        %v329 = vsel %vm301, %v327, %v328
        %v330 = vsel %vm304, %v283, %v329
        %v331 = vsel %vm306, %v283, %v330
        %v332 = vrot.slane %v289, 7
        %v333 = vsel %vm309, %v332, %v331
        %v334 = vsel %vm311, %v332, %v333
        %336 = vst [vmem:[#allocation2 + $0x8] sm:$0xf] %v334
        %v337 = vrot.slane %v271, 3
        %v338 = vrot.slane %v277, 2
        %v339 = vsel %vm299, %v338, %v337
        %v340 = vsel %vm301, %v338, %v339
        %v341 = vrot.slane %v283, 1
        %v342 = vsel %vm304, %v341, %v340
        %v343 = vsel %vm306, %v341, %v342
        %v344 = vsel %vm309, %v289, %v343
        %v345 = vsel %vm311, %v289, %v344
        %347 = vst [vmem:[#allocation2 + $0xc] sm:$0xf] %v345
        %348 = vst.sshfl [vmem:[#allocation1] sm:$0xff pattern:$0x75316420] %v271
        %s349 = scalar_lea.vmem [#allocation1], 1
        %v350 = vld [vmem:[%s349] ss:$2 sm:$0xff]
        %351 = vst.sshfl [vmem:[#allocation1 + $0x10] sm:$0xff pattern:$0x75316420] %v277
        %s352 = scalar_lea.vmem [#allocation1], 17
        %v353 = vld [vmem:[%s352] ss:$2 sm:$0xff]
        %354 = vst.sshfl [vmem:[#allocation1 + $0x20] sm:$0xff pattern:$0x75316420] %v283
        %s355 = scalar_lea.vmem [#allocation1], 33
        %v356 = vld [vmem:[%s355] ss:$2 sm:$0xff]
        %357 = vst.sshfl [vmem:[#allocation1 + $0x30] sm:$0xff pattern:$0x75316420] %v289
        %s358 = scalar_lea.vmem [#allocation1], 49
        %v359 = vld [vmem:[%s358] ss:$2 sm:$0xff]
        %v360 = vrot.slane %v353, 7
        %v361 = vsel %vm299, %v360, %v350
        %v362 = vsel %vm301, %v360, %v361
        %v363 = vrot.slane %v356, 6
        %v364 = vsel %vm304, %v363, %v362
        %v365 = vsel %vm306, %v363, %v364
        %v366 = vrot.slane %v359, 5
        %v367 = vsel %vm309, %v366, %v365
        %v368 = vsel %vm311, %v366, %v367
        %370 = vst [vmem:[#allocation2 + $0x10] sm:$0xf] %v368
        %371 = vst.sshfl [vmem:[#allocation1] sm:$0xff pattern:$0x75316420] %v271
        %s372 = scalar_lea.vmem [#allocation1], 1
        %v373 = vld [vmem:[%s372] ss:$2 sm:$0xff]
        %374 = vst.sshfl [vmem:[#allocation1 + $0x10] sm:$0xff pattern:$0x75316420] %v277
        %s375 = scalar_lea.vmem [#allocation1], 17
        %v376 = vld [vmem:[%s375] ss:$2 sm:$0xff]
        %377 = vst.sshfl [vmem:[#allocation1 + $0x20] sm:$0xff pattern:$0x75316420] %v283
        %s378 = scalar_lea.vmem [#allocation1], 33
        %v379 = vld [vmem:[%s378] ss:$2 sm:$0xff]
        %380 = vst.sshfl [vmem:[#allocation1 + $0x30] sm:$0xff pattern:$0x75316420] %v289
        %s381 = scalar_lea.vmem [#allocation1], 49
        %v382 = vld [vmem:[%s381] ss:$2 sm:$0xff]
        %v383 = vrot.slane %v373, 1
        %v384 = vsel %vm299, %v376, %v383
        %v385 = vsel %vm301, %v376, %v384
        %v386 = vrot.slane %v379, 7
        %v387 = vsel %vm304, %v386, %v385
        %v388 = vsel %vm306, %v386, %v387
        %v389 = vrot.slane %v382, 6
        %v390 = vsel %vm309, %v389, %v388
        %v391 = vsel %vm311, %v389, %v390
        %393 = vst [vmem:[#allocation2 + $0x14] sm:$0xf] %v391
        %394 = vst.sshfl [vmem:[#allocation1] sm:$0xff pattern:$0x75316420] %v271
        %s395 = scalar_lea.vmem [#allocation1], 1
        %v396 = vld [vmem:[%s395] ss:$2 sm:$0xff]
        %397 = vst.sshfl [vmem:[#allocation1 + $0x10] sm:$0xff pattern:$0x75316420] %v277
        %s398 = scalar_lea.vmem [#allocation1], 17
        %v399 = vld [vmem:[%s398] ss:$2 sm:$0xff]
        %400 = vst.sshfl [vmem:[#allocation1 + $0x20] sm:$0xff pattern:$0x75316420] %v283
        %s401 = scalar_lea.vmem [#allocation1], 33
        %v402 = vld [vmem:[%s401] ss:$2 sm:$0xff]
        %403 = vst.sshfl [vmem:[#allocation1 + $0x30] sm:$0xff pattern:$0x75316420] %v289
        %s404 = scalar_lea.vmem [#allocation1], 49
        %v405 = vld [vmem:[%s404] ss:$2 sm:$0xff]
        %v406 = vrot.slane %v396, 2
        %v407 = vrot.slane %v399, 1
        %v408 = vsel %vm299, %v407, %v406
        %v409 = vsel %vm301, %v407, %v408
        %v410 = vsel %vm304, %v402, %v409
        %v411 = vsel %vm306, %v402, %v410
        %v412 = vrot.slane %v405, 7
        %v413 = vsel %vm309, %v412, %v411
        %v414 = vsel %vm311, %v412, %v413
        %416 = vst [vmem:[#allocation2 + $0x18] sm:$0xf] %v414
        %417 = vst.sshfl [vmem:[#allocation1] sm:$0xff pattern:$0x75316420] %v271
        %s418 = scalar_lea.vmem [#allocation1], 1
        %v419 = vld [vmem:[%s418] ss:$2 sm:$0xff]
        %420 = vst.sshfl [vmem:[#allocation1 + $0x10] sm:$0xff pattern:$0x75316420] %v277
        %s421 = scalar_lea.vmem [#allocation1], 17
        %v422 = vld [vmem:[%s421] ss:$2 sm:$0xff]
        %423 = vst.sshfl [vmem:[#allocation1 + $0x20] sm:$0xff pattern:$0x75316420] %v283
        %s424 = scalar_lea.vmem [#allocation1], 33
        %v425 = vld [vmem:[%s424] ss:$2 sm:$0xff]
        %426 = vst.sshfl [vmem:[#allocation1 + $0x30] sm:$0xff pattern:$0x75316420] %v289
        %s427 = scalar_lea.vmem [#allocation1], 49
        %v428 = vld [vmem:[%s427] ss:$2 sm:$0xff]
        %v429 = vrot.slane %v419, 3
        %v430 = vrot.slane %v422, 2
        %v431 = vsel %vm299, %v430, %v429
        %v432 = vsel %vm301, %v430, %v431
        %v433 = vrot.slane %v425, 1
        %v434 = vsel %vm304, %v433, %v432
        %v435 = vsel %vm306, %v433, %v434
        %v436 = vsel %vm309, %v428, %v435
        %v437 = vsel %vm311, %v428, %v436
        %439 = vst [vmem:[#allocation2 + $0x1c] sm:$0xf] %v437
        %v444 = vrot.slane %v280, 7
        %v445 = vsel %vm299, %v444, %v274
        %v446 = vsel %vm301, %v444, %v445
        %v447 = vrot.slane %v286, 6
        %v448 = vsel %vm304, %v447, %v446
        %v449 = vsel %vm306, %v447, %v448
        %v450 = vrot.slane %v292, 5
        %v451 = vsel %vm309, %v450, %v449
        %v452 = vsel %vm311, %v450, %v451
        %454 = vst [vmem:[#allocation2 + $0x20] sm:$0xf] %v452
        %v455 = vrot.slane %v274, 1
        %v456 = vsel %vm299, %v280, %v455
        %v457 = vsel %vm301, %v280, %v456
        %v458 = vrot.slane %v286, 7
        %v459 = vsel %vm304, %v458, %v457
        %v460 = vsel %vm306, %v458, %v459
        %v461 = vrot.slane %v292, 6
        %v462 = vsel %vm309, %v461, %v460
        %v463 = vsel %vm311, %v461, %v462
        %465 = vst [vmem:[#allocation2 + $0x24] sm:$0xf] %v463
        %v466 = vrot.slane %v274, 2
        %v467 = vrot.slane %v280, 1
        %v468 = vsel %vm299, %v467, %v466
        %v469 = vsel %vm301, %v467, %v468
        %v470 = vsel %vm304, %v286, %v469
        %v471 = vsel %vm306, %v286, %v470
        %v472 = vrot.slane %v292, 7
        %v473 = vsel %vm309, %v472, %v471
        %v474 = vsel %vm311, %v472, %v473
        %476 = vst [vmem:[#allocation2 + $0x28] sm:$0xf] %v474
        %v477 = vrot.slane %v274, 3
        %v478 = vrot.slane %v280, 2
        %v479 = vsel %vm299, %v478, %v477
        %v480 = vsel %vm301, %v478, %v479
        %v481 = vrot.slane %v286, 1
        %v482 = vsel %vm304, %v481, %v480
        %v483 = vsel %vm306, %v481, %v482
        %v484 = vsel %vm309, %v292, %v483
        %v485 = vsel %vm311, %v292, %v484
        %487 = vst [vmem:[#allocation2 + $0x2c] sm:$0xf] %v485
        %488 = vst.sshfl [vmem:[#allocation1] sm:$0xff pattern:$0x75316420] %v274
        %s489 = scalar_lea.vmem [#allocation1], 1
        %v490 = vld [vmem:[%s489] ss:$2 sm:$0xff]
        %491 = vst.sshfl [vmem:[#allocation1 + $0x10] sm:$0xff pattern:$0x75316420] %v280
        %s492 = scalar_lea.vmem [#allocation1], 17
        %v493 = vld [vmem:[%s492] ss:$2 sm:$0xff]
        %494 = vst.sshfl [vmem:[#allocation1 + $0x20] sm:$0xff pattern:$0x75316420] %v286
        %s495 = scalar_lea.vmem [#allocation1], 33
        %v496 = vld [vmem:[%s495] ss:$2 sm:$0xff]
        %497 = vst.sshfl [vmem:[#allocation1 + $0x30] sm:$0xff pattern:$0x75316420] %v292
        %s498 = scalar_lea.vmem [#allocation1], 49
        %v499 = vld [vmem:[%s498] ss:$2 sm:$0xff]
        %v500 = vrot.slane %v493, 7
        %v501 = vsel %vm299, %v500, %v490
        %v502 = vsel %vm301, %v500, %v501
        %v503 = vrot.slane %v496, 6
        %v504 = vsel %vm304, %v503, %v502
        %v505 = vsel %vm306, %v503, %v504
        %v506 = vrot.slane %v499, 5
        %v507 = vsel %vm309, %v506, %v505
        %v508 = vsel %vm311, %v506, %v507
        %510 = vst [vmem:[#allocation2 + $0x30] sm:$0xf] %v508
        %511 = vst.sshfl [vmem:[#allocation1] sm:$0xff pattern:$0x75316420] %v274
        %s512 = scalar_lea.vmem [#allocation1], 1
        %v513 = vld [vmem:[%s512] ss:$2 sm:$0xff]
        %514 = vst.sshfl [vmem:[#allocation1 + $0x10] sm:$0xff pattern:$0x75316420] %v280
        %s515 = scalar_lea.vmem [#allocation1], 17
        %v516 = vld [vmem:[%s515] ss:$2 sm:$0xff]
        %517 = vst.sshfl [vmem:[#allocation1 + $0x20] sm:$0xff pattern:$0x75316420] %v286
        %s518 = scalar_lea.vmem [#allocation1], 33
        %v519 = vld [vmem:[%s518] ss:$2 sm:$0xff]
        %520 = vst.sshfl [vmem:[#allocation1 + $0x30] sm:$0xff pattern:$0x75316420] %v292
        %s521 = scalar_lea.vmem [#allocation1], 49
        %v522 = vld [vmem:[%s521] ss:$2 sm:$0xff]
        %v523 = vrot.slane %v513, 1
        %v524 = vsel %vm299, %v516, %v523
        %v525 = vsel %vm301, %v516, %v524
        %v526 = vrot.slane %v519, 7
        %v527 = vsel %vm304, %v526, %v525
        %v528 = vsel %vm306, %v526, %v527
        %v529 = vrot.slane %v522, 6
        %v530 = vsel %vm309, %v529, %v528
        %v531 = vsel %vm311, %v529, %v530
        %533 = vst [vmem:[#allocation2 + $0x34] sm:$0xf] %v531
        %534 = vst.sshfl [vmem:[#allocation1] sm:$0xff pattern:$0x75316420] %v274
        %s535 = scalar_lea.vmem [#allocation1], 1
        %v536 = vld [vmem:[%s535] ss:$2 sm:$0xff]
        %537 = vst.sshfl [vmem:[#allocation1 + $0x10] sm:$0xff pattern:$0x75316420] %v280
        %s538 = scalar_lea.vmem [#allocation1], 17
        %v539 = vld [vmem:[%s538] ss:$2 sm:$0xff]
        %540 = vst.sshfl [vmem:[#allocation1 + $0x20] sm:$0xff pattern:$0x75316420] %v286
        %s541 = scalar_lea.vmem [#allocation1], 33
        %v542 = vld [vmem:[%s541] ss:$2 sm:$0xff]
        %543 = vst.sshfl [vmem:[#allocation1 + $0x30] sm:$0xff pattern:$0x75316420] %v292
        %s544 = scalar_lea.vmem [#allocation1], 49
        %v545 = vld [vmem:[%s544] ss:$2 sm:$0xff]
        %v546 = vrot.slane %v536, 2
        %v547 = vrot.slane %v539, 1
        %v548 = vsel %vm299, %v547, %v546
        %v549 = vsel %vm301, %v547, %v548
        %v550 = vsel %vm304, %v542, %v549
        %v551 = vsel %vm306, %v542, %v550
        %v552 = vrot.slane %v545, 7
        %v553 = vsel %vm309, %v552, %v551
        %v554 = vsel %vm311, %v552, %v553
        %556 = vst [vmem:[#allocation2 + $0x38] sm:$0xf] %v554
        %557 = vst.sshfl [vmem:[#allocation1] sm:$0xff pattern:$0x75316420] %v274
        %s558 = scalar_lea.vmem [#allocation1], 1
        %v559 = vld [vmem:[%s558] ss:$2 sm:$0xff]
        %560 = vst.sshfl [vmem:[#allocation1 + $0x10] sm:$0xff pattern:$0x75316420] %v280
        %s561 = scalar_lea.vmem [#allocation1], 17
        %v562 = vld [vmem:[%s561] ss:$2 sm:$0xff]
        %563 = vst.sshfl [vmem:[#allocation1 + $0x20] sm:$0xff pattern:$0x75316420] %v286
        %s564 = scalar_lea.vmem [#allocation1], 33
        %v565 = vld [vmem:[%s564] ss:$2 sm:$0xff]
        %566 = vst.sshfl [vmem:[#allocation1 + $0x30] sm:$0xff pattern:$0x75316420] %v292
        %s567 = scalar_lea.vmem [#allocation1], 49
        %v568 = vld [vmem:[%s567] ss:$2 sm:$0xff]
        %v569 = vrot.slane %v559, 3
        %v570 = vrot.slane %v562, 2
        %v571 = vsel %vm299, %v570, %v569
        %v572 = vsel %vm301, %v570, %v571
        %v573 = vrot.slane %v565, 1
        %v574 = vsel %vm304, %v573, %v572
        %v575 = vsel %vm306, %v573, %v574
        %v576 = vsel %vm309, %v568, %v575
        %v577 = vsel %vm311, %v568, %v576
        %579 = vst [vmem:[#allocation2 + $0x3c] sm:$0xf] %v577
        %580 = vst [vmem:[#allocation2 + $0x40] sm:$0xf] 0.0
        %v581 = vld [vmem:[#allocation2] sm:$0xff]
        %v582 = vld [vmem:[#allocation2 + $0x8] sm:$0xff]
        %v583 = vld [vmem:[#allocation2 + $0x10] sm:$0xff]
        %v584 = vld [vmem:[#allocation2 + $0x18] sm:$0xff]
        %v585 = vld [vmem:[#allocation2 + $0x20] sm:$0xff]
        %v586 = vld [vmem:[#allocation2 + $0x28] sm:$0xff]
        %v587 = vld [vmem:[#allocation2 + $0x30] sm:$0xff]
        %v588 = vld [vmem:[#allocation2 + $0x38] sm:$0xff]
        %v589 = vld [vmem:[%s2] sm:$0xff]
        %v590 = vld [vmem:[#allocation2] sm:$0xff]
        %v591 = vld [vmem:[#allocation2 + $0x8] sm:$0xff]
        %v592 = vld [vmem:[#allocation2 + $0x10] sm:$0xff]
        %v593 = vld [vmem:[#allocation2 + $0x18] sm:$0xff]
        %v594 = vld [vmem:[#allocation2 + $0x20] sm:$0xff]
        %v595 = vld [vmem:[#allocation2 + $0x28] sm:$0xff]
        %v596 = vld [vmem:[#allocation2 + $0x30] sm:$0xff]
        %v597 = vld [vmem:[#allocation2 + $0x38] sm:$0xff]
        %v598 = vld [vmem:[#allocation2 + $0x40] sm:$0xf]
        %s599 = scalar_lea.vmem %s2, 8
        %v600 = vld [vmem:[%s599] sm:$0xff]
        %610 = vst [vmem:[#allocation1] ss:$2 sm:$0xff] %v590
        %s611 = scalar_lea.vmem [#allocation1], 16
        %612 = vst [vmem:[%s611] ss:$2 sm:$0xff] %v591
        %s613 = scalar_lea.vmem [#allocation1], 32
        %614 = vst [vmem:[%s613] ss:$2 sm:$0xff] %v592
        %s615 = scalar_lea.vmem [#allocation1], 48
        %616 = vst [vmem:[%s615] ss:$2 sm:$0xff] %v593
        %v617 = vld.sshfl [vmem:[#allocation1] sm:$0xff pattern:$0x75316420]
        %v618 = vld.sshfl [vmem:[#allocation1 + $0x8] sm:$0xff pattern:$0x75316420]
        %v619 = vld.sshfl [vmem:[#allocation1 + $0x10] sm:$0xff pattern:$0x75316420]
        %v620 = vld.sshfl [vmem:[#allocation1 + $0x18] sm:$0xff pattern:$0x75316420]
        %v621 = vld.sshfl [vmem:[#allocation1 + $0x20] sm:$0xff pattern:$0x75316420]
        %v622 = vld.sshfl [vmem:[#allocation1 + $0x28] sm:$0xff pattern:$0x75316420]
        %v623 = vld.sshfl [vmem:[#allocation1 + $0x30] sm:$0xff pattern:$0x75316420]
        %v624 = vld.sshfl [vmem:[#allocation1 + $0x38] sm:$0xff pattern:$0x75316420]
        %625 = vst [vmem:[#allocation1] ss:$2 sm:$0xff] %v594
        %626 = vst [vmem:[%s611] ss:$2 sm:$0xff] %v595
        %627 = vst [vmem:[%s613] ss:$2 sm:$0xff] %v596
        %628 = vst [vmem:[%s615] ss:$2 sm:$0xff] %v597
        %v629 = vld.sshfl [vmem:[#allocation1] sm:$0xff pattern:$0x75316420]
        %v630 = vld.sshfl [vmem:[#allocation1 + $0x8] sm:$0xff pattern:$0x75316420]
        %v631 = vld.sshfl [vmem:[#allocation1 + $0x10] sm:$0xff pattern:$0x75316420]
        %v632 = vld.sshfl [vmem:[#allocation1 + $0x18] sm:$0xff pattern:$0x75316420]
        %v633 = vld.sshfl [vmem:[#allocation1 + $0x20] sm:$0xff pattern:$0x75316420]
        %v634 = vld.sshfl [vmem:[#allocation1 + $0x28] sm:$0xff pattern:$0x75316420]
        %v635 = vld.sshfl [vmem:[#allocation1 + $0x30] sm:$0xff pattern:$0x75316420]
        %v636 = vld.sshfl [vmem:[#allocation1 + $0x38] sm:$0xff pattern:$0x75316420]
        %637 = vst [vmem:[#allocation1] ss:$2 sm:$0xff] %v598
        %v638 = vld.sshfl [vmem:[#allocation1] sm:$0xff pattern:$0x75316420]
        %639 = vrot.lane.b32.xlu0 %v617, 127
        %v640 = vpop.permute.xlu0 %639
        %641 = vrot.lane.b32.xlu0 %v618, 127
        %v642 = vpop.permute.xlu0 %641
        %643 = vrot.lane.b32.xlu0 %v619, 127
        %v644 = vpop.permute.xlu0 %643
        %645 = vrot.lane.b32.xlu0 %v620, 127
        %v646 = vpop.permute.xlu0 %645
        %647 = vrot.lane.b32.xlu0 %v621, 127
        %v648 = vpop.permute.xlu0 %647
        %649 = vrot.lane.b32.xlu0 %v622, 127
        %v650 = vpop.permute.xlu0 %649
        %651 = vrot.lane.b32.xlu0 %v623, 127
        %v652 = vpop.permute.xlu0 %651
        %653 = vrot.lane.b32.xlu0 %v624, 127
        %v654 = vpop.permute.xlu0 %653
        %655 = vrot.lane.b32.xlu0 %v629, 127
        %v656 = vpop.permute.xlu0 %655
        %657 = vrot.lane.b32.xlu0 %v630, 127
        %v658 = vpop.permute.xlu0 %657
        %659 = vrot.lane.b32.xlu0 %v631, 127
        %v660 = vpop.permute.xlu0 %659
        %661 = vrot.lane.b32.xlu0 %v632, 127
        %v662 = vpop.permute.xlu0 %661
        %663 = vrot.lane.b32.xlu0 %v633, 127
        %v664 = vpop.permute.xlu0 %663
        %665 = vrot.lane.b32.xlu0 %v634, 127
        %v666 = vpop.permute.xlu0 %665
        %667 = vrot.lane.b32.xlu0 %v635, 127
        %v668 = vpop.permute.xlu0 %667
        %669 = vrot.lane.b32.xlu0 %v636, 127
        %v670 = vpop.permute.xlu0 %669
        %671 = vrot.lane.b32.xlu0 %v638, 127
        %v672 = vpop.permute.xlu0 %671
        %vm673 = vcmask 1039360
        %v674 = vsel %vm673, %v640, %v642
        %v675 = vsel %vm673, %v642, %v644
        %v676 = vsel %vm673, %v644, %v646
        %v677 = vsel %vm673, %v646, %v648
        %v678 = vsel %vm673, %v648, %v650
        %v679 = vsel %vm673, %v650, %v652
        %v680 = vsel %vm673, %v652, %v654
        %v681 = vsel %vm673, %v654, %v656
        %v682 = vsel %vm673, %v656, %v658
        %v683 = vsel %vm673, %v658, %v660
        %v684 = vsel %vm673, %v660, %v662
        %v685 = vsel %vm673, %v662, %v664
        %v686 = vsel %vm673, %v664, %v666
        %v687 = vsel %vm673, %v666, %v668
        %v688 = vsel %vm673, %v668, %v670
        %v689 = vsel %vm673, %v670, %v672
        %vm690 = vcmask 31744
        %v692 = vsel %vm690, %v600, 0
        %vm694 = vcmask 1043456
        %v695 = vsel %vm694, %v674, 0
        %v697 = vsel %vm694, %v675, 0
        %v699 = vsel %vm694, %v676, 0
        %v701 = vsel %vm694, %v677, 0
        %v703 = vsel %vm694, %v678, 0
        %v705 = vsel %vm694, %v679, 0
        %v707 = vsel %vm694, %v680, 0
        %v709 = vsel %vm694, %v681, 0
        %v711 = vsel %vm694, %v682, 0
        %v713 = vsel %vm694, %v683, 0
        %v715 = vsel %vm694, %v684, 0
        %v717 = vsel %vm694, %v685, 0
        %v719 = vsel %vm694, %v686, 0
        %v721 = vsel %vm694, %v687, 0
        %v723 = vsel %vm694, %v688, 0
        %v725 = vsel %vm694, %v689, 0
        %727 = vmatpush.msra.mxu0 0.0
        %728 = vmatpush.msra.mxu0 0.0
        %729 = vmatpush.msra.mxu0 0.0
        %730 = vmatpush.msra.mxu0 0.0
        %731 = vmatpush.msra.mxu0 0.0
        %732 = vmatpush.msra.mxu0 0.0
        %733 = vmatpush.msra.mxu0 0.0
        %734 = vmatpush.msra.mxu0 0.0
        %735 = vmatpush.msra.mxu0 0.0
        %736 = vmatpush.msra.mxu0 0.0
        %737 = vmatpush.msra.mxu0 0.0
        %738 = vmatpush.msra.mxu0 0.0
        %739 = vmatpush.msra.mxu0 0.0
        %740 = vmatpush.msra.mxu0 0.0
        %741 = vmatpush.msra.mxu0 0.0
        %742 = vmatpush.msra.mxu0 %v695
        %743 = vmatmul.f32.gmra.mxu0 %v692
        %v744 = vpop.f32.mrf.mxu0
        %v745 = vadd.f32 0.0, %v744
        %746 = vdwg.mxu0
        %747 = vmatpush.msra.mxu0 0.0
        %748 = vmatpush.msra.mxu0 0.0
        %749 = vmatpush.msra.mxu0 0.0
        %750 = vmatpush.msra.mxu0 0.0
        %751 = vmatpush.msra.mxu0 0.0
        %752 = vmatpush.msra.mxu0 0.0
        %753 = vmatpush.msra.mxu0 0.0
        %754 = vmatpush.msra.mxu0 0.0
        %755 = vmatpush.msra.mxu0 0.0
        %756 = vmatpush.msra.mxu0 0.0
        %757 = vmatpush.msra.mxu0 0.0
        %758 = vmatpush.msra.mxu0 0.0
        %759 = vmatpush.msra.mxu0 0.0
        %760 = vmatpush.msra.mxu0 0.0
        %761 = vmatpush.msra.mxu0 0.0
        %762 = vmatpush.msra.mxu0 %v697
        %763 = vmatmul.f32.gmra.mxu0 %v692
        %v764 = vpop.f32.mrf.mxu0
        %v765 = vadd.f32 0.0, %v764
        %766 = vdwg.mxu0
        %767 = vmatpush.msra.mxu0 0.0
        %768 = vmatpush.msra.mxu0 0.0
        %769 = vmatpush.msra.mxu0 0.0
        %770 = vmatpush.msra.mxu0 0.0
        %771 = vmatpush.msra.mxu0 0.0
        %772 = vmatpush.msra.mxu0 0.0
        %773 = vmatpush.msra.mxu0 0.0
        %774 = vmatpush.msra.mxu0 0.0
        %775 = vmatpush.msra.mxu0 0.0
        %776 = vmatpush.msra.mxu0 0.0
        %777 = vmatpush.msra.mxu0 0.0
        %778 = vmatpush.msra.mxu0 0.0
        %779 = vmatpush.msra.mxu0 0.0
        %780 = vmatpush.msra.mxu0 0.0
        %781 = vmatpush.msra.mxu0 0.0
        %782 = vmatpush.msra.mxu0 %v699
        %783 = vmatmul.f32.gmra.mxu0 %v692
        %v784 = vpop.f32.mrf.mxu0
        %v785 = vadd.f32 0.0, %v784
        %786 = vdwg.mxu0
        %787 = vmatpush.msra.mxu0 0.0
        %788 = vmatpush.msra.mxu0 0.0
        %789 = vmatpush.msra.mxu0 0.0
        %790 = vmatpush.msra.mxu0 0.0
        %791 = vmatpush.msra.mxu0 0.0
        %792 = vmatpush.msra.mxu0 0.0
        %793 = vmatpush.msra.mxu0 0.0
        %794 = vmatpush.msra.mxu0 0.0
        %795 = vmatpush.msra.mxu0 0.0
        %796 = vmatpush.msra.mxu0 0.0
        %797 = vmatpush.msra.mxu0 0.0
        %798 = vmatpush.msra.mxu0 0.0
        %799 = vmatpush.msra.mxu0 0.0
        %800 = vmatpush.msra.mxu0 0.0
        %801 = vmatpush.msra.mxu0 0.0
        %802 = vmatpush.msra.mxu0 %v701
        %803 = vmatmul.f32.gmra.mxu0 %v692
        %v804 = vpop.f32.mrf.mxu0
        %v805 = vadd.f32 0.0, %v804
        %806 = vdwg.mxu0
        %807 = vmatpush.msra.mxu0 0.0
        %808 = vmatpush.msra.mxu0 0.0
        %809 = vmatpush.msra.mxu0 0.0
        %810 = vmatpush.msra.mxu0 0.0
        %811 = vmatpush.msra.mxu0 0.0
        %812 = vmatpush.msra.mxu0 0.0
        %813 = vmatpush.msra.mxu0 0.0
        %814 = vmatpush.msra.mxu0 0.0
        %815 = vmatpush.msra.mxu0 0.0
        %816 = vmatpush.msra.mxu0 0.0
        %817 = vmatpush.msra.mxu0 0.0
        %818 = vmatpush.msra.mxu0 0.0
        %819 = vmatpush.msra.mxu0 0.0
        %820 = vmatpush.msra.mxu0 0.0
        %821 = vmatpush.msra.mxu0 0.0
        %822 = vmatpush.msra.mxu0 %v703
        %823 = vmatmul.f32.gmra.mxu0 %v692
        %v824 = vpop.f32.mrf.mxu0
        %v825 = vadd.f32 0.0, %v824
        %826 = vdwg.mxu0
        %827 = vmatpush.msra.mxu0 0.0
        %828 = vmatpush.msra.mxu0 0.0
        %829 = vmatpush.msra.mxu0 0.0
        %830 = vmatpush.msra.mxu0 0.0
        %831 = vmatpush.msra.mxu0 0.0
        %832 = vmatpush.msra.mxu0 0.0
        %833 = vmatpush.msra.mxu0 0.0
        %834 = vmatpush.msra.mxu0 0.0
        %835 = vmatpush.msra.mxu0 0.0
        %836 = vmatpush.msra.mxu0 0.0
        %837 = vmatpush.msra.mxu0 0.0
        %838 = vmatpush.msra.mxu0 0.0
        %839 = vmatpush.msra.mxu0 0.0
        %840 = vmatpush.msra.mxu0 0.0
        %841 = vmatpush.msra.mxu0 0.0
        %842 = vmatpush.msra.mxu0 %v705
        %843 = vmatmul.f32.gmra.mxu0 %v692
        %v844 = vpop.f32.mrf.mxu0
        %v845 = vadd.f32 0.0, %v844
        %846 = vdwg.mxu0
        %847 = vmatpush.msra.mxu0 0.0
        %848 = vmatpush.msra.mxu0 0.0
        %849 = vmatpush.msra.mxu0 0.0
        %850 = vmatpush.msra.mxu0 0.0
        %851 = vmatpush.msra.mxu0 0.0
        %852 = vmatpush.msra.mxu0 0.0
        %853 = vmatpush.msra.mxu0 0.0
        %854 = vmatpush.msra.mxu0 0.0
        %855 = vmatpush.msra.mxu0 0.0
        %856 = vmatpush.msra.mxu0 0.0
        %857 = vmatpush.msra.mxu0 0.0
        %858 = vmatpush.msra.mxu0 0.0
        %859 = vmatpush.msra.mxu0 0.0
        %860 = vmatpush.msra.mxu0 0.0
        %861 = vmatpush.msra.mxu0 0.0
        %862 = vmatpush.msra.mxu0 %v707
        %863 = vmatmul.f32.gmra.mxu0 %v692
        %v864 = vpop.f32.mrf.mxu0
        %v865 = vadd.f32 0.0, %v864
        %866 = vdwg.mxu0
        %867 = vmatpush.msra.mxu0 0.0
        %868 = vmatpush.msra.mxu0 0.0
        %869 = vmatpush.msra.mxu0 0.0
        %870 = vmatpush.msra.mxu0 0.0
        %871 = vmatpush.msra.mxu0 0.0
        %872 = vmatpush.msra.mxu0 0.0
        %873 = vmatpush.msra.mxu0 0.0
        %874 = vmatpush.msra.mxu0 0.0
        %875 = vmatpush.msra.mxu0 0.0
        %876 = vmatpush.msra.mxu0 0.0
        %877 = vmatpush.msra.mxu0 0.0
        %878 = vmatpush.msra.mxu0 0.0
        %879 = vmatpush.msra.mxu0 0.0
        %880 = vmatpush.msra.mxu0 0.0
        %881 = vmatpush.msra.mxu0 0.0
        %882 = vmatpush.msra.mxu0 %v709
        %883 = vmatmul.f32.gmra.mxu0 %v692
        %v884 = vpop.f32.mrf.mxu0
        %v885 = vadd.f32 0.0, %v884
        %886 = vdwg.mxu0
        %887 = vmatpush.msra.mxu0 0.0
        %888 = vmatpush.msra.mxu0 0.0
        %889 = vmatpush.msra.mxu0 0.0
        %890 = vmatpush.msra.mxu0 0.0
        %891 = vmatpush.msra.mxu0 0.0
        %892 = vmatpush.msra.mxu0 0.0
        %893 = vmatpush.msra.mxu0 0.0
        %894 = vmatpush.msra.mxu0 0.0
        %895 = vmatpush.msra.mxu0 0.0
        %896 = vmatpush.msra.mxu0 0.0
        %897 = vmatpush.msra.mxu0 0.0
        %898 = vmatpush.msra.mxu0 0.0
        %899 = vmatpush.msra.mxu0 0.0
        %900 = vmatpush.msra.mxu0 0.0
        %901 = vmatpush.msra.mxu0 0.0
        %902 = vmatpush.msra.mxu0 %v711
        %903 = vmatmul.f32.gmra.mxu0 %v692
        %v904 = vpop.f32.mrf.mxu0
        %v905 = vadd.f32 0.0, %v904
        %906 = vdwg.mxu0
        %907 = vmatpush.msra.mxu0 0.0
        %908 = vmatpush.msra.mxu0 0.0
        %909 = vmatpush.msra.mxu0 0.0
        %910 = vmatpush.msra.mxu0 0.0
        %911 = vmatpush.msra.mxu0 0.0
        %912 = vmatpush.msra.mxu0 0.0
        %913 = vmatpush.msra.mxu0 0.0
        %914 = vmatpush.msra.mxu0 0.0
        %915 = vmatpush.msra.mxu0 0.0
        %916 = vmatpush.msra.mxu0 0.0
        %917 = vmatpush.msra.mxu0 0.0
        %918 = vmatpush.msra.mxu0 0.0
        %919 = vmatpush.msra.mxu0 0.0
        %920 = vmatpush.msra.mxu0 0.0
        %921 = vmatpush.msra.mxu0 0.0
        %922 = vmatpush.msra.mxu0 %v713
        %923 = vmatmul.f32.gmra.mxu0 %v692
        %v924 = vpop.f32.mrf.mxu0
        %v925 = vadd.f32 0.0, %v924
        %926 = vdwg.mxu0
        %927 = vmatpush.msra.mxu0 0.0
        %928 = vmatpush.msra.mxu0 0.0
        %929 = vmatpush.msra.mxu0 0.0
        %930 = vmatpush.msra.mxu0 0.0
        %931 = vmatpush.msra.mxu0 0.0
        %932 = vmatpush.msra.mxu0 0.0
        %933 = vmatpush.msra.mxu0 0.0
        %934 = vmatpush.msra.mxu0 0.0
        %935 = vmatpush.msra.mxu0 0.0
        %936 = vmatpush.msra.mxu0 0.0
        %937 = vmatpush.msra.mxu0 0.0
        %938 = vmatpush.msra.mxu0 0.0
        %939 = vmatpush.msra.mxu0 0.0
        %940 = vmatpush.msra.mxu0 0.0
        %941 = vmatpush.msra.mxu0 0.0
        %942 = vmatpush.msra.mxu0 %v715
        %943 = vmatmul.f32.gmra.mxu0 %v692
        %v944 = vpop.f32.mrf.mxu0
        %v945 = vadd.f32 0.0, %v944
        %946 = vdwg.mxu0
        %947 = vmatpush.msra.mxu0 0.0
        %948 = vmatpush.msra.mxu0 0.0
        %949 = vmatpush.msra.mxu0 0.0
        %950 = vmatpush.msra.mxu0 0.0
        %951 = vmatpush.msra.mxu0 0.0
        %952 = vmatpush.msra.mxu0 0.0
        %953 = vmatpush.msra.mxu0 0.0
        %954 = vmatpush.msra.mxu0 0.0
        %955 = vmatpush.msra.mxu0 0.0
        %956 = vmatpush.msra.mxu0 0.0
        %957 = vmatpush.msra.mxu0 0.0
        %958 = vmatpush.msra.mxu0 0.0
        %959 = vmatpush.msra.mxu0 0.0
        %960 = vmatpush.msra.mxu0 0.0
        %961 = vmatpush.msra.mxu0 0.0
        %962 = vmatpush.msra.mxu0 %v717
        %963 = vmatmul.f32.gmra.mxu0 %v692
        %v964 = vpop.f32.mrf.mxu0
        %v965 = vadd.f32 0.0, %v964
        %966 = vdwg.mxu0
        %967 = vmatpush.msra.mxu0 0.0
        %968 = vmatpush.msra.mxu0 0.0
        %969 = vmatpush.msra.mxu0 0.0
        %970 = vmatpush.msra.mxu0 0.0
        %971 = vmatpush.msra.mxu0 0.0
        %972 = vmatpush.msra.mxu0 0.0
        %973 = vmatpush.msra.mxu0 0.0
        %974 = vmatpush.msra.mxu0 0.0
        %975 = vmatpush.msra.mxu0 0.0
        %976 = vmatpush.msra.mxu0 0.0
        %977 = vmatpush.msra.mxu0 0.0
        %978 = vmatpush.msra.mxu0 0.0
        %979 = vmatpush.msra.mxu0 0.0
        %980 = vmatpush.msra.mxu0 0.0
        %981 = vmatpush.msra.mxu0 0.0
        %982 = vmatpush.msra.mxu0 %v719
        %983 = vmatmul.f32.gmra.mxu0 %v692
        %v984 = vpop.f32.mrf.mxu0
        %v985 = vadd.f32 0.0, %v984
        %986 = vdwg.mxu0
        %987 = vmatpush.msra.mxu0 0.0
        %988 = vmatpush.msra.mxu0 0.0
        %989 = vmatpush.msra.mxu0 0.0
        %990 = vmatpush.msra.mxu0 0.0
        %991 = vmatpush.msra.mxu0 0.0
        %992 = vmatpush.msra.mxu0 0.0
        %993 = vmatpush.msra.mxu0 0.0
        %994 = vmatpush.msra.mxu0 0.0
        %995 = vmatpush.msra.mxu0 0.0
        %996 = vmatpush.msra.mxu0 0.0
        %997 = vmatpush.msra.mxu0 0.0
        %998 = vmatpush.msra.mxu0 0.0
        %999 = vmatpush.msra.mxu0 0.0
        %1000 = vmatpush.msra.mxu0 0.0
        %1001 = vmatpush.msra.mxu0 0.0
        %1002 = vmatpush.msra.mxu0 %v721
        %1003 = vmatmul.f32.gmra.mxu0 %v692
        %v1004 = vpop.f32.mrf.mxu0
        %v1005 = vadd.f32 0.0, %v1004
        %1006 = vdwg.mxu0
        %1007 = vmatpush.msra.mxu0 0.0
        %1008 = vmatpush.msra.mxu0 0.0
        %1009 = vmatpush.msra.mxu0 0.0
        %1010 = vmatpush.msra.mxu0 0.0
        %1011 = vmatpush.msra.mxu0 0.0
        %1012 = vmatpush.msra.mxu0 0.0
        %1013 = vmatpush.msra.mxu0 0.0
        %1014 = vmatpush.msra.mxu0 0.0
        %1015 = vmatpush.msra.mxu0 0.0
        %1016 = vmatpush.msra.mxu0 0.0
        %1017 = vmatpush.msra.mxu0 0.0
        %1018 = vmatpush.msra.mxu0 0.0
        %1019 = vmatpush.msra.mxu0 0.0
        %1020 = vmatpush.msra.mxu0 0.0
        %1021 = vmatpush.msra.mxu0 0.0
        %1022 = vmatpush.msra.mxu0 %v723
        %1023 = vmatmul.f32.gmra.mxu0 %v692
        %v1024 = vpop.f32.mrf.mxu0
        %v1025 = vadd.f32 0.0, %v1024
        %1026 = vdwg.mxu0
        %1027 = vmatpush.msra.mxu0 0.0
        %1028 = vmatpush.msra.mxu0 0.0
        %1029 = vmatpush.msra.mxu0 0.0
        %1030 = vmatpush.msra.mxu0 0.0
        %1031 = vmatpush.msra.mxu0 0.0
        %1032 = vmatpush.msra.mxu0 0.0
        %1033 = vmatpush.msra.mxu0 0.0
        %1034 = vmatpush.msra.mxu0 0.0
        %1035 = vmatpush.msra.mxu0 0.0
        %1036 = vmatpush.msra.mxu0 0.0
        %1037 = vmatpush.msra.mxu0 0.0
        %1038 = vmatpush.msra.mxu0 0.0
        %1039 = vmatpush.msra.mxu0 0.0
        %1040 = vmatpush.msra.mxu0 0.0
        %1041 = vmatpush.msra.mxu0 0.0
        %1042 = vmatpush.msra.mxu0 %v725
        %1043 = vmatmul.f32.gmra.mxu0 %v692
        %v1044 = vpop.f32.mrf.mxu0
        %v1045 = vadd.f32 0.0, %v1044
        %1046 = vdwg.mxu0
        %1055 = vst [vmem:[#allocation1] ss:$2 sm:$0xff] %v581
        %s1056 = scalar_lea.vmem [#allocation1], 16
        %1057 = vst [vmem:[%s1056] ss:$2 sm:$0xff] %v582
        %s1058 = scalar_lea.vmem [#allocation1], 32
        %1059 = vst [vmem:[%s1058] ss:$2 sm:$0xff] %v583
        %s1060 = scalar_lea.vmem [#allocation1], 48
        %1061 = vst [vmem:[%s1060] ss:$2 sm:$0xff] %v584
        %v1062 = vld.sshfl [vmem:[#allocation1] sm:$0xff pattern:$0x75316420]
        %v1063 = vld.sshfl [vmem:[#allocation1 + $0x8] sm:$0xff pattern:$0x75316420]
        %v1064 = vld.sshfl [vmem:[#allocation1 + $0x10] sm:$0xff pattern:$0x75316420]
        %v1065 = vld.sshfl [vmem:[#allocation1 + $0x18] sm:$0xff pattern:$0x75316420]
        %v1066 = vld.sshfl [vmem:[#allocation1 + $0x20] sm:$0xff pattern:$0x75316420]
        %v1067 = vld.sshfl [vmem:[#allocation1 + $0x28] sm:$0xff pattern:$0x75316420]
        %v1068 = vld.sshfl [vmem:[#allocation1 + $0x30] sm:$0xff pattern:$0x75316420]
        %v1069 = vld.sshfl [vmem:[#allocation1 + $0x38] sm:$0xff pattern:$0x75316420]
        %1070 = vst [vmem:[#allocation1] ss:$2 sm:$0xff] %v585
        %1071 = vst [vmem:[%s1056] ss:$2 sm:$0xff] %v586
        %1072 = vst [vmem:[%s1058] ss:$2 sm:$0xff] %v587
        %1073 = vst [vmem:[%s1060] ss:$2 sm:$0xff] %v588
        %v1074 = vld.sshfl [vmem:[#allocation1] sm:$0xff pattern:$0x75316420]
        %v1075 = vld.sshfl [vmem:[#allocation1 + $0x8] sm:$0xff pattern:$0x75316420]
        %v1076 = vld.sshfl [vmem:[#allocation1 + $0x10] sm:$0xff pattern:$0x75316420]
        %v1077 = vld.sshfl [vmem:[#allocation1 + $0x18] sm:$0xff pattern:$0x75316420]
        %v1078 = vld.sshfl [vmem:[#allocation1 + $0x20] sm:$0xff pattern:$0x75316420]
        %v1079 = vld.sshfl [vmem:[#allocation1 + $0x28] sm:$0xff pattern:$0x75316420]
        %v1080 = vld.sshfl [vmem:[#allocation1 + $0x30] sm:$0xff pattern:$0x75316420]
        %v1081 = vld.sshfl [vmem:[#allocation1 + $0x38] sm:$0xff pattern:$0x75316420]
        %v1083 = vsel %vm690, %v589, 0
        %v1085 = vsel %vm694, %v1062, 0
        %v1087 = vsel %vm694, %v1063, 0
        %v1089 = vsel %vm694, %v1064, 0
        %v1091 = vsel %vm694, %v1065, 0
        %v1093 = vsel %vm694, %v1066, 0
        %v1095 = vsel %vm694, %v1067, 0
        %v1097 = vsel %vm694, %v1068, 0
        %v1099 = vsel %vm694, %v1069, 0
        %v1101 = vsel %vm694, %v1074, 0
        %v1103 = vsel %vm694, %v1075, 0
        %v1105 = vsel %vm694, %v1076, 0
        %v1107 = vsel %vm694, %v1077, 0
        %v1109 = vsel %vm694, %v1078, 0
        %v1111 = vsel %vm694, %v1079, 0
        %v1113 = vsel %vm694, %v1080, 0
        %v1115 = vsel %vm694, %v1081, 0
        %1117 = vmatpush.msra.mxu0 0.0
        %1118 = vmatpush.msra.mxu0 0.0
        %1119 = vmatpush.msra.mxu0 0.0
        %1120 = vmatpush.msra.mxu0 0.0
        %1121 = vmatpush.msra.mxu0 0.0
        %1122 = vmatpush.msra.mxu0 0.0
        %1123 = vmatpush.msra.mxu0 0.0
        %1124 = vmatpush.msra.mxu0 0.0
        %1125 = vmatpush.msra.mxu0 0.0
        %1126 = vmatpush.msra.mxu0 0.0
        %1127 = vmatpush.msra.mxu0 0.0
        %1128 = vmatpush.msra.mxu0 0.0
        %1129 = vmatpush.msra.mxu0 0.0
        %1130 = vmatpush.msra.mxu0 0.0
        %1131 = vmatpush.msra.mxu0 0.0
        %1132 = vmatpush.msra.mxu0 %v1085
        %1133 = vmatmul.f32.gmra.mxu0 %v1083
        %v1134 = vpop.f32.mrf.mxu0
        %v1135 = vadd.f32 %v745, %v1134
        %1136 = vdwg.mxu0
        %1137 = vmatpush.msra.mxu0 0.0
        %1138 = vmatpush.msra.mxu0 0.0
        %1139 = vmatpush.msra.mxu0 0.0
        %1140 = vmatpush.msra.mxu0 0.0
        %1141 = vmatpush.msra.mxu0 0.0
        %1142 = vmatpush.msra.mxu0 0.0
        %1143 = vmatpush.msra.mxu0 0.0
        %1144 = vmatpush.msra.mxu0 0.0
        %1145 = vmatpush.msra.mxu0 0.0
        %1146 = vmatpush.msra.mxu0 0.0
        %1147 = vmatpush.msra.mxu0 0.0
        %1148 = vmatpush.msra.mxu0 0.0
        %1149 = vmatpush.msra.mxu0 0.0
        %1150 = vmatpush.msra.mxu0 0.0
        %1151 = vmatpush.msra.mxu0 0.0
        %1152 = vmatpush.msra.mxu0 %v1087
        %1153 = vmatmul.f32.gmra.mxu0 %v1083
        %v1154 = vpop.f32.mrf.mxu0
        %v1155 = vadd.f32 %v765, %v1154
        %1156 = vdwg.mxu0
        %1157 = vmatpush.msra.mxu0 0.0
        %1158 = vmatpush.msra.mxu0 0.0
        %1159 = vmatpush.msra.mxu0 0.0
        %1160 = vmatpush.msra.mxu0 0.0
        %1161 = vmatpush.msra.mxu0 0.0
        %1162 = vmatpush.msra.mxu0 0.0
        %1163 = vmatpush.msra.mxu0 0.0
        %1164 = vmatpush.msra.mxu0 0.0
        %1165 = vmatpush.msra.mxu0 0.0
        %1166 = vmatpush.msra.mxu0 0.0
        %1167 = vmatpush.msra.mxu0 0.0
        %1168 = vmatpush.msra.mxu0 0.0
        %1169 = vmatpush.msra.mxu0 0.0
        %1170 = vmatpush.msra.mxu0 0.0
        %1171 = vmatpush.msra.mxu0 0.0
        %1172 = vmatpush.msra.mxu0 %v1089
        %1173 = vmatmul.f32.gmra.mxu0 %v1083
        %v1174 = vpop.f32.mrf.mxu0
        %v1175 = vadd.f32 %v785, %v1174
        %1176 = vdwg.mxu0
        %1177 = vmatpush.msra.mxu0 0.0
        %1178 = vmatpush.msra.mxu0 0.0
        %1179 = vmatpush.msra.mxu0 0.0
        %1180 = vmatpush.msra.mxu0 0.0
        %1181 = vmatpush.msra.mxu0 0.0
        %1182 = vmatpush.msra.mxu0 0.0
        %1183 = vmatpush.msra.mxu0 0.0
        %1184 = vmatpush.msra.mxu0 0.0
        %1185 = vmatpush.msra.mxu0 0.0
        %1186 = vmatpush.msra.mxu0 0.0
        %1187 = vmatpush.msra.mxu0 0.0
        %1188 = vmatpush.msra.mxu0 0.0
        %1189 = vmatpush.msra.mxu0 0.0
        %1190 = vmatpush.msra.mxu0 0.0
        %1191 = vmatpush.msra.mxu0 0.0
        %1192 = vmatpush.msra.mxu0 %v1091
        %1193 = vmatmul.f32.gmra.mxu0 %v1083
        %v1194 = vpop.f32.mrf.mxu0
        %v1195 = vadd.f32 %v805, %v1194
        %1196 = vdwg.mxu0
        %1197 = vmatpush.msra.mxu0 0.0
        %1198 = vmatpush.msra.mxu0 0.0
        %1199 = vmatpush.msra.mxu0 0.0
        %1200 = vmatpush.msra.mxu0 0.0
        %1201 = vmatpush.msra.mxu0 0.0
        %1202 = vmatpush.msra.mxu0 0.0
        %1203 = vmatpush.msra.mxu0 0.0
        %1204 = vmatpush.msra.mxu0 0.0
        %1205 = vmatpush.msra.mxu0 0.0
        %1206 = vmatpush.msra.mxu0 0.0
        %1207 = vmatpush.msra.mxu0 0.0
        %1208 = vmatpush.msra.mxu0 0.0
        %1209 = vmatpush.msra.mxu0 0.0
        %1210 = vmatpush.msra.mxu0 0.0
        %1211 = vmatpush.msra.mxu0 0.0
        %1212 = vmatpush.msra.mxu0 %v1093
        %1213 = vmatmul.f32.gmra.mxu0 %v1083
        %v1214 = vpop.f32.mrf.mxu0
        %v1215 = vadd.f32 %v825, %v1214
        %1216 = vdwg.mxu0
        %1217 = vmatpush.msra.mxu0 0.0
        %1218 = vmatpush.msra.mxu0 0.0
        %1219 = vmatpush.msra.mxu0 0.0
        %1220 = vmatpush.msra.mxu0 0.0
        %1221 = vmatpush.msra.mxu0 0.0
        %1222 = vmatpush.msra.mxu0 0.0
        %1223 = vmatpush.msra.mxu0 0.0
        %1224 = vmatpush.msra.mxu0 0.0
        %1225 = vmatpush.msra.mxu0 0.0
        %1226 = vmatpush.msra.mxu0 0.0
        %1227 = vmatpush.msra.mxu0 0.0
        %1228 = vmatpush.msra.mxu0 0.0
        %1229 = vmatpush.msra.mxu0 0.0
        %1230 = vmatpush.msra.mxu0 0.0
        %1231 = vmatpush.msra.mxu0 0.0
        %1232 = vmatpush.msra.mxu0 %v1095
        %1233 = vmatmul.f32.gmra.mxu0 %v1083
        %v1234 = vpop.f32.mrf.mxu0
        %v1235 = vadd.f32 %v845, %v1234
        %1236 = vdwg.mxu0
        %1237 = vmatpush.msra.mxu0 0.0
        %1238 = vmatpush.msra.mxu0 0.0
        %1239 = vmatpush.msra.mxu0 0.0
        %1240 = vmatpush.msra.mxu0 0.0
        %1241 = vmatpush.msra.mxu0 0.0
        %1242 = vmatpush.msra.mxu0 0.0
        %1243 = vmatpush.msra.mxu0 0.0
        %1244 = vmatpush.msra.mxu0 0.0
        %1245 = vmatpush.msra.mxu0 0.0
        %1246 = vmatpush.msra.mxu0 0.0
        %1247 = vmatpush.msra.mxu0 0.0
        %1248 = vmatpush.msra.mxu0 0.0
        %1249 = vmatpush.msra.mxu0 0.0
        %1250 = vmatpush.msra.mxu0 0.0
        %1251 = vmatpush.msra.mxu0 0.0
        %1252 = vmatpush.msra.mxu0 %v1097
        %1253 = vmatmul.f32.gmra.mxu0 %v1083
        %v1254 = vpop.f32.mrf.mxu0
        %v1255 = vadd.f32 %v865, %v1254
        %1256 = vdwg.mxu0
        %1257 = vmatpush.msra.mxu0 0.0
        %1258 = vmatpush.msra.mxu0 0.0
        %1259 = vmatpush.msra.mxu0 0.0
        %1260 = vmatpush.msra.mxu0 0.0
        %1261 = vmatpush.msra.mxu0 0.0
        %1262 = vmatpush.msra.mxu0 0.0
        %1263 = vmatpush.msra.mxu0 0.0
        %1264 = vmatpush.msra.mxu0 0.0
        %1265 = vmatpush.msra.mxu0 0.0
        %1266 = vmatpush.msra.mxu0 0.0
        %1267 = vmatpush.msra.mxu0 0.0
        %1268 = vmatpush.msra.mxu0 0.0
        %1269 = vmatpush.msra.mxu0 0.0
        %1270 = vmatpush.msra.mxu0 0.0
        %1271 = vmatpush.msra.mxu0 0.0
        %1272 = vmatpush.msra.mxu0 %v1099
        %1273 = vmatmul.f32.gmra.mxu0 %v1083
        %v1274 = vpop.f32.mrf.mxu0
        %v1275 = vadd.f32 %v885, %v1274
        %1276 = vdwg.mxu0
        %1277 = vmatpush.msra.mxu0 0.0
        %1278 = vmatpush.msra.mxu0 0.0
        %1279 = vmatpush.msra.mxu0 0.0
        %1280 = vmatpush.msra.mxu0 0.0
        %1281 = vmatpush.msra.mxu0 0.0
        %1282 = vmatpush.msra.mxu0 0.0
        %1283 = vmatpush.msra.mxu0 0.0
        %1284 = vmatpush.msra.mxu0 0.0
        %1285 = vmatpush.msra.mxu0 0.0
        %1286 = vmatpush.msra.mxu0 0.0
        %1287 = vmatpush.msra.mxu0 0.0
        %1288 = vmatpush.msra.mxu0 0.0
        %1289 = vmatpush.msra.mxu0 0.0
        %1290 = vmatpush.msra.mxu0 0.0
        %1291 = vmatpush.msra.mxu0 0.0
        %1292 = vmatpush.msra.mxu0 %v1101
        %1293 = vmatmul.f32.gmra.mxu0 %v1083
        %v1294 = vpop.f32.mrf.mxu0
        %v1295 = vadd.f32 %v905, %v1294
        %1296 = vdwg.mxu0
        %1297 = vmatpush.msra.mxu0 0.0
        %1298 = vmatpush.msra.mxu0 0.0
        %1299 = vmatpush.msra.mxu0 0.0
        %1300 = vmatpush.msra.mxu0 0.0
        %1301 = vmatpush.msra.mxu0 0.0
        %1302 = vmatpush.msra.mxu0 0.0
        %1303 = vmatpush.msra.mxu0 0.0
        %1304 = vmatpush.msra.mxu0 0.0
        %1305 = vmatpush.msra.mxu0 0.0
        %1306 = vmatpush.msra.mxu0 0.0
        %1307 = vmatpush.msra.mxu0 0.0
        %1308 = vmatpush.msra.mxu0 0.0
        %1309 = vmatpush.msra.mxu0 0.0
        %1310 = vmatpush.msra.mxu0 0.0
        %1311 = vmatpush.msra.mxu0 0.0
        %1312 = vmatpush.msra.mxu0 %v1103
        %1313 = vmatmul.f32.gmra.mxu0 %v1083
        %v1314 = vpop.f32.mrf.mxu0
        %v1315 = vadd.f32 %v925, %v1314
        %1316 = vdwg.mxu0
        %1317 = vmatpush.msra.mxu0 0.0
        %1318 = vmatpush.msra.mxu0 0.0
        %1319 = vmatpush.msra.mxu0 0.0
        %1320 = vmatpush.msra.mxu0 0.0
        %1321 = vmatpush.msra.mxu0 0.0
        %1322 = vmatpush.msra.mxu0 0.0
        %1323 = vmatpush.msra.mxu0 0.0
        %1324 = vmatpush.msra.mxu0 0.0
        %1325 = vmatpush.msra.mxu0 0.0
        %1326 = vmatpush.msra.mxu0 0.0
        %1327 = vmatpush.msra.mxu0 0.0
        %1328 = vmatpush.msra.mxu0 0.0
        %1329 = vmatpush.msra.mxu0 0.0
        %1330 = vmatpush.msra.mxu0 0.0
        %1331 = vmatpush.msra.mxu0 0.0
        %1332 = vmatpush.msra.mxu0 %v1105
        %1333 = vmatmul.f32.gmra.mxu0 %v1083
        %v1334 = vpop.f32.mrf.mxu0
        %v1335 = vadd.f32 %v945, %v1334
        %1336 = vdwg.mxu0
        %1337 = vmatpush.msra.mxu0 0.0
        %1338 = vmatpush.msra.mxu0 0.0
        %1339 = vmatpush.msra.mxu0 0.0
        %1340 = vmatpush.msra.mxu0 0.0
        %1341 = vmatpush.msra.mxu0 0.0
        %1342 = vmatpush.msra.mxu0 0.0
        %1343 = vmatpush.msra.mxu0 0.0
        %1344 = vmatpush.msra.mxu0 0.0
        %1345 = vmatpush.msra.mxu0 0.0
        %1346 = vmatpush.msra.mxu0 0.0
        %1347 = vmatpush.msra.mxu0 0.0
        %1348 = vmatpush.msra.mxu0 0.0
        %1349 = vmatpush.msra.mxu0 0.0
        %1350 = vmatpush.msra.mxu0 0.0
        %1351 = vmatpush.msra.mxu0 0.0
        %1352 = vmatpush.msra.mxu0 %v1107
        %1353 = vmatmul.f32.gmra.mxu0 %v1083
        %v1354 = vpop.f32.mrf.mxu0
        %v1355 = vadd.f32 %v965, %v1354
        %1356 = vdwg.mxu0
        %1357 = vmatpush.msra.mxu0 0.0
        %1358 = vmatpush.msra.mxu0 0.0
        %1359 = vmatpush.msra.mxu0 0.0
        %1360 = vmatpush.msra.mxu0 0.0
        %1361 = vmatpush.msra.mxu0 0.0
        %1362 = vmatpush.msra.mxu0 0.0
        %1363 = vmatpush.msra.mxu0 0.0
        %1364 = vmatpush.msra.mxu0 0.0
        %1365 = vmatpush.msra.mxu0 0.0
        %1366 = vmatpush.msra.mxu0 0.0
        %1367 = vmatpush.msra.mxu0 0.0
        %1368 = vmatpush.msra.mxu0 0.0
        %1369 = vmatpush.msra.mxu0 0.0
        %1370 = vmatpush.msra.mxu0 0.0
        %1371 = vmatpush.msra.mxu0 0.0
        %1372 = vmatpush.msra.mxu0 %v1109
        %1373 = vmatmul.f32.gmra.mxu0 %v1083
        %v1374 = vpop.f32.mrf.mxu0
        %v1375 = vadd.f32 %v985, %v1374
        %1376 = vdwg.mxu0
        %1377 = vmatpush.msra.mxu0 0.0
        %1378 = vmatpush.msra.mxu0 0.0
        %1379 = vmatpush.msra.mxu0 0.0
        %1380 = vmatpush.msra.mxu0 0.0
        %1381 = vmatpush.msra.mxu0 0.0
        %1382 = vmatpush.msra.mxu0 0.0
        %1383 = vmatpush.msra.mxu0 0.0
        %1384 = vmatpush.msra.mxu0 0.0
        %1385 = vmatpush.msra.mxu0 0.0
        %1386 = vmatpush.msra.mxu0 0.0
        %1387 = vmatpush.msra.mxu0 0.0
        %1388 = vmatpush.msra.mxu0 0.0
        %1389 = vmatpush.msra.mxu0 0.0
        %1390 = vmatpush.msra.mxu0 0.0
        %1391 = vmatpush.msra.mxu0 0.0
        %1392 = vmatpush.msra.mxu0 %v1111
        %1393 = vmatmul.f32.gmra.mxu0 %v1083
        %v1394 = vpop.f32.mrf.mxu0
        %v1395 = vadd.f32 %v1005, %v1394
        %1396 = vdwg.mxu0
        %1397 = vmatpush.msra.mxu0 0.0
        %1398 = vmatpush.msra.mxu0 0.0
        %1399 = vmatpush.msra.mxu0 0.0
        %1400 = vmatpush.msra.mxu0 0.0
        %1401 = vmatpush.msra.mxu0 0.0
        %1402 = vmatpush.msra.mxu0 0.0
        %1403 = vmatpush.msra.mxu0 0.0
        %1404 = vmatpush.msra.mxu0 0.0
        %1405 = vmatpush.msra.mxu0 0.0
        %1406 = vmatpush.msra.mxu0 0.0
        %1407 = vmatpush.msra.mxu0 0.0
        %1408 = vmatpush.msra.mxu0 0.0
        %1409 = vmatpush.msra.mxu0 0.0
        %1410 = vmatpush.msra.mxu0 0.0
        %1411 = vmatpush.msra.mxu0 0.0
        %1412 = vmatpush.msra.mxu0 %v1113
        %1413 = vmatmul.f32.gmra.mxu0 %v1083
        %v1414 = vpop.f32.mrf.mxu0
        %v1415 = vadd.f32 %v1025, %v1414
        %1416 = vdwg.mxu0
        %1417 = vmatpush.msra.mxu0 0.0
        %1418 = vmatpush.msra.mxu0 0.0
        %1419 = vmatpush.msra.mxu0 0.0
        %1420 = vmatpush.msra.mxu0 0.0
        %1421 = vmatpush.msra.mxu0 0.0
        %1422 = vmatpush.msra.mxu0 0.0
        %1423 = vmatpush.msra.mxu0 0.0
        %1424 = vmatpush.msra.mxu0 0.0
        %1425 = vmatpush.msra.mxu0 0.0
        %1426 = vmatpush.msra.mxu0 0.0
        %1427 = vmatpush.msra.mxu0 0.0
        %1428 = vmatpush.msra.mxu0 0.0
        %1429 = vmatpush.msra.mxu0 0.0
        %1430 = vmatpush.msra.mxu0 0.0
        %1431 = vmatpush.msra.mxu0 0.0
        %1432 = vmatpush.msra.mxu0 %v1115
        %1433 = vmatmul.f32.gmra.mxu0 %v1083
        %v1434 = vpop.f32.mrf.mxu0
        %v1435 = vadd.f32 %v1045, %v1434
        %1436 = vdwg.mxu0
        %v1437 = vld [vmem:[#allocation2] sm:$0xff]
        %v1438 = vld [vmem:[#allocation2 + $0x8] sm:$0xff]
        %v1439 = vld [vmem:[#allocation2 + $0x10] sm:$0xff]
        %v1440 = vld [vmem:[#allocation2 + $0x18] sm:$0xff]
        %v1441 = vld [vmem:[#allocation2 + $0x20] sm:$0xff]
        %v1442 = vld [vmem:[#allocation2 + $0x28] sm:$0xff]
        %v1443 = vld [vmem:[#allocation2 + $0x30] sm:$0xff]
        %v1444 = vld [vmem:[#allocation2 + $0x38] sm:$0xff]
        %v1445 = vld [vmem:[#allocation2 + $0x40] sm:$0xf]
        %s1446 = scalar_lea.vmem %s2, 16
        %v1447 = vld [vmem:[%s1446] sm:$0xff]
        %1457 = vst [vmem:[#allocation1] ss:$2 sm:$0xff] %v1437
        %s1458 = scalar_lea.vmem [#allocation1], 16
        %1459 = vst [vmem:[%s1458] ss:$2 sm:$0xff] %v1438
        %s1460 = scalar_lea.vmem [#allocation1], 32
        %1461 = vst [vmem:[%s1460] ss:$2 sm:$0xff] %v1439
        %s1462 = scalar_lea.vmem [#allocation1], 48
        %1463 = vst [vmem:[%s1462] ss:$2 sm:$0xff] %v1440
        %v1464 = vld.sshfl [vmem:[#allocation1] sm:$0xff pattern:$0x75316420]
        %v1465 = vld.sshfl [vmem:[#allocation1 + $0x8] sm:$0xff pattern:$0x75316420]
        %v1466 = vld.sshfl [vmem:[#allocation1 + $0x10] sm:$0xff pattern:$0x75316420]
        %v1467 = vld.sshfl [vmem:[#allocation1 + $0x18] sm:$0xff pattern:$0x75316420]
        %v1468 = vld.sshfl [vmem:[#allocation1 + $0x20] sm:$0xff pattern:$0x75316420]
        %v1469 = vld.sshfl [vmem:[#allocation1 + $0x28] sm:$0xff pattern:$0x75316420]
        %v1470 = vld.sshfl [vmem:[#allocation1 + $0x30] sm:$0xff pattern:$0x75316420]
        %v1471 = vld.sshfl [vmem:[#allocation1 + $0x38] sm:$0xff pattern:$0x75316420]
        %1472 = vst [vmem:[#allocation1] ss:$2 sm:$0xff] %v1441
        %1473 = vst [vmem:[%s1458] ss:$2 sm:$0xff] %v1442
        %1474 = vst [vmem:[%s1460] ss:$2 sm:$0xff] %v1443
        %1475 = vst [vmem:[%s1462] ss:$2 sm:$0xff] %v1444
        %v1476 = vld.sshfl [vmem:[#allocation1] sm:$0xff pattern:$0x75316420]
        %v1477 = vld.sshfl [vmem:[#allocation1 + $0x8] sm:$0xff pattern:$0x75316420]
        %v1478 = vld.sshfl [vmem:[#allocation1 + $0x10] sm:$0xff pattern:$0x75316420]
        %v1479 = vld.sshfl [vmem:[#allocation1 + $0x18] sm:$0xff pattern:$0x75316420]
        %v1480 = vld.sshfl [vmem:[#allocation1 + $0x20] sm:$0xff pattern:$0x75316420]
        %v1481 = vld.sshfl [vmem:[#allocation1 + $0x28] sm:$0xff pattern:$0x75316420]
        %v1482 = vld.sshfl [vmem:[#allocation1 + $0x30] sm:$0xff pattern:$0x75316420]
        %v1483 = vld.sshfl [vmem:[#allocation1 + $0x38] sm:$0xff pattern:$0x75316420]
        %1484 = vst [vmem:[#allocation1] ss:$2 sm:$0xff] %v1445
        %v1485 = vld.sshfl [vmem:[#allocation1] sm:$0xff pattern:$0x75316420]
        %1486 = vrot.lane.b32.xlu0 %v1464, 126
        %v1487 = vpop.permute.xlu0 %1486
        %1488 = vrot.lane.b32.xlu0 %v1465, 126
        %v1489 = vpop.permute.xlu0 %1488
        %1490 = vrot.lane.b32.xlu0 %v1466, 126
        %v1491 = vpop.permute.xlu0 %1490
        %1492 = vrot.lane.b32.xlu0 %v1467, 126
        %v1493 = vpop.permute.xlu0 %1492
        %1494 = vrot.lane.b32.xlu0 %v1468, 126
        %v1495 = vpop.permute.xlu0 %1494
        %1496 = vrot.lane.b32.xlu0 %v1469, 126
        %v1497 = vpop.permute.xlu0 %1496
        %1498 = vrot.lane.b32.xlu0 %v1470, 126
        %v1499 = vpop.permute.xlu0 %1498
        %1500 = vrot.lane.b32.xlu0 %v1471, 126
        %v1501 = vpop.permute.xlu0 %1500
        %1502 = vrot.lane.b32.xlu0 %v1476, 126
        %v1503 = vpop.permute.xlu0 %1502
        %1504 = vrot.lane.b32.xlu0 %v1477, 126
        %v1505 = vpop.permute.xlu0 %1504
        %1506 = vrot.lane.b32.xlu0 %v1478, 126
        %v1507 = vpop.permute.xlu0 %1506
        %1508 = vrot.lane.b32.xlu0 %v1479, 126
        %v1509 = vpop.permute.xlu0 %1508
        %1510 = vrot.lane.b32.xlu0 %v1480, 126
        %v1511 = vpop.permute.xlu0 %1510
        %1512 = vrot.lane.b32.xlu0 %v1481, 126
        %v1513 = vpop.permute.xlu0 %1512
        %1514 = vrot.lane.b32.xlu0 %v1482, 126
        %v1515 = vpop.permute.xlu0 %1514
        %1516 = vrot.lane.b32.xlu0 %v1483, 126
        %v1517 = vpop.permute.xlu0 %1516
        %1518 = vrot.lane.b32.xlu0 %v1485, 126
        %v1519 = vpop.permute.xlu0 %1518
        %vm1520 = vcmask 1031168
        %v1521 = vsel %vm1520, %v1487, %v1489
        %v1522 = vsel %vm1520, %v1489, %v1491
        %v1523 = vsel %vm1520, %v1491, %v1493
        %v1524 = vsel %vm1520, %v1493, %v1495
        %v1525 = vsel %vm1520, %v1495, %v1497
        %v1526 = vsel %vm1520, %v1497, %v1499
        %v1527 = vsel %vm1520, %v1499, %v1501
        %v1528 = vsel %vm1520, %v1501, %v1503
        %v1529 = vsel %vm1520, %v1503, %v1505
        %v1530 = vsel %vm1520, %v1505, %v1507
        %v1531 = vsel %vm1520, %v1507, %v1509
        %v1532 = vsel %vm1520, %v1509, %v1511
        %v1533 = vsel %vm1520, %v1511, %v1513
        %v1534 = vsel %vm1520, %v1513, %v1515
        %v1535 = vsel %vm1520, %v1515, %v1517
        %v1536 = vsel %vm1520, %v1517, %v1519
        %v1538 = vsel %vm690, %v1447, 0
        %v1540 = vsel %vm694, %v1521, 0
        %v1542 = vsel %vm694, %v1522, 0
        %v1544 = vsel %vm694, %v1523, 0
        %v1546 = vsel %vm694, %v1524, 0
        %v1548 = vsel %vm694, %v1525, 0
        %v1550 = vsel %vm694, %v1526, 0
        %v1552 = vsel %vm694, %v1527, 0
        %v1554 = vsel %vm694, %v1528, 0
        %v1556 = vsel %vm694, %v1529, 0
        %v1558 = vsel %vm694, %v1530, 0
        %v1560 = vsel %vm694, %v1531, 0
        %v1562 = vsel %vm694, %v1532, 0
        %v1564 = vsel %vm694, %v1533, 0
        %v1566 = vsel %vm694, %v1534, 0
        %v1568 = vsel %vm694, %v1535, 0
        %v1570 = vsel %vm694, %v1536, 0
        %1572 = vmatpush.msra.mxu0 0.0
        %1573 = vmatpush.msra.mxu0 0.0
        %1574 = vmatpush.msra.mxu0 0.0
        %1575 = vmatpush.msra.mxu0 0.0
        %1576 = vmatpush.msra.mxu0 0.0
        %1577 = vmatpush.msra.mxu0 0.0
        %1578 = vmatpush.msra.mxu0 0.0
        %1579 = vmatpush.msra.mxu0 0.0
        %1580 = vmatpush.msra.mxu0 0.0
        %1581 = vmatpush.msra.mxu0 0.0
        %1582 = vmatpush.msra.mxu0 0.0
        %1583 = vmatpush.msra.mxu0 0.0
        %1584 = vmatpush.msra.mxu0 0.0
        %1585 = vmatpush.msra.mxu0 0.0
        %1586 = vmatpush.msra.mxu0 0.0
        %1587 = vmatpush.msra.mxu0 %v1540
        %1588 = vmatmul.f32.gmra.mxu0 %v1538
        %v1589 = vpop.f32.mrf.mxu0
        %v1590 = vadd.f32 0.0, %v1589
        %1591 = vdwg.mxu0
        %1592 = vmatpush.msra.mxu0 0.0
        %1593 = vmatpush.msra.mxu0 0.0
        %1594 = vmatpush.msra.mxu0 0.0
        %1595 = vmatpush.msra.mxu0 0.0
        %1596 = vmatpush.msra.mxu0 0.0
        %1597 = vmatpush.msra.mxu0 0.0
        %1598 = vmatpush.msra.mxu0 0.0
        %1599 = vmatpush.msra.mxu0 0.0
        %1600 = vmatpush.msra.mxu0 0.0
        %1601 = vmatpush.msra.mxu0 0.0
        %1602 = vmatpush.msra.mxu0 0.0
        %1603 = vmatpush.msra.mxu0 0.0
        %1604 = vmatpush.msra.mxu0 0.0
        %1605 = vmatpush.msra.mxu0 0.0
        %1606 = vmatpush.msra.mxu0 0.0
        %1607 = vmatpush.msra.mxu0 %v1542
        %1608 = vmatmul.f32.gmra.mxu0 %v1538
        %v1609 = vpop.f32.mrf.mxu0
        %v1610 = vadd.f32 0.0, %v1609
        %1611 = vdwg.mxu0
        %1612 = vmatpush.msra.mxu0 0.0
        %1613 = vmatpush.msra.mxu0 0.0
        %1614 = vmatpush.msra.mxu0 0.0
        %1615 = vmatpush.msra.mxu0 0.0
        %1616 = vmatpush.msra.mxu0 0.0
        %1617 = vmatpush.msra.mxu0 0.0
        %1618 = vmatpush.msra.mxu0 0.0
        %1619 = vmatpush.msra.mxu0 0.0
        %1620 = vmatpush.msra.mxu0 0.0
        %1621 = vmatpush.msra.mxu0 0.0
        %1622 = vmatpush.msra.mxu0 0.0
        %1623 = vmatpush.msra.mxu0 0.0
        %1624 = vmatpush.msra.mxu0 0.0
        %1625 = vmatpush.msra.mxu0 0.0
        %1626 = vmatpush.msra.mxu0 0.0
        %1627 = vmatpush.msra.mxu0 %v1544
        %1628 = vmatmul.f32.gmra.mxu0 %v1538
        %v1629 = vpop.f32.mrf.mxu0
        %v1630 = vadd.f32 0.0, %v1629
        %1631 = vdwg.mxu0
        %1632 = vmatpush.msra.mxu0 0.0
        %1633 = vmatpush.msra.mxu0 0.0
        %1634 = vmatpush.msra.mxu0 0.0
        %1635 = vmatpush.msra.mxu0 0.0
        %1636 = vmatpush.msra.mxu0 0.0
        %1637 = vmatpush.msra.mxu0 0.0
        %1638 = vmatpush.msra.mxu0 0.0
        %1639 = vmatpush.msra.mxu0 0.0
        %1640 = vmatpush.msra.mxu0 0.0
        %1641 = vmatpush.msra.mxu0 0.0
        %1642 = vmatpush.msra.mxu0 0.0
        %1643 = vmatpush.msra.mxu0 0.0
        %1644 = vmatpush.msra.mxu0 0.0
        %1645 = vmatpush.msra.mxu0 0.0
        %1646 = vmatpush.msra.mxu0 0.0
        %1647 = vmatpush.msra.mxu0 %v1546
        %1648 = vmatmul.f32.gmra.mxu0 %v1538
        %v1649 = vpop.f32.mrf.mxu0
        %v1650 = vadd.f32 0.0, %v1649
        %1651 = vdwg.mxu0
        %1652 = vmatpush.msra.mxu0 0.0
        %1653 = vmatpush.msra.mxu0 0.0
        %1654 = vmatpush.msra.mxu0 0.0
        %1655 = vmatpush.msra.mxu0 0.0
        %1656 = vmatpush.msra.mxu0 0.0
        %1657 = vmatpush.msra.mxu0 0.0
        %1658 = vmatpush.msra.mxu0 0.0
        %1659 = vmatpush.msra.mxu0 0.0
        %1660 = vmatpush.msra.mxu0 0.0
        %1661 = vmatpush.msra.mxu0 0.0
        %1662 = vmatpush.msra.mxu0 0.0
        %1663 = vmatpush.msra.mxu0 0.0
        %1664 = vmatpush.msra.mxu0 0.0
        %1665 = vmatpush.msra.mxu0 0.0
        %1666 = vmatpush.msra.mxu0 0.0
        %1667 = vmatpush.msra.mxu0 %v1548
        %1668 = vmatmul.f32.gmra.mxu0 %v1538
        %v1669 = vpop.f32.mrf.mxu0
        %v1670 = vadd.f32 0.0, %v1669
        %1671 = vdwg.mxu0
        %1672 = vmatpush.msra.mxu0 0.0
        %1673 = vmatpush.msra.mxu0 0.0
        %1674 = vmatpush.msra.mxu0 0.0
        %1675 = vmatpush.msra.mxu0 0.0
        %1676 = vmatpush.msra.mxu0 0.0
        %1677 = vmatpush.msra.mxu0 0.0
        %1678 = vmatpush.msra.mxu0 0.0
        %1679 = vmatpush.msra.mxu0 0.0
        %1680 = vmatpush.msra.mxu0 0.0
        %1681 = vmatpush.msra.mxu0 0.0
        %1682 = vmatpush.msra.mxu0 0.0
        %1683 = vmatpush.msra.mxu0 0.0
        %1684 = vmatpush.msra.mxu0 0.0
        %1685 = vmatpush.msra.mxu0 0.0
        %1686 = vmatpush.msra.mxu0 0.0
        %1687 = vmatpush.msra.mxu0 %v1550
        %1688 = vmatmul.f32.gmra.mxu0 %v1538
        %v1689 = vpop.f32.mrf.mxu0
        %v1690 = vadd.f32 0.0, %v1689
        %1691 = vdwg.mxu0
        %1692 = vmatpush.msra.mxu0 0.0
        %1693 = vmatpush.msra.mxu0 0.0
        %1694 = vmatpush.msra.mxu0 0.0
        %1695 = vmatpush.msra.mxu0 0.0
        %1696 = vmatpush.msra.mxu0 0.0
        %1697 = vmatpush.msra.mxu0 0.0
        %1698 = vmatpush.msra.mxu0 0.0
        %1699 = vmatpush.msra.mxu0 0.0
        %1700 = vmatpush.msra.mxu0 0.0
        %1701 = vmatpush.msra.mxu0 0.0
        %1702 = vmatpush.msra.mxu0 0.0
        %1703 = vmatpush.msra.mxu0 0.0
        %1704 = vmatpush.msra.mxu0 0.0
        %1705 = vmatpush.msra.mxu0 0.0
        %1706 = vmatpush.msra.mxu0 0.0
        %1707 = vmatpush.msra.mxu0 %v1552
        %1708 = vmatmul.f32.gmra.mxu0 %v1538
        %v1709 = vpop.f32.mrf.mxu0
        %v1710 = vadd.f32 0.0, %v1709
        %1711 = vdwg.mxu0
        %1712 = vmatpush.msra.mxu0 0.0
        %1713 = vmatpush.msra.mxu0 0.0
        %1714 = vmatpush.msra.mxu0 0.0
        %1715 = vmatpush.msra.mxu0 0.0
        %1716 = vmatpush.msra.mxu0 0.0
        %1717 = vmatpush.msra.mxu0 0.0
        %1718 = vmatpush.msra.mxu0 0.0
        %1719 = vmatpush.msra.mxu0 0.0
        %1720 = vmatpush.msra.mxu0 0.0
        %1721 = vmatpush.msra.mxu0 0.0
        %1722 = vmatpush.msra.mxu0 0.0
        %1723 = vmatpush.msra.mxu0 0.0
        %1724 = vmatpush.msra.mxu0 0.0
        %1725 = vmatpush.msra.mxu0 0.0
        %1726 = vmatpush.msra.mxu0 0.0
        %1727 = vmatpush.msra.mxu0 %v1554
        %1728 = vmatmul.f32.gmra.mxu0 %v1538
        %v1729 = vpop.f32.mrf.mxu0
        %v1730 = vadd.f32 0.0, %v1729
        %1731 = vdwg.mxu0
        %1732 = vmatpush.msra.mxu0 0.0
        %1733 = vmatpush.msra.mxu0 0.0
        %1734 = vmatpush.msra.mxu0 0.0
        %1735 = vmatpush.msra.mxu0 0.0
        %1736 = vmatpush.msra.mxu0 0.0
        %1737 = vmatpush.msra.mxu0 0.0
        %1738 = vmatpush.msra.mxu0 0.0
        %1739 = vmatpush.msra.mxu0 0.0
        %1740 = vmatpush.msra.mxu0 0.0
        %1741 = vmatpush.msra.mxu0 0.0
        %1742 = vmatpush.msra.mxu0 0.0
        %1743 = vmatpush.msra.mxu0 0.0
        %1744 = vmatpush.msra.mxu0 0.0
        %1745 = vmatpush.msra.mxu0 0.0
        %1746 = vmatpush.msra.mxu0 0.0
        %1747 = vmatpush.msra.mxu0 %v1556
        %1748 = vmatmul.f32.gmra.mxu0 %v1538
        %v1749 = vpop.f32.mrf.mxu0
        %v1750 = vadd.f32 0.0, %v1749
        %1751 = vdwg.mxu0
        %1752 = vmatpush.msra.mxu0 0.0
        %1753 = vmatpush.msra.mxu0 0.0
        %1754 = vmatpush.msra.mxu0 0.0
        %1755 = vmatpush.msra.mxu0 0.0
        %1756 = vmatpush.msra.mxu0 0.0
        %1757 = vmatpush.msra.mxu0 0.0
        %1758 = vmatpush.msra.mxu0 0.0
        %1759 = vmatpush.msra.mxu0 0.0
        %1760 = vmatpush.msra.mxu0 0.0
        %1761 = vmatpush.msra.mxu0 0.0
        %1762 = vmatpush.msra.mxu0 0.0
        %1763 = vmatpush.msra.mxu0 0.0
        %1764 = vmatpush.msra.mxu0 0.0
        %1765 = vmatpush.msra.mxu0 0.0
        %1766 = vmatpush.msra.mxu0 0.0
        %1767 = vmatpush.msra.mxu0 %v1558
        %1768 = vmatmul.f32.gmra.mxu0 %v1538
        %v1769 = vpop.f32.mrf.mxu0
        %v1770 = vadd.f32 0.0, %v1769
        %1771 = vdwg.mxu0
        %1772 = vmatpush.msra.mxu0 0.0
        %1773 = vmatpush.msra.mxu0 0.0
        %1774 = vmatpush.msra.mxu0 0.0
        %1775 = vmatpush.msra.mxu0 0.0
        %1776 = vmatpush.msra.mxu0 0.0
        %1777 = vmatpush.msra.mxu0 0.0
        %1778 = vmatpush.msra.mxu0 0.0
        %1779 = vmatpush.msra.mxu0 0.0
        %1780 = vmatpush.msra.mxu0 0.0
        %1781 = vmatpush.msra.mxu0 0.0
        %1782 = vmatpush.msra.mxu0 0.0
        %1783 = vmatpush.msra.mxu0 0.0
        %1784 = vmatpush.msra.mxu0 0.0
        %1785 = vmatpush.msra.mxu0 0.0
        %1786 = vmatpush.msra.mxu0 0.0
        %1787 = vmatpush.msra.mxu0 %v1560
        %1788 = vmatmul.f32.gmra.mxu0 %v1538
        %v1789 = vpop.f32.mrf.mxu0
        %v1790 = vadd.f32 0.0, %v1789
        %1791 = vdwg.mxu0
        %1792 = vmatpush.msra.mxu0 0.0
        %1793 = vmatpush.msra.mxu0 0.0
        %1794 = vmatpush.msra.mxu0 0.0
        %1795 = vmatpush.msra.mxu0 0.0
        %1796 = vmatpush.msra.mxu0 0.0
        %1797 = vmatpush.msra.mxu0 0.0
        %1798 = vmatpush.msra.mxu0 0.0
        %1799 = vmatpush.msra.mxu0 0.0
        %1800 = vmatpush.msra.mxu0 0.0
        %1801 = vmatpush.msra.mxu0 0.0
        %1802 = vmatpush.msra.mxu0 0.0
        %1803 = vmatpush.msra.mxu0 0.0
        %1804 = vmatpush.msra.mxu0 0.0
        %1805 = vmatpush.msra.mxu0 0.0
        %1806 = vmatpush.msra.mxu0 0.0
        %1807 = vmatpush.msra.mxu0 %v1562
        %1808 = vmatmul.f32.gmra.mxu0 %v1538
        %v1809 = vpop.f32.mrf.mxu0
        %v1810 = vadd.f32 0.0, %v1809
        %1811 = vdwg.mxu0
        %1812 = vmatpush.msra.mxu0 0.0
        %1813 = vmatpush.msra.mxu0 0.0
        %1814 = vmatpush.msra.mxu0 0.0
        %1815 = vmatpush.msra.mxu0 0.0
        %1816 = vmatpush.msra.mxu0 0.0
        %1817 = vmatpush.msra.mxu0 0.0
        %1818 = vmatpush.msra.mxu0 0.0
        %1819 = vmatpush.msra.mxu0 0.0
        %1820 = vmatpush.msra.mxu0 0.0
        %1821 = vmatpush.msra.mxu0 0.0
        %1822 = vmatpush.msra.mxu0 0.0
        %1823 = vmatpush.msra.mxu0 0.0
        %1824 = vmatpush.msra.mxu0 0.0
        %1825 = vmatpush.msra.mxu0 0.0
        %1826 = vmatpush.msra.mxu0 0.0
        %1827 = vmatpush.msra.mxu0 %v1564
        %1828 = vmatmul.f32.gmra.mxu0 %v1538
        %v1829 = vpop.f32.mrf.mxu0
        %v1830 = vadd.f32 0.0, %v1829
        %1831 = vdwg.mxu0
        %1832 = vmatpush.msra.mxu0 0.0
        %1833 = vmatpush.msra.mxu0 0.0
        %1834 = vmatpush.msra.mxu0 0.0
        %1835 = vmatpush.msra.mxu0 0.0
        %1836 = vmatpush.msra.mxu0 0.0
        %1837 = vmatpush.msra.mxu0 0.0
        %1838 = vmatpush.msra.mxu0 0.0
        %1839 = vmatpush.msra.mxu0 0.0
        %1840 = vmatpush.msra.mxu0 0.0
        %1841 = vmatpush.msra.mxu0 0.0
        %1842 = vmatpush.msra.mxu0 0.0
        %1843 = vmatpush.msra.mxu0 0.0
        %1844 = vmatpush.msra.mxu0 0.0
        %1845 = vmatpush.msra.mxu0 0.0
        %1846 = vmatpush.msra.mxu0 0.0
        %1847 = vmatpush.msra.mxu0 %v1566
        %1848 = vmatmul.f32.gmra.mxu0 %v1538
        %v1849 = vpop.f32.mrf.mxu0
        %v1850 = vadd.f32 0.0, %v1849
        %1851 = vdwg.mxu0
        %1852 = vmatpush.msra.mxu0 0.0
        %1853 = vmatpush.msra.mxu0 0.0
        %1854 = vmatpush.msra.mxu0 0.0
        %1855 = vmatpush.msra.mxu0 0.0
        %1856 = vmatpush.msra.mxu0 0.0
        %1857 = vmatpush.msra.mxu0 0.0
        %1858 = vmatpush.msra.mxu0 0.0
        %1859 = vmatpush.msra.mxu0 0.0
        %1860 = vmatpush.msra.mxu0 0.0
        %1861 = vmatpush.msra.mxu0 0.0
        %1862 = vmatpush.msra.mxu0 0.0
        %1863 = vmatpush.msra.mxu0 0.0
        %1864 = vmatpush.msra.mxu0 0.0
        %1865 = vmatpush.msra.mxu0 0.0
        %1866 = vmatpush.msra.mxu0 0.0
        %1867 = vmatpush.msra.mxu0 %v1568
        %1868 = vmatmul.f32.gmra.mxu0 %v1538
        %v1869 = vpop.f32.mrf.mxu0
        %v1870 = vadd.f32 0.0, %v1869
        %1871 = vdwg.mxu0
        %1872 = vmatpush.msra.mxu0 0.0
        %1873 = vmatpush.msra.mxu0 0.0
        %1874 = vmatpush.msra.mxu0 0.0
        %1875 = vmatpush.msra.mxu0 0.0
        %1876 = vmatpush.msra.mxu0 0.0
        %1877 = vmatpush.msra.mxu0 0.0
        %1878 = vmatpush.msra.mxu0 0.0
        %1879 = vmatpush.msra.mxu0 0.0
        %1880 = vmatpush.msra.mxu0 0.0
        %1881 = vmatpush.msra.mxu0 0.0
        %1882 = vmatpush.msra.mxu0 0.0
        %1883 = vmatpush.msra.mxu0 0.0
        %1884 = vmatpush.msra.mxu0 0.0
        %1885 = vmatpush.msra.mxu0 0.0
        %1886 = vmatpush.msra.mxu0 0.0
        %1887 = vmatpush.msra.mxu0 %v1570
        %1888 = vmatmul.f32.gmra.mxu0 %v1538
        %v1889 = vpop.f32.mrf.mxu0
        %v1890 = vadd.f32 0.0, %v1889
        %1891 = vdwg.mxu0
        %v1892 = vadd.f32 %v1135, %v1590
        %v1893 = vadd.f32 %v1155, %v1610
        %v1894 = vadd.f32 %v1175, %v1630
        %v1895 = vadd.f32 %v1195, %v1650
        %v1896 = vadd.f32 %v1215, %v1670
        %v1897 = vadd.f32 %v1235, %v1690
        %v1898 = vadd.f32 %v1255, %v1710
        %v1899 = vadd.f32 %v1275, %v1730
        %v1900 = vadd.f32 %v1295, %v1750
        %v1901 = vadd.f32 %v1315, %v1770
        %v1902 = vadd.f32 %v1335, %v1790
        %v1903 = vadd.f32 %v1355, %v1810
        %v1904 = vadd.f32 %v1375, %v1830
        %v1905 = vadd.f32 %v1395, %v1850
        %v1906 = vadd.f32 %v1415, %v1870
        %v1907 = vadd.f32 %v1435, %v1890
        %v1908 = vld [vmem:[#allocation2] sm:$0xff]
        %v1909 = vld [vmem:[#allocation2 + $0x8] sm:$0xff]
        %v1910 = vld [vmem:[#allocation2 + $0x10] sm:$0xff]
        %v1911 = vld [vmem:[#allocation2 + $0x18] sm:$0xff]
        %v1912 = vld [vmem:[#allocation2 + $0x20] sm:$0xff]
        %v1913 = vld [vmem:[#allocation2 + $0x28] sm:$0xff]
        %v1914 = vld [vmem:[#allocation2 + $0x30] sm:$0xff]
        %v1915 = vld [vmem:[#allocation2 + $0x38] sm:$0xff]
        %v1916 = vld [vmem:[#allocation2 + $0x40] sm:$0xf]
        %s1917 = scalar_lea.vmem %s2, 24
        %v1918 = vld [vmem:[%s1917] sm:$0xff]
        %1928 = vst [vmem:[#allocation1] ss:$2 sm:$0xff] %v1908
        %s1929 = scalar_lea.vmem [#allocation1], 16
        %1930 = vst [vmem:[%s1929] ss:$2 sm:$0xff] %v1909
        %s1931 = scalar_lea.vmem [#allocation1], 32
        %1932 = vst [vmem:[%s1931] ss:$2 sm:$0xff] %v1910
        %s1933 = scalar_lea.vmem [#allocation1], 48
        %1934 = vst [vmem:[%s1933] ss:$2 sm:$0xff] %v1911
        %v1935 = vld.sshfl [vmem:[#allocation1] sm:$0xff pattern:$0x75316420]
        %v1936 = vld.sshfl [vmem:[#allocation1 + $0x8] sm:$0xff pattern:$0x75316420]
        %v1937 = vld.sshfl [vmem:[#allocation1 + $0x10] sm:$0xff pattern:$0x75316420]
        %v1938 = vld.sshfl [vmem:[#allocation1 + $0x18] sm:$0xff pattern:$0x75316420]
        %v1939 = vld.sshfl [vmem:[#allocation1 + $0x20] sm:$0xff pattern:$0x75316420]
        %v1940 = vld.sshfl [vmem:[#allocation1 + $0x28] sm:$0xff pattern:$0x75316420]
        %v1941 = vld.sshfl [vmem:[#allocation1 + $0x30] sm:$0xff pattern:$0x75316420]
        %v1942 = vld.sshfl [vmem:[#allocation1 + $0x38] sm:$0xff pattern:$0x75316420]
        %1943 = vst [vmem:[#allocation1] ss:$2 sm:$0xff] %v1912
        %1944 = vst [vmem:[%s1929] ss:$2 sm:$0xff] %v1913
        %1945 = vst [vmem:[%s1931] ss:$2 sm:$0xff] %v1914
        %1946 = vst [vmem:[%s1933] ss:$2 sm:$0xff] %v1915
        %v1947 = vld.sshfl [vmem:[#allocation1] sm:$0xff pattern:$0x75316420]
        %v1948 = vld.sshfl [vmem:[#allocation1 + $0x8] sm:$0xff pattern:$0x75316420]
        %v1949 = vld.sshfl [vmem:[#allocation1 + $0x10] sm:$0xff pattern:$0x75316420]
        %v1950 = vld.sshfl [vmem:[#allocation1 + $0x18] sm:$0xff pattern:$0x75316420]
        %v1951 = vld.sshfl [vmem:[#allocation1 + $0x20] sm:$0xff pattern:$0x75316420]
        %v1952 = vld.sshfl [vmem:[#allocation1 + $0x28] sm:$0xff pattern:$0x75316420]
        %v1953 = vld.sshfl [vmem:[#allocation1 + $0x30] sm:$0xff pattern:$0x75316420]
        %v1954 = vld.sshfl [vmem:[#allocation1 + $0x38] sm:$0xff pattern:$0x75316420]
        %1955 = vst [vmem:[#allocation1] ss:$2 sm:$0xff] %v1916
        %v1956 = vld.sshfl [vmem:[#allocation1] sm:$0xff pattern:$0x75316420]
        %1957 = vrot.lane.b32.xlu0 %v1935, 125
        %v1958 = vpop.permute.xlu0 %1957
        %1959 = vrot.lane.b32.xlu0 %v1936, 125
        %v1960 = vpop.permute.xlu0 %1959
        %1961 = vrot.lane.b32.xlu0 %v1937, 125
        %v1962 = vpop.permute.xlu0 %1961
        %1963 = vrot.lane.b32.xlu0 %v1938, 125
        %v1964 = vpop.permute.xlu0 %1963
        %1965 = vrot.lane.b32.xlu0 %v1939, 125
        %v1966 = vpop.permute.xlu0 %1965
        %1967 = vrot.lane.b32.xlu0 %v1940, 125
        %v1968 = vpop.permute.xlu0 %1967
        %1969 = vrot.lane.b32.xlu0 %v1941, 125
        %v1970 = vpop.permute.xlu0 %1969
        %1971 = vrot.lane.b32.xlu0 %v1942, 125
        %v1972 = vpop.permute.xlu0 %1971
        %1973 = vrot.lane.b32.xlu0 %v1947, 125
        %v1974 = vpop.permute.xlu0 %1973
        %1975 = vrot.lane.b32.xlu0 %v1948, 125
        %v1976 = vpop.permute.xlu0 %1975
        %1977 = vrot.lane.b32.xlu0 %v1949, 125
        %v1978 = vpop.permute.xlu0 %1977
        %1979 = vrot.lane.b32.xlu0 %v1950, 125
        %v1980 = vpop.permute.xlu0 %1979
        %1981 = vrot.lane.b32.xlu0 %v1951, 125
        %v1982 = vpop.permute.xlu0 %1981
        %1983 = vrot.lane.b32.xlu0 %v1952, 125
        %v1984 = vpop.permute.xlu0 %1983
        %1985 = vrot.lane.b32.xlu0 %v1953, 125
        %v1986 = vpop.permute.xlu0 %1985
        %1987 = vrot.lane.b32.xlu0 %v1954, 125
        %v1988 = vpop.permute.xlu0 %1987
        %1989 = vrot.lane.b32.xlu0 %v1956, 125
        %v1990 = vpop.permute.xlu0 %1989
        %vm1991 = vcmask 1022976
        %v1992 = vsel %vm1991, %v1958, %v1960
        %v1993 = vsel %vm1991, %v1960, %v1962
        %v1994 = vsel %vm1991, %v1962, %v1964
        %v1995 = vsel %vm1991, %v1964, %v1966
        %v1996 = vsel %vm1991, %v1966, %v1968
        %v1997 = vsel %vm1991, %v1968, %v1970
        %v1998 = vsel %vm1991, %v1970, %v1972
        %v1999 = vsel %vm1991, %v1972, %v1974
        %v2000 = vsel %vm1991, %v1974, %v1976
        %v2001 = vsel %vm1991, %v1976, %v1978
        %v2002 = vsel %vm1991, %v1978, %v1980
        %v2003 = vsel %vm1991, %v1980, %v1982
        %v2004 = vsel %vm1991, %v1982, %v1984
        %v2005 = vsel %vm1991, %v1984, %v1986
        %v2006 = vsel %vm1991, %v1986, %v1988
        %v2007 = vsel %vm1991, %v1988, %v1990
        %v2009 = vsel %vm690, %v1918, 0
        %v2011 = vsel %vm694, %v1992, 0
        %v2013 = vsel %vm694, %v1993, 0
        %v2015 = vsel %vm694, %v1994, 0
        %v2017 = vsel %vm694, %v1995, 0
        %v2019 = vsel %vm694, %v1996, 0
        %v2021 = vsel %vm694, %v1997, 0
        %v2023 = vsel %vm694, %v1998, 0
        %v2025 = vsel %vm694, %v1999, 0
        %v2027 = vsel %vm694, %v2000, 0
        %v2029 = vsel %vm694, %v2001, 0
        %v2031 = vsel %vm694, %v2002, 0
        %v2033 = vsel %vm694, %v2003, 0
        %v2035 = vsel %vm694, %v2004, 0
        %v2037 = vsel %vm694, %v2005, 0
        %v2039 = vsel %vm694, %v2006, 0
        %v2041 = vsel %vm694, %v2007, 0
        %2043 = vmatpush.msra.mxu0 0.0
        %2044 = vmatpush.msra.mxu0 0.0
        %2045 = vmatpush.msra.mxu0 0.0
        %2046 = vmatpush.msra.mxu0 0.0
        %2047 = vmatpush.msra.mxu0 0.0
        %2048 = vmatpush.msra.mxu0 0.0
        %2049 = vmatpush.msra.mxu0 0.0
        %2050 = vmatpush.msra.mxu0 0.0
        %2051 = vmatpush.msra.mxu0 0.0
        %2052 = vmatpush.msra.mxu0 0.0
        %2053 = vmatpush.msra.mxu0 0.0
        %2054 = vmatpush.msra.mxu0 0.0
        %2055 = vmatpush.msra.mxu0 0.0
        %2056 = vmatpush.msra.mxu0 0.0
        %2057 = vmatpush.msra.mxu0 0.0
        %2058 = vmatpush.msra.mxu0 %v2011
        %2059 = vmatmul.f32.gmra.mxu0 %v2009
        %v2060 = vpop.f32.mrf.mxu0
        %v2061 = vadd.f32 0.0, %v2060
        %2062 = vdwg.mxu0
        %2063 = vmatpush.msra.mxu0 0.0
        %2064 = vmatpush.msra.mxu0 0.0
        %2065 = vmatpush.msra.mxu0 0.0
        %2066 = vmatpush.msra.mxu0 0.0
        %2067 = vmatpush.msra.mxu0 0.0
        %2068 = vmatpush.msra.mxu0 0.0
        %2069 = vmatpush.msra.mxu0 0.0
        %2070 = vmatpush.msra.mxu0 0.0
        %2071 = vmatpush.msra.mxu0 0.0
        %2072 = vmatpush.msra.mxu0 0.0
        %2073 = vmatpush.msra.mxu0 0.0
        %2074 = vmatpush.msra.mxu0 0.0
        %2075 = vmatpush.msra.mxu0 0.0
        %2076 = vmatpush.msra.mxu0 0.0
        %2077 = vmatpush.msra.mxu0 0.0
        %2078 = vmatpush.msra.mxu0 %v2013
        %2079 = vmatmul.f32.gmra.mxu0 %v2009
        %v2080 = vpop.f32.mrf.mxu0
        %v2081 = vadd.f32 0.0, %v2080
        %2082 = vdwg.mxu0
        %2083 = vmatpush.msra.mxu0 0.0
        %2084 = vmatpush.msra.mxu0 0.0
        %2085 = vmatpush.msra.mxu0 0.0
        %2086 = vmatpush.msra.mxu0 0.0
        %2087 = vmatpush.msra.mxu0 0.0
        %2088 = vmatpush.msra.mxu0 0.0
        %2089 = vmatpush.msra.mxu0 0.0
        %2090 = vmatpush.msra.mxu0 0.0
        %2091 = vmatpush.msra.mxu0 0.0
        %2092 = vmatpush.msra.mxu0 0.0
        %2093 = vmatpush.msra.mxu0 0.0
        %2094 = vmatpush.msra.mxu0 0.0
        %2095 = vmatpush.msra.mxu0 0.0
        %2096 = vmatpush.msra.mxu0 0.0
        %2097 = vmatpush.msra.mxu0 0.0
        %2098 = vmatpush.msra.mxu0 %v2015
        %2099 = vmatmul.f32.gmra.mxu0 %v2009
        %v2100 = vpop.f32.mrf.mxu0
        %v2101 = vadd.f32 0.0, %v2100
        %2102 = vdwg.mxu0
        %2103 = vmatpush.msra.mxu0 0.0
        %2104 = vmatpush.msra.mxu0 0.0
        %2105 = vmatpush.msra.mxu0 0.0
        %2106 = vmatpush.msra.mxu0 0.0
        %2107 = vmatpush.msra.mxu0 0.0
        %2108 = vmatpush.msra.mxu0 0.0
        %2109 = vmatpush.msra.mxu0 0.0
        %2110 = vmatpush.msra.mxu0 0.0
        %2111 = vmatpush.msra.mxu0 0.0
        %2112 = vmatpush.msra.mxu0 0.0
        %2113 = vmatpush.msra.mxu0 0.0
        %2114 = vmatpush.msra.mxu0 0.0
        %2115 = vmatpush.msra.mxu0 0.0
        %2116 = vmatpush.msra.mxu0 0.0
        %2117 = vmatpush.msra.mxu0 0.0
        %2118 = vmatpush.msra.mxu0 %v2017
        %2119 = vmatmul.f32.gmra.mxu0 %v2009
        %v2120 = vpop.f32.mrf.mxu0
        %v2121 = vadd.f32 0.0, %v2120
        %2122 = vdwg.mxu0
        %2123 = vmatpush.msra.mxu0 0.0
        %2124 = vmatpush.msra.mxu0 0.0
        %2125 = vmatpush.msra.mxu0 0.0
        %2126 = vmatpush.msra.mxu0 0.0
        %2127 = vmatpush.msra.mxu0 0.0
        %2128 = vmatpush.msra.mxu0 0.0
        %2129 = vmatpush.msra.mxu0 0.0
        %2130 = vmatpush.msra.mxu0 0.0
        %2131 = vmatpush.msra.mxu0 0.0
        %2132 = vmatpush.msra.mxu0 0.0
        %2133 = vmatpush.msra.mxu0 0.0
        %2134 = vmatpush.msra.mxu0 0.0
        %2135 = vmatpush.msra.mxu0 0.0
        %2136 = vmatpush.msra.mxu0 0.0
        %2137 = vmatpush.msra.mxu0 0.0
        %2138 = vmatpush.msra.mxu0 %v2019
        %2139 = vmatmul.f32.gmra.mxu0 %v2009
        %v2140 = vpop.f32.mrf.mxu0
        %v2141 = vadd.f32 0.0, %v2140
        %2142 = vdwg.mxu0
        %2143 = vmatpush.msra.mxu0 0.0
        %2144 = vmatpush.msra.mxu0 0.0
        %2145 = vmatpush.msra.mxu0 0.0
        %2146 = vmatpush.msra.mxu0 0.0
        %2147 = vmatpush.msra.mxu0 0.0
        %2148 = vmatpush.msra.mxu0 0.0
        %2149 = vmatpush.msra.mxu0 0.0
        %2150 = vmatpush.msra.mxu0 0.0
        %2151 = vmatpush.msra.mxu0 0.0
        %2152 = vmatpush.msra.mxu0 0.0
        %2153 = vmatpush.msra.mxu0 0.0
        %2154 = vmatpush.msra.mxu0 0.0
        %2155 = vmatpush.msra.mxu0 0.0
        %2156 = vmatpush.msra.mxu0 0.0
        %2157 = vmatpush.msra.mxu0 0.0
        %2158 = vmatpush.msra.mxu0 %v2021
        %2159 = vmatmul.f32.gmra.mxu0 %v2009
        %v2160 = vpop.f32.mrf.mxu0
        %v2161 = vadd.f32 0.0, %v2160
        %2162 = vdwg.mxu0
        %2163 = vmatpush.msra.mxu0 0.0
        %2164 = vmatpush.msra.mxu0 0.0
        %2165 = vmatpush.msra.mxu0 0.0
        %2166 = vmatpush.msra.mxu0 0.0
        %2167 = vmatpush.msra.mxu0 0.0
        %2168 = vmatpush.msra.mxu0 0.0
        %2169 = vmatpush.msra.mxu0 0.0
        %2170 = vmatpush.msra.mxu0 0.0
        %2171 = vmatpush.msra.mxu0 0.0
        %2172 = vmatpush.msra.mxu0 0.0
        %2173 = vmatpush.msra.mxu0 0.0
        %2174 = vmatpush.msra.mxu0 0.0
        %2175 = vmatpush.msra.mxu0 0.0
        %2176 = vmatpush.msra.mxu0 0.0
        %2177 = vmatpush.msra.mxu0 0.0
        %2178 = vmatpush.msra.mxu0 %v2023
        %2179 = vmatmul.f32.gmra.mxu0 %v2009
        %v2180 = vpop.f32.mrf.mxu0
        %v2181 = vadd.f32 0.0, %v2180
        %2182 = vdwg.mxu0
        %2183 = vmatpush.msra.mxu0 0.0
        %2184 = vmatpush.msra.mxu0 0.0
        %2185 = vmatpush.msra.mxu0 0.0
        %2186 = vmatpush.msra.mxu0 0.0
        %2187 = vmatpush.msra.mxu0 0.0
        %2188 = vmatpush.msra.mxu0 0.0
        %2189 = vmatpush.msra.mxu0 0.0
        %2190 = vmatpush.msra.mxu0 0.0
        %2191 = vmatpush.msra.mxu0 0.0
        %2192 = vmatpush.msra.mxu0 0.0
        %2193 = vmatpush.msra.mxu0 0.0
        %2194 = vmatpush.msra.mxu0 0.0
        %2195 = vmatpush.msra.mxu0 0.0
        %2196 = vmatpush.msra.mxu0 0.0
        %2197 = vmatpush.msra.mxu0 0.0
        %2198 = vmatpush.msra.mxu0 %v2025
        %2199 = vmatmul.f32.gmra.mxu0 %v2009
        %v2200 = vpop.f32.mrf.mxu0
        %v2201 = vadd.f32 0.0, %v2200
        %2202 = vdwg.mxu0
        %2203 = vmatpush.msra.mxu0 0.0
        %2204 = vmatpush.msra.mxu0 0.0
        %2205 = vmatpush.msra.mxu0 0.0
        %2206 = vmatpush.msra.mxu0 0.0
        %2207 = vmatpush.msra.mxu0 0.0
        %2208 = vmatpush.msra.mxu0 0.0
        %2209 = vmatpush.msra.mxu0 0.0
        %2210 = vmatpush.msra.mxu0 0.0
        %2211 = vmatpush.msra.mxu0 0.0
        %2212 = vmatpush.msra.mxu0 0.0
        %2213 = vmatpush.msra.mxu0 0.0
        %2214 = vmatpush.msra.mxu0 0.0
        %2215 = vmatpush.msra.mxu0 0.0
        %2216 = vmatpush.msra.mxu0 0.0
        %2217 = vmatpush.msra.mxu0 0.0
        %2218 = vmatpush.msra.mxu0 %v2027
        %2219 = vmatmul.f32.gmra.mxu0 %v2009
        %v2220 = vpop.f32.mrf.mxu0
        %v2221 = vadd.f32 0.0, %v2220
        %2222 = vdwg.mxu0
        %2223 = vmatpush.msra.mxu0 0.0
        %2224 = vmatpush.msra.mxu0 0.0
        %2225 = vmatpush.msra.mxu0 0.0
        %2226 = vmatpush.msra.mxu0 0.0
        %2227 = vmatpush.msra.mxu0 0.0
        %2228 = vmatpush.msra.mxu0 0.0
        %2229 = vmatpush.msra.mxu0 0.0
        %2230 = vmatpush.msra.mxu0 0.0
        %2231 = vmatpush.msra.mxu0 0.0
        %2232 = vmatpush.msra.mxu0 0.0
        %2233 = vmatpush.msra.mxu0 0.0
        %2234 = vmatpush.msra.mxu0 0.0
        %2235 = vmatpush.msra.mxu0 0.0
        %2236 = vmatpush.msra.mxu0 0.0
        %2237 = vmatpush.msra.mxu0 0.0
        %2238 = vmatpush.msra.mxu0 %v2029
        %2239 = vmatmul.f32.gmra.mxu0 %v2009
        %v2240 = vpop.f32.mrf.mxu0
        %v2241 = vadd.f32 0.0, %v2240
        %2242 = vdwg.mxu0
        %2243 = vmatpush.msra.mxu0 0.0
        %2244 = vmatpush.msra.mxu0 0.0
        %2245 = vmatpush.msra.mxu0 0.0
        %2246 = vmatpush.msra.mxu0 0.0
        %2247 = vmatpush.msra.mxu0 0.0
        %2248 = vmatpush.msra.mxu0 0.0
        %2249 = vmatpush.msra.mxu0 0.0
        %2250 = vmatpush.msra.mxu0 0.0
        %2251 = vmatpush.msra.mxu0 0.0
        %2252 = vmatpush.msra.mxu0 0.0
        %2253 = vmatpush.msra.mxu0 0.0
        %2254 = vmatpush.msra.mxu0 0.0
        %2255 = vmatpush.msra.mxu0 0.0
        %2256 = vmatpush.msra.mxu0 0.0
        %2257 = vmatpush.msra.mxu0 0.0
        %2258 = vmatpush.msra.mxu0 %v2031
        %2259 = vmatmul.f32.gmra.mxu0 %v2009
        %v2260 = vpop.f32.mrf.mxu0
        %v2261 = vadd.f32 0.0, %v2260
        %2262 = vdwg.mxu0
        %2263 = vmatpush.msra.mxu0 0.0
        %2264 = vmatpush.msra.mxu0 0.0
        %2265 = vmatpush.msra.mxu0 0.0
        %2266 = vmatpush.msra.mxu0 0.0
        %2267 = vmatpush.msra.mxu0 0.0
        %2268 = vmatpush.msra.mxu0 0.0
        %2269 = vmatpush.msra.mxu0 0.0
        %2270 = vmatpush.msra.mxu0 0.0
        %2271 = vmatpush.msra.mxu0 0.0
        %2272 = vmatpush.msra.mxu0 0.0
        %2273 = vmatpush.msra.mxu0 0.0
        %2274 = vmatpush.msra.mxu0 0.0
        %2275 = vmatpush.msra.mxu0 0.0
        %2276 = vmatpush.msra.mxu0 0.0
        %2277 = vmatpush.msra.mxu0 0.0
        %2278 = vmatpush.msra.mxu0 %v2033
        %2279 = vmatmul.f32.gmra.mxu0 %v2009
        %v2280 = vpop.f32.mrf.mxu0
        %v2281 = vadd.f32 0.0, %v2280
        %2282 = vdwg.mxu0
        %2283 = vmatpush.msra.mxu0 0.0
        %2284 = vmatpush.msra.mxu0 0.0
        %2285 = vmatpush.msra.mxu0 0.0
        %2286 = vmatpush.msra.mxu0 0.0
        %2287 = vmatpush.msra.mxu0 0.0
        %2288 = vmatpush.msra.mxu0 0.0
        %2289 = vmatpush.msra.mxu0 0.0
        %2290 = vmatpush.msra.mxu0 0.0
        %2291 = vmatpush.msra.mxu0 0.0
        %2292 = vmatpush.msra.mxu0 0.0
        %2293 = vmatpush.msra.mxu0 0.0
        %2294 = vmatpush.msra.mxu0 0.0
        %2295 = vmatpush.msra.mxu0 0.0
        %2296 = vmatpush.msra.mxu0 0.0
        %2297 = vmatpush.msra.mxu0 0.0
        %2298 = vmatpush.msra.mxu0 %v2035
        %2299 = vmatmul.f32.gmra.mxu0 %v2009
        %v2300 = vpop.f32.mrf.mxu0
        %v2301 = vadd.f32 0.0, %v2300
        %2302 = vdwg.mxu0
        %2303 = vmatpush.msra.mxu0 0.0
        %2304 = vmatpush.msra.mxu0 0.0
        %2305 = vmatpush.msra.mxu0 0.0
        %2306 = vmatpush.msra.mxu0 0.0
        %2307 = vmatpush.msra.mxu0 0.0
        %2308 = vmatpush.msra.mxu0 0.0
        %2309 = vmatpush.msra.mxu0 0.0
        %2310 = vmatpush.msra.mxu0 0.0
        %2311 = vmatpush.msra.mxu0 0.0
        %2312 = vmatpush.msra.mxu0 0.0
        %2313 = vmatpush.msra.mxu0 0.0
        %2314 = vmatpush.msra.mxu0 0.0
        %2315 = vmatpush.msra.mxu0 0.0
        %2316 = vmatpush.msra.mxu0 0.0
        %2317 = vmatpush.msra.mxu0 0.0
        %2318 = vmatpush.msra.mxu0 %v2037
        %2319 = vmatmul.f32.gmra.mxu0 %v2009
        %v2320 = vpop.f32.mrf.mxu0
        %v2321 = vadd.f32 0.0, %v2320
        %2322 = vdwg.mxu0
        %2323 = vmatpush.msra.mxu0 0.0
        %2324 = vmatpush.msra.mxu0 0.0
        %2325 = vmatpush.msra.mxu0 0.0
        %2326 = vmatpush.msra.mxu0 0.0
        %2327 = vmatpush.msra.mxu0 0.0
        %2328 = vmatpush.msra.mxu0 0.0
        %2329 = vmatpush.msra.mxu0 0.0
        %2330 = vmatpush.msra.mxu0 0.0
        %2331 = vmatpush.msra.mxu0 0.0
        %2332 = vmatpush.msra.mxu0 0.0
        %2333 = vmatpush.msra.mxu0 0.0
        %2334 = vmatpush.msra.mxu0 0.0
        %2335 = vmatpush.msra.mxu0 0.0
        %2336 = vmatpush.msra.mxu0 0.0
        %2337 = vmatpush.msra.mxu0 0.0
        %2338 = vmatpush.msra.mxu0 %v2039
        %2339 = vmatmul.f32.gmra.mxu0 %v2009
        %v2340 = vpop.f32.mrf.mxu0
        %v2341 = vadd.f32 0.0, %v2340
        %2342 = vdwg.mxu0
        %2343 = vmatpush.msra.mxu0 0.0
        %2344 = vmatpush.msra.mxu0 0.0
        %2345 = vmatpush.msra.mxu0 0.0
        %2346 = vmatpush.msra.mxu0 0.0
        %2347 = vmatpush.msra.mxu0 0.0
        %2348 = vmatpush.msra.mxu0 0.0
        %2349 = vmatpush.msra.mxu0 0.0
        %2350 = vmatpush.msra.mxu0 0.0
        %2351 = vmatpush.msra.mxu0 0.0
        %2352 = vmatpush.msra.mxu0 0.0
        %2353 = vmatpush.msra.mxu0 0.0
        %2354 = vmatpush.msra.mxu0 0.0
        %2355 = vmatpush.msra.mxu0 0.0
        %2356 = vmatpush.msra.mxu0 0.0
        %2357 = vmatpush.msra.mxu0 0.0
        %2358 = vmatpush.msra.mxu0 %v2041
        %2359 = vmatmul.f32.gmra.mxu0 %v2009
        %v2360 = vpop.f32.mrf.mxu0
        %v2361 = vadd.f32 0.0, %v2360
        %2362 = vdwg.mxu0
        %v2363 = vadd.f32 %v1892, %v2061
        %v2364 = vadd.f32 %v1893, %v2081
        %v2365 = vadd.f32 %v1894, %v2101
        %v2366 = vadd.f32 %v1895, %v2121
        %v2367 = vadd.f32 %v1896, %v2141
        %v2368 = vadd.f32 %v1897, %v2161
        %v2369 = vadd.f32 %v1898, %v2181
        %v2370 = vadd.f32 %v1899, %v2201
        %v2371 = vadd.f32 %v1900, %v2221
        %v2372 = vadd.f32 %v1901, %v2241
        %v2373 = vadd.f32 %v1902, %v2261
        %v2374 = vadd.f32 %v1903, %v2281
        %v2375 = vadd.f32 %v1904, %v2301
        %v2376 = vadd.f32 %v1905, %v2321
        %v2377 = vadd.f32 %v1906, %v2341
        %v2378 = vadd.f32 %v1907, %v2361
        %v2379 = vld [vmem:[%s3] sm:$0xff]
        %2381 = vset.pattern.permute.xlu0 0
        %2382 = vperm.xlu0 %2381, %v2379
        %v2383 = vpop.permute.xlu0 %2382
        %v2385 = vadd.f32 %v2363, %v2383
        %v2386 = vadd.f32 %v2364, %v2383
        %v2387 = vadd.f32 %v2365, %v2383
        %v2388 = vadd.f32 %v2366, %v2383
        %v2389 = vadd.f32 %v2367, %v2383
        %v2390 = vadd.f32 %v2368, %v2383
        %v2391 = vadd.f32 %v2369, %v2383
        %v2392 = vadd.f32 %v2370, %v2383
        %v2393 = vadd.f32 %v2371, %v2383
        %v2394 = vadd.f32 %v2372, %v2383
        %v2395 = vadd.f32 %v2373, %v2383
        %v2396 = vadd.f32 %v2374, %v2383
        %v2397 = vadd.f32 %v2375, %v2383
        %v2398 = vadd.f32 %v2376, %v2383
        %v2399 = vadd.f32 %v2377, %v2383
        %v2400 = vadd.f32 %v2378, %v2383
        %v2401 = vmax.f32 %v2385, 0.0
        %v2402 = vmax.f32 %v2386, 0.0
        %v2403 = vmax.f32 %v2387, 0.0
        %v2404 = vmax.f32 %v2388, 0.0
        %v2405 = vmax.f32 %v2389, 0.0
        %v2406 = vmax.f32 %v2390, 0.0
        %v2407 = vmax.f32 %v2391, 0.0
        %v2408 = vmax.f32 %v2392, 0.0
        %v2409 = vmax.f32 %v2393, 0.0
        %v2410 = vmax.f32 %v2394, 0.0
        %v2411 = vmax.f32 %v2395, 0.0
        %v2412 = vmax.f32 %v2396, 0.0
        %v2413 = vmax.f32 %v2397, 0.0
        %v2414 = vmax.f32 %v2398, 0.0
        %v2415 = vmax.f32 %v2399, 0.0
        %v2416 = vmax.f32 %v2400, 0.0
        %v2418 = vrot.slane %v2401, 1
        %v2419 = vrot.slane %v2401, 2
        %v2420 = vrot.slane %v2401, 3
        %v2421 = vrot.slane %v2401, 4
        %v2422 = vrot.slane %v2401, 5
        %v2423 = vrot.slane %v2401, 6
        %v2424 = vrot.slane %v2401, 7
        %vm2432 = vcmask 253952
        %2433 = vst.msk [vmem:[%s217] sm:$0x1] %vm2432, %v2401
        %2434 = vst.msk [vmem:[%s217 + $0x10] sm:$0x1] %vm2432, %v2418
        %2435 = vst.msk [vmem:[%s217 + $0x20] sm:$0x1] %vm2432, %v2419
        %2436 = vst.msk [vmem:[%s217 + $0x30] sm:$0x1] %vm2432, %v2420
        %2437 = vst.msk [vmem:[%s217 + $0x40] sm:$0x1] %vm2432, %v2421
        %2438 = vst.msk [vmem:[%s217 + $0x50] sm:$0x1] %vm2432, %v2422
        %2439 = vst.msk [vmem:[%s217 + $0x60] sm:$0x1] %vm2432, %v2423
        %2440 = vst.msk [vmem:[%s217 + $0x70] sm:$0x1] %vm2432, %v2424
        %v2442 = vrot.slane %v2402, 1
        %v2443 = vrot.slane %v2402, 2
        %v2444 = vrot.slane %v2402, 3
        %v2445 = vrot.slane %v2402, 4
        %v2446 = vrot.slane %v2402, 5
        %v2447 = vrot.slane %v2402, 6
        %v2448 = vrot.slane %v2402, 7
        %2456 = vst.msk [vmem:[%s217 + $0x1] sm:$0x1] %vm2432, %v2402
        %2457 = vst.msk [vmem:[%s217 + $0x11] sm:$0x1] %vm2432, %v2442
        %2458 = vst.msk [vmem:[%s217 + $0x21] sm:$0x1] %vm2432, %v2443
        %2459 = vst.msk [vmem:[%s217 + $0x31] sm:$0x1] %vm2432, %v2444
        %2460 = vst.msk [vmem:[%s217 + $0x41] sm:$0x1] %vm2432, %v2445
        %2461 = vst.msk [vmem:[%s217 + $0x51] sm:$0x1] %vm2432, %v2446
        %2462 = vst.msk [vmem:[%s217 + $0x61] sm:$0x1] %vm2432, %v2447
        %2463 = vst.msk [vmem:[%s217 + $0x71] sm:$0x1] %vm2432, %v2448
        %v2465 = vrot.slane %v2403, 1
        %v2466 = vrot.slane %v2403, 2
        %v2467 = vrot.slane %v2403, 3
        %v2468 = vrot.slane %v2403, 4
        %v2469 = vrot.slane %v2403, 5
        %v2470 = vrot.slane %v2403, 6
        %v2471 = vrot.slane %v2403, 7
        %2479 = vst.msk [vmem:[%s217 + $0x2] sm:$0x1] %vm2432, %v2403
        %2480 = vst.msk [vmem:[%s217 + $0x12] sm:$0x1] %vm2432, %v2465
        %2481 = vst.msk [vmem:[%s217 + $0x22] sm:$0x1] %vm2432, %v2466
        %2482 = vst.msk [vmem:[%s217 + $0x32] sm:$0x1] %vm2432, %v2467
        %2483 = vst.msk [vmem:[%s217 + $0x42] sm:$0x1] %vm2432, %v2468
        %2484 = vst.msk [vmem:[%s217 + $0x52] sm:$0x1] %vm2432, %v2469
        %2485 = vst.msk [vmem:[%s217 + $0x62] sm:$0x1] %vm2432, %v2470
        %2486 = vst.msk [vmem:[%s217 + $0x72] sm:$0x1] %vm2432, %v2471
        %v2488 = vrot.slane %v2404, 1
        %v2489 = vrot.slane %v2404, 2
        %v2490 = vrot.slane %v2404, 3
        %v2491 = vrot.slane %v2404, 4
        %v2492 = vrot.slane %v2404, 5
        %v2493 = vrot.slane %v2404, 6
        %v2494 = vrot.slane %v2404, 7
        %2502 = vst.msk [vmem:[%s217 + $0x3] sm:$0x1] %vm2432, %v2404
        %2503 = vst.msk [vmem:[%s217 + $0x13] sm:$0x1] %vm2432, %v2488
        %2504 = vst.msk [vmem:[%s217 + $0x23] sm:$0x1] %vm2432, %v2489
        %2505 = vst.msk [vmem:[%s217 + $0x33] sm:$0x1] %vm2432, %v2490
        %2506 = vst.msk [vmem:[%s217 + $0x43] sm:$0x1] %vm2432, %v2491
        %2507 = vst.msk [vmem:[%s217 + $0x53] sm:$0x1] %vm2432, %v2492
        %2508 = vst.msk [vmem:[%s217 + $0x63] sm:$0x1] %vm2432, %v2493
        %2509 = vst.msk [vmem:[%s217 + $0x73] sm:$0x1] %vm2432, %v2494
        %v2511 = vrot.slane %v2405, 1
        %v2512 = vrot.slane %v2405, 2
        %v2513 = vrot.slane %v2405, 3
        %v2514 = vrot.slane %v2405, 4
        %v2515 = vrot.slane %v2405, 5
        %v2516 = vrot.slane %v2405, 6
        %v2517 = vrot.slane %v2405, 7
        %2525 = vst.msk [vmem:[%s217 + $0x4] sm:$0x1] %vm2432, %v2405
        %2526 = vst.msk [vmem:[%s217 + $0x14] sm:$0x1] %vm2432, %v2511
        %2527 = vst.msk [vmem:[%s217 + $0x24] sm:$0x1] %vm2432, %v2512
        %2528 = vst.msk [vmem:[%s217 + $0x34] sm:$0x1] %vm2432, %v2513
        %2529 = vst.msk [vmem:[%s217 + $0x44] sm:$0x1] %vm2432, %v2514
        %2530 = vst.msk [vmem:[%s217 + $0x54] sm:$0x1] %vm2432, %v2515
        %2531 = vst.msk [vmem:[%s217 + $0x64] sm:$0x1] %vm2432, %v2516
        %2532 = vst.msk [vmem:[%s217 + $0x74] sm:$0x1] %vm2432, %v2517
        %v2534 = vrot.slane %v2406, 1
        %v2535 = vrot.slane %v2406, 2
        %v2536 = vrot.slane %v2406, 3
        %v2537 = vrot.slane %v2406, 4
        %v2538 = vrot.slane %v2406, 5
        %v2539 = vrot.slane %v2406, 6
        %v2540 = vrot.slane %v2406, 7
        %2548 = vst.msk [vmem:[%s217 + $0x5] sm:$0x1] %vm2432, %v2406
        %2549 = vst.msk [vmem:[%s217 + $0x15] sm:$0x1] %vm2432, %v2534
        %2550 = vst.msk [vmem:[%s217 + $0x25] sm:$0x1] %vm2432, %v2535
        %2551 = vst.msk [vmem:[%s217 + $0x35] sm:$0x1] %vm2432, %v2536
        %2552 = vst.msk [vmem:[%s217 + $0x45] sm:$0x1] %vm2432, %v2537
        %2553 = vst.msk [vmem:[%s217 + $0x55] sm:$0x1] %vm2432, %v2538
        %2554 = vst.msk [vmem:[%s217 + $0x65] sm:$0x1] %vm2432, %v2539
        %2555 = vst.msk [vmem:[%s217 + $0x75] sm:$0x1] %vm2432, %v2540
        %v2557 = vrot.slane %v2407, 1
        %v2558 = vrot.slane %v2407, 2
        %v2559 = vrot.slane %v2407, 3
        %v2560 = vrot.slane %v2407, 4
        %v2561 = vrot.slane %v2407, 5
        %v2562 = vrot.slane %v2407, 6
        %v2563 = vrot.slane %v2407, 7
        %2571 = vst.msk [vmem:[%s217 + $0x6] sm:$0x1] %vm2432, %v2407
        %2572 = vst.msk [vmem:[%s217 + $0x16] sm:$0x1] %vm2432, %v2557
        %2573 = vst.msk [vmem:[%s217 + $0x26] sm:$0x1] %vm2432, %v2558
        %2574 = vst.msk [vmem:[%s217 + $0x36] sm:$0x1] %vm2432, %v2559
        %2575 = vst.msk [vmem:[%s217 + $0x46] sm:$0x1] %vm2432, %v2560
        %2576 = vst.msk [vmem:[%s217 + $0x56] sm:$0x1] %vm2432, %v2561
        %2577 = vst.msk [vmem:[%s217 + $0x66] sm:$0x1] %vm2432, %v2562
        %2578 = vst.msk [vmem:[%s217 + $0x76] sm:$0x1] %vm2432, %v2563
        %v2580 = vrot.slane %v2408, 1
        %v2581 = vrot.slane %v2408, 2
        %v2582 = vrot.slane %v2408, 3
        %v2583 = vrot.slane %v2408, 4
        %v2584 = vrot.slane %v2408, 5
        %v2585 = vrot.slane %v2408, 6
        %v2586 = vrot.slane %v2408, 7
        %2594 = vst.msk [vmem:[%s217 + $0x7] sm:$0x1] %vm2432, %v2408
        %2595 = vst.msk [vmem:[%s217 + $0x17] sm:$0x1] %vm2432, %v2580
        %2596 = vst.msk [vmem:[%s217 + $0x27] sm:$0x1] %vm2432, %v2581
        %2597 = vst.msk [vmem:[%s217 + $0x37] sm:$0x1] %vm2432, %v2582
        %2598 = vst.msk [vmem:[%s217 + $0x47] sm:$0x1] %vm2432, %v2583
        %2599 = vst.msk [vmem:[%s217 + $0x57] sm:$0x1] %vm2432, %v2584
        %2600 = vst.msk [vmem:[%s217 + $0x67] sm:$0x1] %vm2432, %v2585
        %2601 = vst.msk [vmem:[%s217 + $0x77] sm:$0x1] %vm2432, %v2586
        %v2603 = vrot.slane %v2409, 1
        %v2604 = vrot.slane %v2409, 2
        %v2605 = vrot.slane %v2409, 3
        %v2606 = vrot.slane %v2409, 4
        %v2607 = vrot.slane %v2409, 5
        %v2608 = vrot.slane %v2409, 6
        %v2609 = vrot.slane %v2409, 7
        %2617 = vst.msk [vmem:[%s217 + $0x8] sm:$0x1] %vm2432, %v2409
        %2618 = vst.msk [vmem:[%s217 + $0x18] sm:$0x1] %vm2432, %v2603
        %2619 = vst.msk [vmem:[%s217 + $0x28] sm:$0x1] %vm2432, %v2604
        %2620 = vst.msk [vmem:[%s217 + $0x38] sm:$0x1] %vm2432, %v2605
        %2621 = vst.msk [vmem:[%s217 + $0x48] sm:$0x1] %vm2432, %v2606
        %2622 = vst.msk [vmem:[%s217 + $0x58] sm:$0x1] %vm2432, %v2607
        %2623 = vst.msk [vmem:[%s217 + $0x68] sm:$0x1] %vm2432, %v2608
        %2624 = vst.msk [vmem:[%s217 + $0x78] sm:$0x1] %vm2432, %v2609
        %v2626 = vrot.slane %v2410, 1
        %v2627 = vrot.slane %v2410, 2
        %v2628 = vrot.slane %v2410, 3
        %v2629 = vrot.slane %v2410, 4
        %v2630 = vrot.slane %v2410, 5
        %v2631 = vrot.slane %v2410, 6
        %v2632 = vrot.slane %v2410, 7
        %2640 = vst.msk [vmem:[%s217 + $0x9] sm:$0x1] %vm2432, %v2410
        %2641 = vst.msk [vmem:[%s217 + $0x19] sm:$0x1] %vm2432, %v2626
        %2642 = vst.msk [vmem:[%s217 + $0x29] sm:$0x1] %vm2432, %v2627
        %2643 = vst.msk [vmem:[%s217 + $0x39] sm:$0x1] %vm2432, %v2628
        %2644 = vst.msk [vmem:[%s217 + $0x49] sm:$0x1] %vm2432, %v2629
        %2645 = vst.msk [vmem:[%s217 + $0x59] sm:$0x1] %vm2432, %v2630
        %2646 = vst.msk [vmem:[%s217 + $0x69] sm:$0x1] %vm2432, %v2631
        %2647 = vst.msk [vmem:[%s217 + $0x79] sm:$0x1] %vm2432, %v2632
        %v2649 = vrot.slane %v2411, 1
        %v2650 = vrot.slane %v2411, 2
        %v2651 = vrot.slane %v2411, 3
        %v2652 = vrot.slane %v2411, 4
        %v2653 = vrot.slane %v2411, 5
        %v2654 = vrot.slane %v2411, 6
        %v2655 = vrot.slane %v2411, 7
        %2663 = vst.msk [vmem:[%s217 + $0xa] sm:$0x1] %vm2432, %v2411
        %2664 = vst.msk [vmem:[%s217 + $0x1a] sm:$0x1] %vm2432, %v2649
        %2665 = vst.msk [vmem:[%s217 + $0x2a] sm:$0x1] %vm2432, %v2650
        %2666 = vst.msk [vmem:[%s217 + $0x3a] sm:$0x1] %vm2432, %v2651
        %2667 = vst.msk [vmem:[%s217 + $0x4a] sm:$0x1] %vm2432, %v2652
        %2668 = vst.msk [vmem:[%s217 + $0x5a] sm:$0x1] %vm2432, %v2653
        %2669 = vst.msk [vmem:[%s217 + $0x6a] sm:$0x1] %vm2432, %v2654
        %2670 = vst.msk [vmem:[%s217 + $0x7a] sm:$0x1] %vm2432, %v2655
        %v2672 = vrot.slane %v2412, 1
        %v2673 = vrot.slane %v2412, 2
        %v2674 = vrot.slane %v2412, 3
        %v2675 = vrot.slane %v2412, 4
        %v2676 = vrot.slane %v2412, 5
        %v2677 = vrot.slane %v2412, 6
        %v2678 = vrot.slane %v2412, 7
        %2686 = vst.msk [vmem:[%s217 + $0xb] sm:$0x1] %vm2432, %v2412
        %2687 = vst.msk [vmem:[%s217 + $0x1b] sm:$0x1] %vm2432, %v2672
        %2688 = vst.msk [vmem:[%s217 + $0x2b] sm:$0x1] %vm2432, %v2673
        %2689 = vst.msk [vmem:[%s217 + $0x3b] sm:$0x1] %vm2432, %v2674
        %2690 = vst.msk [vmem:[%s217 + $0x4b] sm:$0x1] %vm2432, %v2675
        %2691 = vst.msk [vmem:[%s217 + $0x5b] sm:$0x1] %vm2432, %v2676
        %2692 = vst.msk [vmem:[%s217 + $0x6b] sm:$0x1] %vm2432, %v2677
        %2693 = vst.msk [vmem:[%s217 + $0x7b] sm:$0x1] %vm2432, %v2678
        %v2695 = vrot.slane %v2413, 1
        %v2696 = vrot.slane %v2413, 2
        %v2697 = vrot.slane %v2413, 3
        %v2698 = vrot.slane %v2413, 4
        %v2699 = vrot.slane %v2413, 5
        %v2700 = vrot.slane %v2413, 6
        %v2701 = vrot.slane %v2413, 7
        %2709 = vst.msk [vmem:[%s217 + $0xc] sm:$0x1] %vm2432, %v2413
        %2710 = vst.msk [vmem:[%s217 + $0x1c] sm:$0x1] %vm2432, %v2695
        %2711 = vst.msk [vmem:[%s217 + $0x2c] sm:$0x1] %vm2432, %v2696
        %2712 = vst.msk [vmem:[%s217 + $0x3c] sm:$0x1] %vm2432, %v2697
        %2713 = vst.msk [vmem:[%s217 + $0x4c] sm:$0x1] %vm2432, %v2698
        %2714 = vst.msk [vmem:[%s217 + $0x5c] sm:$0x1] %vm2432, %v2699
        %2715 = vst.msk [vmem:[%s217 + $0x6c] sm:$0x1] %vm2432, %v2700
        %2716 = vst.msk [vmem:[%s217 + $0x7c] sm:$0x1] %vm2432, %v2701
        %v2718 = vrot.slane %v2414, 1
        %v2719 = vrot.slane %v2414, 2
        %v2720 = vrot.slane %v2414, 3
        %v2721 = vrot.slane %v2414, 4
        %v2722 = vrot.slane %v2414, 5
        %v2723 = vrot.slane %v2414, 6
        %v2724 = vrot.slane %v2414, 7
        %2732 = vst.msk [vmem:[%s217 + $0xd] sm:$0x1] %vm2432, %v2414
        %2733 = vst.msk [vmem:[%s217 + $0x1d] sm:$0x1] %vm2432, %v2718
        %2734 = vst.msk [vmem:[%s217 + $0x2d] sm:$0x1] %vm2432, %v2719
        %2735 = vst.msk [vmem:[%s217 + $0x3d] sm:$0x1] %vm2432, %v2720
        %2736 = vst.msk [vmem:[%s217 + $0x4d] sm:$0x1] %vm2432, %v2721
        %2737 = vst.msk [vmem:[%s217 + $0x5d] sm:$0x1] %vm2432, %v2722
        %2738 = vst.msk [vmem:[%s217 + $0x6d] sm:$0x1] %vm2432, %v2723
        %2739 = vst.msk [vmem:[%s217 + $0x7d] sm:$0x1] %vm2432, %v2724
        %v2741 = vrot.slane %v2415, 1
        %v2742 = vrot.slane %v2415, 2
        %v2743 = vrot.slane %v2415, 3
        %v2744 = vrot.slane %v2415, 4
        %v2745 = vrot.slane %v2415, 5
        %v2746 = vrot.slane %v2415, 6
        %v2747 = vrot.slane %v2415, 7
        %2755 = vst.msk [vmem:[%s217 + $0xe] sm:$0x1] %vm2432, %v2415
        %2756 = vst.msk [vmem:[%s217 + $0x1e] sm:$0x1] %vm2432, %v2741
        %2757 = vst.msk [vmem:[%s217 + $0x2e] sm:$0x1] %vm2432, %v2742
        %2758 = vst.msk [vmem:[%s217 + $0x3e] sm:$0x1] %vm2432, %v2743
        %2759 = vst.msk [vmem:[%s217 + $0x4e] sm:$0x1] %vm2432, %v2744
        %2760 = vst.msk [vmem:[%s217 + $0x5e] sm:$0x1] %vm2432, %v2745
        %2761 = vst.msk [vmem:[%s217 + $0x6e] sm:$0x1] %vm2432, %v2746
        %2762 = vst.msk [vmem:[%s217 + $0x7e] sm:$0x1] %vm2432, %v2747
        %v2764 = vrot.slane %v2416, 1
        %v2765 = vrot.slane %v2416, 2
        %v2766 = vrot.slane %v2416, 3
        %v2767 = vrot.slane %v2416, 4
        %v2768 = vrot.slane %v2416, 5
        %v2769 = vrot.slane %v2416, 6
        %v2770 = vrot.slane %v2416, 7
        %2778 = vst.msk [vmem:[%s217 + $0xf] sm:$0x1] %vm2432, %v2416
        %2779 = vst.msk [vmem:[%s217 + $0x1f] sm:$0x1] %vm2432, %v2764
        %2780 = vst.msk [vmem:[%s217 + $0x2f] sm:$0x1] %vm2432, %v2765
        %2781 = vst.msk [vmem:[%s217 + $0x3f] sm:$0x1] %vm2432, %v2766
        %2782 = vst.msk [vmem:[%s217 + $0x4f] sm:$0x1] %vm2432, %v2767
        %2783 = vst.msk [vmem:[%s217 + $0x5f] sm:$0x1] %vm2432, %v2768
        %2784 = vst.msk [vmem:[%s217 + $0x6f] sm:$0x1] %vm2432, %v2769
        %2785 = vst.msk [vmem:[%s217 + $0x7f] sm:$0x1] %vm2432, %v2770
        %s2786 = sand.u32 %s118, 1
        %s2787 = scalar_lea.sflag [#allocation5], %s2786
        %s2788 = sand.u32 %s118, 1
        %s2789 = smul.addr %s2788, 128
        %s2790 = scalar_lea.vmem [#allocation6], %s2789
        // Predicated region
        $region41: #{deconv_relu.1} parent=35 // pred_check
          %p2791 = pneg %p128
        $region42: #{deconv_relu.1} parent=35 // pred_check_branch
          %2793 = sbr.rel (%p2791) target = $region44
        $region43: #{deconv_relu.1} parent=35 // pred_region
          %2795 = vsyncadd %s2787, 0
          %s2796 = smul.addr %s21, 16
          %s2797 = smul.addr %s2796, 8
          %s2798 = scalar_lea.hbm %s4, %s2797
          %s2799 = sshll.u32 %s2790, 4
          %s2800 = int_to_ptr.vmem [resolvable:$true] %s2799
          %s2801 = sshll.u32 %s2798, 4
          %s2802 = int_to_ptr.hbm [resolvable:$true] %s2801
          %2807 = dma.vmem_to_hbm [thread:$0]  %s2800, 2048, %s2802, %s2787, 128, 128, 8
        $region44: #{deconv_relu.1} parent=35 // pred_fallthru
          _
      $region36: #{deconv_relu.1} parent=5 // pred_fallthru
        _
      %p2808 = scmp.le.s32.totalorder 2, %s16
      // Predicated region
      $region45: #{deconv_relu.1} parent=5 // pred_check
        %p2809 = pneg %p2808
      $region46: #{deconv_relu.1} parent=5 // pred_check_branch
        %2811 = sbr.rel (%p2809) target = $region48
      $region47: #{deconv_relu.1} parent=5 // pred_region
        %s2812 = ssub.s32 %s16, 2
        // Predicated region
        $region49: #{deconv_relu.1} parent=47 // pred_check
          %p2813 = pneg %p134
        $region50: #{deconv_relu.1} parent=47 // pred_check_branch
          %2815 = sbr.rel (%p2813) target = $region52
        $region51: #{deconv_relu.1} parent=47 // pred_region
          %s2816 = sand.u32 %s119, 1
          %s2817 = scalar_lea.sflag [#allocation5], %s2816
          %s2818 = sand.u32 %s119, 1
          %s2819 = smul.addr %s2818, 128
          %s2820 = scalar_lea.vmem [#allocation6], %s2819
          %2822 = dma.done %s2817, 2048
        $region52: #{deconv_relu.1} parent=47 // pred_fallthru
          _
      $region48: #{deconv_relu.1} parent=5 // pred_fallthru
        _
    $region6: #{deconv_relu.1} parent=1 // loop_footer
      %s20 = sadd.s32 1, %s16
    $region7: #{deconv_relu.1} parent=1 // loop_footer_branch
      %15 = sbr.rel target = $region3
    $region8: #{deconv_relu.1} parent=1 // loop_exit
      _
    %2823 = vsyncpa [#allocation4], 1
    %s2824 = scalar_lea.sflag [#allocation4], 1
    %2825 = vsyncpa %s2824, 1
    %2826 = vsyncpa [#allocation5], 1
    %s2827 = scalar_lea.sflag [#allocation5], 1
    %2828 = vsyncpa %s2827, 1

</llo_original>
